<compile_context>
chip_gen: v6e
topology: v6e:2x2x1
jax: 0.10.0
libtpu: 0.0.40
codegen_flags: <defaults>
</compile_context>

<pallas_src>
import jax
import jax.numpy as jnp
from jax.experimental import pallas as pl
from jax.experimental.pallas import tpu as pltpu


# ----------------------------------------------------------------------------
# Fused kernel:
#   sigmoid(edge)*body -> conv1(1x1) -> [pad in VMEM scratch]
#   -> dcn_offset(3x3, mask channels only) -> mask-modulated 3x3 conv
#   -> dcn_bn(+ReLU, scale folded) -> conv2(1x1, norm folded) -> + body
# ----------------------------------------------------------------------------
def _erm_fused_kernel(edge_ref, body_ref, w1_ref, b1_ref, woffm_ref,
                      boffm_ref, wdcn_ref, dcnb_ref, w2_ref, b2_ref,
                      out_ref, y1p_ref):
    _, H, W, Cin = edge_ref.shape
    Cmid = w1_ref.shape[1]
    HW = H * W
    K = 9

    # ---- stage A: sigmoid(edge) * body -> conv1 (1x1) -------------------
    e = edge_ref[0].reshape(HW, Cin)
    b = body_ref[0].reshape(HW, Cin)                     # reused for residual
    t = jax.nn.sigmoid(e) * b
    y1 = jnp.dot(t.astype(jnp.bfloat16), w1_ref[...],
                 preferred_element_type=jnp.float32) + b1_ref[...]

    # ---- in-kernel zero-padding of y1 into a VMEM scratch ---------------
    y1p_ref[...] = jnp.zeros_like(y1p_ref)               # cheap (tiny) border
    y1p_ref[1:H + 1, 1:W + 1, :] = y1.reshape(H, W, Cmid)

    # ---- im2col slab (HW, 9*Cmid), built once, reused by both convs -----
    taps = [y1p_ref[di:di + H, dj:dj + W, :].reshape(HW, Cmid)
            for di in range(3) for dj in range(3)]
    slab = jnp.concatenate(taps, axis=-1).astype(jnp.bfloat16)

    # ---- dcn_offset conv: mask channels only (offsets are exactly 0) ----
    mask_logits = jnp.dot(slab, woffm_ref[...],
                          preferred_element_type=jnp.float32) + boffm_ref[...]
    mask = jax.nn.sigmoid(mask_logits)                   # (HW, 9), f32

    # ---- modulated deformable 3x3 conv (zero offsets), one wide-K matmul
    masked = jnp.concatenate(
        [taps[k] * mask[:, k:k + 1] for k in range(K)],
        axis=-1).astype(jnp.bfloat16)
    acc = jnp.dot(masked, wdcn_ref[...],
                  preferred_element_type=jnp.float32)    # dcn_scale folded in

    # dcn_bn bias + ReLU
    z = jnp.maximum(acc + dcnb_ref[...], 0.0)

    # conv2 (1x1) with norm folded, + residual add of body
    y2 = jnp.dot(z.astype(jnp.bfloat16), w2_ref[...],
                 preferred_element_type=jnp.float32) + b2_ref[...]
    out = y2 + b
    out_ref[0] = out.reshape(H, W, Cin).astype(out_ref.dtype)


# ----------------------------------------------------------------------------
# Wrapper: trace-time weight folding + single pallas_call
# ----------------------------------------------------------------------------
def erm_forward(edge, body, p):
    N, H, W, Cin = edge.shape
    Cmid = p["w1"].shape[1]

    # Fold BNs, keep only the mask channels of dcn_offset, cast to bf16.
    w1 = p["w1"].astype(jnp.bfloat16)                              # (Cin, Cmid)
    b1 = p["b1"].astype(jnp.float32)                               # (1, Cmid)
    woffm = p["woff"][:, :, 18:27].reshape(9 * Cmid, 9).astype(jnp.bfloat16)
    boffm = p["boff"][:, 18:27].astype(jnp.float32)                # (1, 9)
    wdcn = (p["wdcn"].reshape(9 * Cmid, Cmid)
            * p["dcn_scale"]).astype(jnp.bfloat16)                 # (9*Cmid, Cmid)
    dcnb = p["dcn_bias"].astype(jnp.float32)                       # (1, Cmid)
    w2 = (p["w2"] * p["norm_scale"]).astype(jnp.bfloat16)          # (Cmid, Cin)
    b2 = (p["b2"] * p["norm_scale"] + p["norm_bias"]).astype(jnp.float32)

    per_img = lambda C: pl.BlockSpec((1, H, W, C), lambda b: (b, 0, 0, 0))

    def fullw(a):
        nd = a.ndim
        return pl.BlockSpec(a.shape, lambda b, _nd=nd: (0,) * _nd)

    out = pl.pallas_call(
        _erm_fused_kernel,
        out_shape=jax.ShapeDtypeStruct((N, H, W, Cin), jnp.float32),
        grid=(N,),
        in_specs=[per_img(Cin), per_img(Cin),
                  fullw(w1), fullw(b1), fullw(woffm), fullw(boffm),
                  fullw(wdcn), fullw(dcnb), fullw(w2), fullw(b2)],
        out_specs=per_img(Cin),
        scratch_shapes=[pltpu.VMEM((H + 2, W + 2, Cmid), jnp.float32)],
        compiler_params=pltpu.CompilerParams(
            dimension_semantics=("parallel",)),
    )(edge, body, w1, b1, woffm, boffm, wdcn, dcnb, w2, b2)
    return out


# ----------------------------------------------------------------------------
# Pure-JAX f32 reference (same math) for a correctness check.
# ----------------------------------------------------------------------------
def erm_reference(edge, body, p):
    hp = jax.lax.Precision.HIGHEST
    N, H, W, Cin = edge.shape
    Cmid = p["w1"].shape[1]
    t = jax.nn.sigmoid(edge) * body
    y1 = jnp.einsum("nhwc,cd->nhwd", t, p["w1"], precision=hp) + p["b1"][0]
    y1p = jnp.pad(y1, ((0, 0), (1, 1), (1, 1), (0, 0)))
    offmask = jnp.zeros((N, H, W, p["woff"].shape[2])) + p["boff"][0]
    for k in range(9):
        di, dj = k // 3, k % 3
        offmask = offmask + jnp.einsum(
            "nhwc,cd->nhwd", y1p[:, di:di + H, dj:dj + W, :],
            p["woff"][k], precision=hp)
    mask = jax.nn.sigmoid(offmask[..., 18:27])
    acc = jnp.zeros((N, H, W, Cmid))
    for k in range(9):
        di, dj = k // 3, k % 3
        acc = acc + jnp.einsum(
            "nhwc,cd->nhwd",
            y1p[:, di:di + H, dj:dj + W, :] * mask[..., k:k + 1],
            p["wdcn"][k], precision=hp)
    z = jnp.maximum(acc * p["dcn_scale"][0] + p["dcn_bias"][0], 0.0)
    y2 = jnp.einsum("nhwc,cd->nhwd", z, p["w2"], precision=hp) + p["b2"][0]
    return (y2 * p["norm_scale"][0] + p["norm_bias"][0]) + body


if __name__ == "__main__":
    N, Cin, Cmid, H, W = 2, 8, 16, 16, 16
    eps = 1e-5

    key = jax.random.PRNGKey(0)
    ks = jax.random.split(key, 8)
    edge = jax.random.normal(ks[0], (N, H, W, Cin), jnp.float32)
    body = jax.random.normal(ks[1], (N, H, W, Cin), jnp.float32)

    params = {
        # conv1: torch weight (Cmid, Cin, 1, 1) -> (Cin, Cmid)
        "w1": (jax.random.normal(ks[2], (Cin, Cmid), jnp.float32) * 0.1),
        "b1": (jax.random.normal(ks[3], (1, Cmid), jnp.float32) * 0.1),
        # dcn_offset: zero-initialized per DeformLayer.init_weights
        "woff": jnp.zeros((9, Cmid, 27), jnp.float32),
        "boff": jnp.zeros((1, 27), jnp.float32),
        # dcn: kaiming_normal fan_out relu -> std = sqrt(2 / (Cmid * 9))
        # torch weight (Cmid, Cmid, 3, 3) -> wdcn[ki*3+kj, cin, cout]
        "wdcn": (jax.random.normal(ks[4], (9, Cmid, Cmid), jnp.float32)
                 * (2.0 / (Cmid * 9)) ** 0.5),
        # conv2: torch weight (Cin, Cmid, 1, 1) -> (Cmid, Cin)
        "w2": (jax.random.normal(ks[5], (Cmid, Cin), jnp.float32) * 0.1),
        "b2": (jax.random.normal(ks[6], (1, Cin), jnp.float32) * 0.1),
        # BatchNorms, inference mode, PyTorch-default running stats folded:
        "dcn_scale": jnp.full((1, Cmid), 1.0 / (1.0 + eps) ** 0.5, jnp.float32),
        "dcn_bias": jnp.zeros((1, Cmid), jnp.float32),
        "norm_scale": jnp.full((1, Cin), 1.0 / (1.0 + eps) ** 0.5, jnp.float32),
        "norm_bias": jnp.zeros((1, Cin), jnp.float32),
    }

    out = jax.jit(erm_forward)(edge, body, params)
    out = jax.block_until_ready(out)

    ref = erm_reference(edge, body, params)
    assert out.shape == (N, H, W, Cin)
    # bf16 MXU inputs (f32 accumulation) -> slightly looser tolerance than f32
    assert jnp.allclose(out, ref, rtol=1e-2, atol=1e-2), \
        f"max abs err {jnp.max(jnp.abs(out - ref))}"

    print("KERNEL_OK")
</pallas_src>

<mosaic_0001>
module attributes {stable_mosaic.version = 11 : i64} {
  func.func @_erm_fused_kernel(%arg0: i32, %arg1: memref<1x16x16x8xf32, #tpu.memory_space<vmem>>, %arg2: memref<1x16x16x8xf32, #tpu.memory_space<vmem>>, %arg3: memref<8x16xbf16, #tpu.memory_space<vmem>>, %arg4: memref<1x16xf32, #tpu.memory_space<vmem>>, %arg5: memref<144x9xbf16, #tpu.memory_space<vmem>>, %arg6: memref<1x9xf32, #tpu.memory_space<vmem>>, %arg7: memref<144x16xbf16, #tpu.memory_space<vmem>>, %arg8: memref<1x16xf32, #tpu.memory_space<vmem>>, %arg9: memref<16x8xbf16, #tpu.memory_space<vmem>>, %arg10: memref<1x8xf32, #tpu.memory_space<vmem>>, %arg11: memref<1x16x16x8xf32, #tpu.memory_space<vmem>>, %arg12: memref<18x18x16xf32, #tpu.memory_space<vmem>>) attributes {dimension_semantics = [#tpu.dimension_semantics<parallel>], iteration_bounds = array<i64: 2>, scalar_prefetch = 0 : i64, scratch_operands = 1 : i64, tpu.core_type = #tpu.core_type<tc>, window_params = [{transform_indices = @transform_0, window_bounds = array<i64: 1, 16, 16, 8>}, {transform_indices = @transform_1, window_bounds = array<i64: 1, 16, 16, 8>}, {pipeline_mode = #tpu.pipeline_mode<synchronous>, transform_indices = @transform_2, window_bounds = array<i64: 8, 16>}, {pipeline_mode = #tpu.pipeline_mode<synchronous>, transform_indices = @transform_3, window_bounds = array<i64: 1, 16>}, {pipeline_mode = #tpu.pipeline_mode<synchronous>, transform_indices = @transform_4, window_bounds = array<i64: 144, 9>}, {pipeline_mode = #tpu.pipeline_mode<synchronous>, transform_indices = @transform_5, window_bounds = array<i64: 1, 9>}, {pipeline_mode = #tpu.pipeline_mode<synchronous>, transform_indices = @transform_6, window_bounds = array<i64: 144, 16>}, {pipeline_mode = #tpu.pipeline_mode<synchronous>, transform_indices = @transform_7, window_bounds = array<i64: 1, 16>}, {pipeline_mode = #tpu.pipeline_mode<synchronous>, transform_indices = @transform_8, window_bounds = array<i64: 16, 8>}, {pipeline_mode = #tpu.pipeline_mode<synchronous>, transform_indices = @transform_9, window_bounds = array<i64: 1, 8>}, {transform_indices = @transform_10, window_bounds = array<i64: 1, 16, 16, 8>}]} {
    %c0 = arith.constant 0 : index
    %c0_0 = arith.constant 0 : index
    %c0_1 = arith.constant 0 : index
    %c0_2 = arith.constant 0 : index
    %0 = vector.load %arg1[%c0, %c0_0, %c0_1, %c0_2] : memref<1x16x16x8xf32, #tpu.memory_space<vmem>>, vector<1x16x16x8xf32>
    %1 = vector.shape_cast %0 : vector<1x16x16x8xf32> to vector<16x16x8xf32>
    %2 = vector.shape_cast %1 : vector<16x16x8xf32> to vector<256x8xf32>
    %c0_3 = arith.constant 0 : index
    %c0_4 = arith.constant 0 : index
    %c0_5 = arith.constant 0 : index
    %c0_6 = arith.constant 0 : index
    %3 = vector.load %arg2[%c0_3, %c0_4, %c0_5, %c0_6] : memref<1x16x16x8xf32, #tpu.memory_space<vmem>>, vector<1x16x16x8xf32>
    %4 = vector.shape_cast %3 : vector<1x16x16x8xf32> to vector<16x16x8xf32>
    %5 = vector.shape_cast %4 : vector<16x16x8xf32> to vector<256x8xf32>
    %6 = arith.negf %2 : vector<256x8xf32>
    %7 = math.exp %6 : vector<256x8xf32>
    %cst = arith.constant 1.000000e+00 : f32
    %8 = vector.broadcast %cst : f32 to vector<256x8xf32>
    %9 = arith.addf %8, %7 : vector<256x8xf32>
    %10 = arith.divf %8, %9 : vector<256x8xf32>
    %11 = arith.mulf %10, %5 : vector<256x8xf32>
    %12 = arith.truncf %11 : vector<256x8xf32> to vector<256x8xbf16>
    %c0_7 = arith.constant 0 : index
    %c0_8 = arith.constant 0 : index
    %13 = vector.load %arg3[%c0_7, %c0_8] : memref<8x16xbf16, #tpu.memory_space<vmem>>, vector<8x16xbf16>
    %cst_9 = arith.constant dense<0.000000e+00> : vector<256x16xf32>
    %14 = tpu.matmul %12, %13, %cst_9 {dimension_numbers = #tpu.dot_dimension_numbers<[1], [0], [0], [1], [0, 0, 1, 1], [], []>} : vector<256x8xbf16>, vector<8x16xbf16>, vector<256x16xf32> -> vector<256x16xf32>
    %c0_10 = arith.constant 0 : index
    %c0_11 = arith.constant 0 : index
    %15 = vector.load %arg4[%c0_10, %c0_11] : memref<1x16xf32, #tpu.memory_space<vmem>>, vector<1x16xf32>
    %16 = vector.broadcast %15 : vector<1x16xf32> to vector<256x16xf32>
    %17 = arith.addf %14, %16 : vector<256x16xf32>
    %cst_12 = arith.constant 0.000000e+00 : f32
    %18 = vector.broadcast %cst_12 : f32 to vector<18x18x16xf32>
    %c0_13 = arith.constant 0 : index
    %c0_14 = arith.constant 0 : index
    %c0_15 = arith.constant 0 : index
    %19 = vector.load %arg12[%c0_13, %c0_14, %c0_15] : memref<18x18x16xf32, #tpu.memory_space<vmem>>, vector<18x18x16xf32>
    tpu.vector_store %arg12[%c0_13, %c0_14, %c0_15], %18 {strides = array<i32>} : memref<18x18x16xf32, #tpu.memory_space<vmem>>, vector<18x18x16xf32>,
    %20 = vector.shape_cast %17 : vector<256x16xf32> to vector<16x16x16xf32>
    %c1 = arith.constant 1 : index
    %c1_16 = arith.constant 1 : index
    %c0_17 = arith.constant 0 : index
    %21 = vector.load %arg12[%c1, %c1_16, %c0_17] : memref<18x18x16xf32, #tpu.memory_space<vmem>>, vector<16x16x16xf32>
    tpu.vector_store %arg12[%c1, %c1_16, %c0_17], %20 {strides = array<i32>} : memref<18x18x16xf32, #tpu.memory_space<vmem>>, vector<16x16x16xf32>,
    %c0_18 = arith.constant 0 : index
    %c0_19 = arith.constant 0 : index
    %c0_20 = arith.constant 0 : index
    %22 = vector.load %arg12[%c0_18, %c0_19, %c0_20] : memref<18x18x16xf32, #tpu.memory_space<vmem>>, vector<16x16x16xf32>
    %23 = vector.shape_cast %22 : vector<16x16x16xf32> to vector<256x16xf32>
    %c0_21 = arith.constant 0 : index
    %c1_22 = arith.constant 1 : index
    %c0_23 = arith.constant 0 : index
    %24 = vector.load %arg12[%c0_21, %c1_22, %c0_23] : memref<18x18x16xf32, #tpu.memory_space<vmem>>, vector<16x16x16xf32>
    %25 = vector.shape_cast %24 : vector<16x16x16xf32> to vector<256x16xf32>
    %c0_24 = arith.constant 0 : index
    %c2 = arith.constant 2 : index
    %c0_25 = arith.constant 0 : index
    %26 = vector.load %arg12[%c0_24, %c2, %c0_25] : memref<18x18x16xf32, #tpu.memory_space<vmem>>, vector<16x16x16xf32>
    %27 = vector.shape_cast %26 : vector<16x16x16xf32> to vector<256x16xf32>
    %c1_26 = arith.constant 1 : index
    %c0_27 = arith.constant 0 : index
    %c0_28 = arith.constant 0 : index
    %28 = vector.load %arg12[%c1_26, %c0_27, %c0_28] : memref<18x18x16xf32, #tpu.memory_space<vmem>>, vector<16x16x16xf32>
    %29 = vector.shape_cast %28 : vector<16x16x16xf32> to vector<256x16xf32>
    %c1_29 = arith.constant 1 : index
    %c1_30 = arith.constant 1 : index
    %c0_31 = arith.constant 0 : index
    %30 = vector.load %arg12[%c1_29, %c1_30, %c0_31] : memref<18x18x16xf32, #tpu.memory_space<vmem>>, vector<16x16x16xf32>
    %31 = vector.shape_cast %30 : vector<16x16x16xf32> to vector<256x16xf32>
    %c1_32 = arith.constant 1 : index
    %c2_33 = arith.constant 2 : index
    %c0_34 = arith.constant 0 : index
    %32 = vector.load %arg12[%c1_32, %c2_33, %c0_34] : memref<18x18x16xf32, #tpu.memory_space<vmem>>, vector<16x16x16xf32>
    %33 = vector.shape_cast %32 : vector<16x16x16xf32> to vector<256x16xf32>
    %c2_35 = arith.constant 2 : index
    %c0_36 = arith.constant 0 : index
    %c0_37 = arith.constant 0 : index
    %34 = vector.load %arg12[%c2_35, %c0_36, %c0_37] : memref<18x18x16xf32, #tpu.memory_space<vmem>>, vector<16x16x16xf32>
    %35 = vector.shape_cast %34 : vector<16x16x16xf32> to vector<256x16xf32>
    %c2_38 = arith.constant 2 : index
    %c1_39 = arith.constant 1 : index
    %c0_40 = arith.constant 0 : index
    %36 = vector.load %arg12[%c2_38, %c1_39, %c0_40] : memref<18x18x16xf32, #tpu.memory_space<vmem>>, vector<16x16x16xf32>
    %37 = vector.shape_cast %36 : vector<16x16x16xf32> to vector<256x16xf32>
    %c2_41 = arith.constant 2 : index
    %c2_42 = arith.constant 2 : index
    %c0_43 = arith.constant 0 : index
    %38 = vector.load %arg12[%c2_41, %c2_42, %c0_43] : memref<18x18x16xf32, #tpu.memory_space<vmem>>, vector<16x16x16xf32>
    %39 = vector.shape_cast %38 : vector<16x16x16xf32> to vector<256x16xf32>
    %40 = tpu.concatenate %23, %25, %27, %29, %31, %33, %35, %37, %39 in 1 : vector<256x16xf32>, vector<256x16xf32>, vector<256x16xf32>, vector<256x16xf32>, vector<256x16xf32>, vector<256x16xf32>, vector<256x16xf32>, vector<256x16xf32>, vector<256x16xf32> -> vector<256x144xf32>
    %41 = arith.truncf %40 : vector<256x144xf32> to vector<256x144xbf16>
    %c0_44 = arith.constant 0 : index
    %c0_45 = arith.constant 0 : index
    %42 = vector.load %arg5[%c0_44, %c0_45] : memref<144x9xbf16, #tpu.memory_space<vmem>>, vector<144x9xbf16>
    %cst_46 = arith.constant dense<0.000000e+00> : vector<256x9xf32>
    %43 = tpu.matmul %41, %42, %cst_46 {dimension_numbers = #tpu.dot_dimension_numbers<[1], [0], [0], [1], [0, 0, 1, 1], [], []>} : vector<256x144xbf16>, vector<144x9xbf16>, vector<256x9xf32> -> vector<256x9xf32>
    %c0_47 = arith.constant 0 : index
    %c0_48 = arith.constant 0 : index
    %44 = vector.load %arg6[%c0_47, %c0_48] : memref<1x9xf32, #tpu.memory_space<vmem>>, vector<1x9xf32>
    %45 = vector.broadcast %44 : vector<1x9xf32> to vector<256x9xf32>
    %46 = arith.addf %43, %45 : vector<256x9xf32>
    %47 = arith.negf %46 : vector<256x9xf32>
    %48 = math.exp %47 : vector<256x9xf32>
    %cst_49 = arith.constant 1.000000e+00 : f32
    %49 = vector.broadcast %cst_49 : f32 to vector<256x9xf32>
    %50 = arith.addf %49, %48 : vector<256x9xf32>
    %51 = arith.divf %49, %50 : vector<256x9xf32>
    %52 = vector.extract_strided_slice %51 {offsets = [0, 0], sizes = [256, 1], strides = [1, 1]} : vector<256x9xf32> to vector<256x1xf32>
    %53 = vector.broadcast %52 : vector<256x1xf32> to vector<256x16xf32>
    %54 = arith.mulf %23, %53 : vector<256x16xf32>
    %55 = vector.extract_strided_slice %51 {offsets = [0, 1], sizes = [256, 1], strides = [1, 1]} : vector<256x9xf32> to vector<256x1xf32>
    %56 = vector.broadcast %55 : vector<256x1xf32> to vector<256x16xf32>
    %57 = arith.mulf %25, %56 : vector<256x16xf32>
    %58 = vector.extract_strided_slice %51 {offsets = [0, 2], sizes = [256, 1], strides = [1, 1]} : vector<256x9xf32> to vector<256x1xf32>
    %59 = vector.broadcast %58 : vector<256x1xf32> to vector<256x16xf32>
    %60 = arith.mulf %27, %59 : vector<256x16xf32>
    %61 = vector.extract_strided_slice %51 {offsets = [0, 3], sizes = [256, 1], strides = [1, 1]} : vector<256x9xf32> to vector<256x1xf32>
    %62 = vector.broadcast %61 : vector<256x1xf32> to vector<256x16xf32>
    %63 = arith.mulf %29, %62 : vector<256x16xf32>
    %64 = vector.extract_strided_slice %51 {offsets = [0, 4], sizes = [256, 1], strides = [1, 1]} : vector<256x9xf32> to vector<256x1xf32>
    %65 = vector.broadcast %64 : vector<256x1xf32> to vector<256x16xf32>
    %66 = arith.mulf %31, %65 : vector<256x16xf32>
    %67 = vector.extract_strided_slice %51 {offsets = [0, 5], sizes = [256, 1], strides = [1, 1]} : vector<256x9xf32> to vector<256x1xf32>
    %68 = vector.broadcast %67 : vector<256x1xf32> to vector<256x16xf32>
    %69 = arith.mulf %33, %68 : vector<256x16xf32>
    %70 = vector.extract_strided_slice %51 {offsets = [0, 6], sizes = [256, 1], strides = [1, 1]} : vector<256x9xf32> to vector<256x1xf32>
    %71 = vector.broadcast %70 : vector<256x1xf32> to vector<256x16xf32>
    %72 = arith.mulf %35, %71 : vector<256x16xf32>
    %73 = vector.extract_strided_slice %51 {offsets = [0, 7], sizes = [256, 1], strides = [1, 1]} : vector<256x9xf32> to vector<256x1xf32>
    %74 = vector.broadcast %73 : vector<256x1xf32> to vector<256x16xf32>
    %75 = arith.mulf %37, %74 : vector<256x16xf32>
    %76 = vector.extract_strided_slice %51 {offsets = [0, 8], sizes = [256, 1], strides = [1, 1]} : vector<256x9xf32> to vector<256x1xf32>
    %77 = vector.broadcast %76 : vector<256x1xf32> to vector<256x16xf32>
    %78 = arith.mulf %39, %77 : vector<256x16xf32>
    %79 = tpu.concatenate %54, %57, %60, %63, %66, %69, %72, %75, %78 in 1 : vector<256x16xf32>, vector<256x16xf32>, vector<256x16xf32>, vector<256x16xf32>, vector<256x16xf32>, vector<256x16xf32>, vector<256x16xf32>, vector<256x16xf32>, vector<256x16xf32> -> vector<256x144xf32>
    %80 = arith.truncf %79 : vector<256x144xf32> to vector<256x144xbf16>
    %c0_50 = arith.constant 0 : index
    %c0_51 = arith.constant 0 : index
    %81 = vector.load %arg7[%c0_50, %c0_51] : memref<144x16xbf16, #tpu.memory_space<vmem>>, vector<144x16xbf16>
    %cst_52 = arith.constant dense<0.000000e+00> : vector<256x16xf32>
    %82 = tpu.matmul %80, %81, %cst_52 {dimension_numbers = #tpu.dot_dimension_numbers<[1], [0], [0], [1], [0, 0, 1, 1], [], []>} : vector<256x144xbf16>, vector<144x16xbf16>, vector<256x16xf32> -> vector<256x16xf32>
    %c0_53 = arith.constant 0 : index
    %c0_54 = arith.constant 0 : index
    %83 = vector.load %arg8[%c0_53, %c0_54] : memref<1x16xf32, #tpu.memory_space<vmem>>, vector<1x16xf32>
    %84 = vector.broadcast %83 : vector<1x16xf32> to vector<256x16xf32>
    %85 = arith.addf %82, %84 : vector<256x16xf32>
    %cst_55 = arith.constant 0.000000e+00 : f32
    %86 = vector.broadcast %cst_55 : f32 to vector<256x16xf32>
    %87 = arith.maximumf %85, %86 : vector<256x16xf32>
    %88 = arith.truncf %87 : vector<256x16xf32> to vector<256x16xbf16>
    %c0_56 = arith.constant 0 : index
    %c0_57 = arith.constant 0 : index
    %89 = vector.load %arg9[%c0_56, %c0_57] : memref<16x8xbf16, #tpu.memory_space<vmem>>, vector<16x8xbf16>
    %cst_58 = arith.constant dense<0.000000e+00> : vector<256x8xf32>
    %90 = tpu.matmul %88, %89, %cst_58 {dimension_numbers = #tpu.dot_dimension_numbers<[1], [0], [0], [1], [0, 0, 1, 1], [], []>} : vector<256x16xbf16>, vector<16x8xbf16>, vector<256x8xf32> -> vector<256x8xf32>
    %c0_59 = arith.constant 0 : index
    %c0_60 = arith.constant 0 : index
    %91 = vector.load %arg10[%c0_59, %c0_60] : memref<1x8xf32, #tpu.memory_space<vmem>>, vector<1x8xf32>
    %92 = vector.broadcast %91 : vector<1x8xf32> to vector<256x8xf32>
    %93 = arith.addf %90, %92 : vector<256x8xf32>
    %94 = arith.addf %93, %5 : vector<256x8xf32>
    %95 = vector.shape_cast %94 : vector<256x8xf32> to vector<16x16x8xf32>
    %c0_61 = arith.constant 0 : index
    %c0_62 = arith.constant 0 : index
    %c0_63 = arith.constant 0 : index
    %c0_64 = arith.constant 0 : index
    %96 = vector.load %arg11[%c0_61, %c0_62, %c0_63, %c0_64] : memref<1x16x16x8xf32, #tpu.memory_space<vmem>>, vector<1x16x16x8xf32>
    %97 = vector.shape_cast %96 : vector<1x16x16x8xf32> to vector<16x16x8xf32>
    %98 = vector.shape_cast %95 : vector<16x16x8xf32> to vector<1x16x16x8xf32>
    tpu.vector_store %arg11[%c0_61, %c0_62, %c0_63, %c0_64], %98 {strides = array<i32>} : memref<1x16x16x8xf32, #tpu.memory_space<vmem>>, vector<1x16x16x8xf32>,
    return
  }
  func.func @transform_0(%arg0: i32) -> (i32, i32, i32, i32) {
    %c0_i32 = arith.constant 0 : i32
    %c0_i32_0 = arith.constant 0 : i32
    %c0_i32_1 = arith.constant 0 : i32
    %c0_i32_2 = arith.constant 0 : i32
    return %arg0, %c0_i32, %c0_i32_0, %c0_i32_1 : i32, i32, i32, i32
  }
  func.func @transform_1(%arg0: i32) -> (i32, i32, i32, i32) {
    %c0_i32 = arith.constant 0 : i32
    %c0_i32_0 = arith.constant 0 : i32
    %c0_i32_1 = arith.constant 0 : i32
    %c0_i32_2 = arith.constant 0 : i32
    return %arg0, %c0_i32, %c0_i32_0, %c0_i32_1 : i32, i32, i32, i32
  }
  func.func @transform_2(%arg0: i32) -> (i32, i32) {
    %c0_i32 = arith.constant 0 : i32
    %c0_i32_0 = arith.constant 0 : i32
    %c0_i32_1 = arith.constant 0 : i32
    return %c0_i32, %c0_i32_0 : i32, i32
  }
  func.func @transform_3(%arg0: i32) -> (i32, i32) {
    %c0_i32 = arith.constant 0 : i32
    %c0_i32_0 = arith.constant 0 : i32
    %c0_i32_1 = arith.constant 0 : i32
    return %c0_i32, %c0_i32_0 : i32, i32
  }
  func.func @transform_4(%arg0: i32) -> (i32, i32) {
    %c0_i32 = arith.constant 0 : i32
    %c0_i32_0 = arith.constant 0 : i32
    %c0_i32_1 = arith.constant 0 : i32
    return %c0_i32, %c0_i32_0 : i32, i32
  }
  func.func @transform_5(%arg0: i32) -> (i32, i32) {
    %c0_i32 = arith.constant 0 : i32
    %c0_i32_0 = arith.constant 0 : i32
    %c0_i32_1 = arith.constant 0 : i32
    return %c0_i32, %c0_i32_0 : i32, i32
  }
  func.func @transform_6(%arg0: i32) -> (i32, i32) {
    %c0_i32 = arith.constant 0 : i32
    %c0_i32_0 = arith.constant 0 : i32
    %c0_i32_1 = arith.constant 0 : i32
    return %c0_i32, %c0_i32_0 : i32, i32
  }
  func.func @transform_7(%arg0: i32) -> (i32, i32) {
    %c0_i32 = arith.constant 0 : i32
    %c0_i32_0 = arith.constant 0 : i32
    %c0_i32_1 = arith.constant 0 : i32
    return %c0_i32, %c0_i32_0 : i32, i32
  }
  func.func @transform_8(%arg0: i32) -> (i32, i32) {
    %c0_i32 = arith.constant 0 : i32
    %c0_i32_0 = arith.constant 0 : i32
    %c0_i32_1 = arith.constant 0 : i32
    return %c0_i32, %c0_i32_0 : i32, i32
  }
  func.func @transform_9(%arg0: i32) -> (i32, i32) {
    %c0_i32 = arith.constant 0 : i32
    %c0_i32_0 = arith.constant 0 : i32
    %c0_i32_1 = arith.constant 0 : i32
    return %c0_i32, %c0_i32_0 : i32, i32
  }
  func.func @transform_10(%arg0: i32) -> (i32, i32, i32, i32) {
    %c0_i32 = arith.constant 0 : i32
    %c0_i32_0 = arith.constant 0 : i32
    %c0_i32_1 = arith.constant 0 : i32
    %c0_i32_2 = arith.constant 0 : i32
    return %arg0, %c0_i32, %c0_i32_0, %c0_i32_1 : i32, i32, i32, i32
  }
}

</mosaic_0001>

<llo_original>
// kernel: erm_forward.1
$region0: #{erm_forward.1}
  #allocation0 [shape = 'u32[]', space=smem, size = 0x4, offset = 0x4, fixed_abs, tag = 'smem constant byte address 0x4 - core index']
  #allocation1 [shape = 'u32[144,128]{1,0:T(1,128)}', space=vmem, size = 0x12000, scoped, tag = 'internal scratch']
  #allocation2 [shape = 'f32[18,18,16]{2,1,0:T(8,128)}', space=vmem, size = 0x36000, scoped, tag = 'scratch operand']
  %s0 = inlined_call_operand.vmem [shape: f32[2,16,16,8], index: 0, kind: input, shape index: {}]
  %s1 = inlined_call_operand.vmem [shape: f32[2,16,16,8], index: 1, kind: input, shape index: {}]
  %s2 = inlined_call_operand.vmem [shape: bf16[8,16], index: 2, kind: input, shape index: {}]
  %s3 = inlined_call_operand.vmem [shape: f32[1,16], index: 3, kind: input, shape index: {}]
  %s4 = inlined_call_operand.vmem [shape: bf16[144,9], index: 4, kind: input, shape index: {}]
  %s5 = inlined_call_operand.vmem [shape: f32[1,9], index: 5, kind: input, shape index: {}]
  %s6 = inlined_call_operand.vmem [shape: bf16[144,16], index: 6, kind: input, shape index: {}]
  %s7 = inlined_call_operand.vmem [shape: f32[1,16], index: 7, kind: input, shape index: {}]
  %s8 = inlined_call_operand.vmem [shape: bf16[16,8], index: 8, kind: input, shape index: {}]
  %s9 = inlined_call_operand.vmem [shape: f32[1,8], index: 9, kind: input, shape index: {}]
  %s10 = inlined_call_operand.vmem [shape: f32[2,16,16,8], index: 10, kind: output, shape index: {}]
  %s11 = sld [smem:[#allocation0]]
  $region73: #{erm_forward.1} parent=0
    _
  %s13 = ssub.s32 1, %s11
  %s14 = scalar_select 0, %s13, %s11
  loop: start=0, step=1, limit=4
  $region2: #{erm_forward.1} parent=0 // loop_pre_header
    _
  $region3: #{erm_forward.1} parent=0 // loop_header
    %s16 = sphi 0, %s20
    %p17 = scmp.ge.s32.totalorder %s16, 4
    %s26 = sphi 0, %s28
    %s29 = sphi 0, %s26
    %s30 = sphi 0, %s29
    %s46 = sphi 0, %s30
    %s52 = sphi 0, %s54
    %s55 = sphi 0, %s52
    %s56 = sphi 0, %s55
    %s72 = sphi 0, %s56
    %s76 = sphi 0, %s76
    %s78 = sphi 0, %s76
    %s79 = sphi 0, %s78
    %s93 = sphi 0, %s79
    %s97 = sphi 0, %s97
    %s99 = sphi 0, %s97
    %s100 = sphi 0, %s99
    %s114 = sphi 0, %s100
    %s118 = sphi 0, %s118
    %s120 = sphi 0, %s118
    %s121 = sphi 0, %s120
    %s135 = sphi 0, %s121
    %s139 = sphi 0, %s139
    %s141 = sphi 0, %s139
    %s142 = sphi 0, %s141
    %s156 = sphi 0, %s142
    %s160 = sphi 0, %s160
    %s162 = sphi 0, %s160
    %s163 = sphi 0, %s162
    %s177 = sphi 0, %s163
    %s181 = sphi 0, %s181
    %s183 = sphi 0, %s181
    %s184 = sphi 0, %s183
    %s198 = sphi 0, %s184
    %s202 = sphi 0, %s202
    %s204 = sphi 0, %s202
    %s205 = sphi 0, %s204
    %s219 = sphi 0, %s205
    %s223 = sphi 0, %s223
    %s225 = sphi 0, %s223
    %s226 = sphi 0, %s225
    %s240 = sphi 0, %s226
    %s246 = sphi 0, %s248
    %s249 = sphi 0, %s246
    %s250 = sphi 0, %s249
    %s266 = sphi 0, %s250
  $region4: #{erm_forward.1} parent=0 // loop_header_branch
    %19 = sbr.rel (%p17) target = $region8
  $region5: #{erm_forward.1} parent=0 // loop_body
    %s21 = ssub.s32 %s16, 1
    %s22 = ssub.s32 %s16, 2
    %s23 = sadd.s32 %s16, 1
    %s24 = ssub.s32 %s16, %s23
    %p25 = scmp.eq.s32.totalorder %s24, 0
    %s27 = sadd.s32 %s26, 1
    %s28 = scalar_select %p25, %s26, %s27
    %p31 = pneg %p25
    %p32 = scmp.eq.s32.totalorder %s16, 1
    %p33 = por %p31, %p32
    %p34 = scmp.ne.s32.totalorder %s26, %s29
    %p35 = scmp.eq.s32.totalorder %s16, 0
    %p36 = por %p34, %p35
    %p37 = scmp.ne.s32.totalorder %s26, %s29
    %p38 = scmp.eq.s32.totalorder %s21, 1
    %p39 = por %p37, %p38
    %p40 = scmp.ne.s32.totalorder %s29, %s30
    %p41 = scmp.eq.s32.totalorder %s21, 0
    %p42 = por %p40, %p41
    %p43 = scmp.ne.s32.totalorder %s29, %s30
    %p44 = scmp.eq.s32.totalorder %s22, 1
    %p45 = por %p43, %p44
    %p47 = scmp.ne.s32.totalorder %s30, %s46
    %p48 = scmp.eq.s32.totalorder %s22, 0
    %p49 = por %p47, %p48
    %s50 = ssub.s32 %s16, %s23
    %p51 = scmp.eq.s32.totalorder %s50, 0
    %s53 = sadd.s32 %s52, 1
    %s54 = scalar_select %p51, %s52, %s53
    %p57 = pneg %p51
    %p58 = scmp.eq.s32.totalorder %s16, 1
    %p59 = por %p57, %p58
    %p60 = scmp.ne.s32.totalorder %s52, %s55
    %p61 = scmp.eq.s32.totalorder %s16, 0
    %p62 = por %p60, %p61
    %p63 = scmp.ne.s32.totalorder %s52, %s55
    %p64 = scmp.eq.s32.totalorder %s21, 1
    %p65 = por %p63, %p64
    %p66 = scmp.ne.s32.totalorder %s55, %s56
    %p67 = scmp.eq.s32.totalorder %s21, 0
    %p68 = por %p66, %p67
    %p69 = scmp.ne.s32.totalorder %s55, %s56
    %p70 = scmp.eq.s32.totalorder %s22, 1
    %p71 = por %p69, %p70
    %p73 = scmp.ne.s32.totalorder %s56, %s72
    %p74 = scmp.eq.s32.totalorder %s22, 0
    %p75 = por %p73, %p74
    %s77 = sadd.s32 %s76, 1
    %p80 = scmp.eq.s32.totalorder %s16, 1
    %p81 = scmp.ne.s32.totalorder %s76, %s78
    %p82 = scmp.eq.s32.totalorder %s16, 0
    %p83 = por %p81, %p82
    %p84 = scmp.ne.s32.totalorder %s76, %s78
    %p85 = scmp.eq.s32.totalorder %s21, 1
    %p86 = por %p84, %p85
    %p87 = scmp.ne.s32.totalorder %s78, %s79
    %p88 = scmp.eq.s32.totalorder %s21, 0
    %p89 = por %p87, %p88
    %p90 = scmp.ne.s32.totalorder %s78, %s79
    %p91 = scmp.eq.s32.totalorder %s22, 1
    %p92 = por %p90, %p91
    %p94 = scmp.ne.s32.totalorder %s79, %s93
    %p95 = scmp.eq.s32.totalorder %s22, 0
    %p96 = por %p94, %p95
    %s98 = sadd.s32 %s97, 1
    %p101 = scmp.eq.s32.totalorder %s16, 1
    %p102 = scmp.ne.s32.totalorder %s97, %s99
    %p103 = scmp.eq.s32.totalorder %s16, 0
    %p104 = por %p102, %p103
    %p105 = scmp.ne.s32.totalorder %s97, %s99
    %p106 = scmp.eq.s32.totalorder %s21, 1
    %p107 = por %p105, %p106
    %p108 = scmp.ne.s32.totalorder %s99, %s100
    %p109 = scmp.eq.s32.totalorder %s21, 0
    %p110 = por %p108, %p109
    %p111 = scmp.ne.s32.totalorder %s99, %s100
    %p112 = scmp.eq.s32.totalorder %s22, 1
    %p113 = por %p111, %p112
    %p115 = scmp.ne.s32.totalorder %s100, %s114
    %p116 = scmp.eq.s32.totalorder %s22, 0
    %p117 = por %p115, %p116
    %s119 = sadd.s32 %s118, 1
    %p122 = scmp.eq.s32.totalorder %s16, 1
    %p123 = scmp.ne.s32.totalorder %s118, %s120
    %p124 = scmp.eq.s32.totalorder %s16, 0
    %p125 = por %p123, %p124
    %p126 = scmp.ne.s32.totalorder %s118, %s120
    %p127 = scmp.eq.s32.totalorder %s21, 1
    %p128 = por %p126, %p127
    %p129 = scmp.ne.s32.totalorder %s120, %s121
    %p130 = scmp.eq.s32.totalorder %s21, 0
    %p131 = por %p129, %p130
    %p132 = scmp.ne.s32.totalorder %s120, %s121
    %p133 = scmp.eq.s32.totalorder %s22, 1
    %p134 = por %p132, %p133
    %p136 = scmp.ne.s32.totalorder %s121, %s135
    %p137 = scmp.eq.s32.totalorder %s22, 0
    %p138 = por %p136, %p137
    %s140 = sadd.s32 %s139, 1
    %p143 = scmp.eq.s32.totalorder %s16, 1
    %p144 = scmp.ne.s32.totalorder %s139, %s141
    %p145 = scmp.eq.s32.totalorder %s16, 0
    %p146 = por %p144, %p145
    %p147 = scmp.ne.s32.totalorder %s139, %s141
    %p148 = scmp.eq.s32.totalorder %s21, 1
    %p149 = por %p147, %p148
    %p150 = scmp.ne.s32.totalorder %s141, %s142
    %p151 = scmp.eq.s32.totalorder %s21, 0
    %p152 = por %p150, %p151
    %p153 = scmp.ne.s32.totalorder %s141, %s142
    %p154 = scmp.eq.s32.totalorder %s22, 1
    %p155 = por %p153, %p154
    %p157 = scmp.ne.s32.totalorder %s142, %s156
    %p158 = scmp.eq.s32.totalorder %s22, 0
    %p159 = por %p157, %p158
    %s161 = sadd.s32 %s160, 1
    %p164 = scmp.eq.s32.totalorder %s16, 1
    %p165 = scmp.ne.s32.totalorder %s160, %s162
    %p166 = scmp.eq.s32.totalorder %s16, 0
    %p167 = por %p165, %p166
    %p168 = scmp.ne.s32.totalorder %s160, %s162
    %p169 = scmp.eq.s32.totalorder %s21, 1
    %p170 = por %p168, %p169
    %p171 = scmp.ne.s32.totalorder %s162, %s163
    %p172 = scmp.eq.s32.totalorder %s21, 0
    %p173 = por %p171, %p172
    %p174 = scmp.ne.s32.totalorder %s162, %s163
    %p175 = scmp.eq.s32.totalorder %s22, 1
    %p176 = por %p174, %p175
    %p178 = scmp.ne.s32.totalorder %s163, %s177
    %p179 = scmp.eq.s32.totalorder %s22, 0
    %p180 = por %p178, %p179
    %s182 = sadd.s32 %s181, 1
    %p185 = scmp.eq.s32.totalorder %s16, 1
    %p186 = scmp.ne.s32.totalorder %s181, %s183
    %p187 = scmp.eq.s32.totalorder %s16, 0
    %p188 = por %p186, %p187
    %p189 = scmp.ne.s32.totalorder %s181, %s183
    %p190 = scmp.eq.s32.totalorder %s21, 1
    %p191 = por %p189, %p190
    %p192 = scmp.ne.s32.totalorder %s183, %s184
    %p193 = scmp.eq.s32.totalorder %s21, 0
    %p194 = por %p192, %p193
    %p195 = scmp.ne.s32.totalorder %s183, %s184
    %p196 = scmp.eq.s32.totalorder %s22, 1
    %p197 = por %p195, %p196
    %p199 = scmp.ne.s32.totalorder %s184, %s198
    %p200 = scmp.eq.s32.totalorder %s22, 0
    %p201 = por %p199, %p200
    %s203 = sadd.s32 %s202, 1
    %p206 = scmp.eq.s32.totalorder %s16, 1
    %p207 = scmp.ne.s32.totalorder %s202, %s204
    %p208 = scmp.eq.s32.totalorder %s16, 0
    %p209 = por %p207, %p208
    %p210 = scmp.ne.s32.totalorder %s202, %s204
    %p211 = scmp.eq.s32.totalorder %s21, 1
    %p212 = por %p210, %p211
    %p213 = scmp.ne.s32.totalorder %s204, %s205
    %p214 = scmp.eq.s32.totalorder %s21, 0
    %p215 = por %p213, %p214
    %p216 = scmp.ne.s32.totalorder %s204, %s205
    %p217 = scmp.eq.s32.totalorder %s22, 1
    %p218 = por %p216, %p217
    %p220 = scmp.ne.s32.totalorder %s205, %s219
    %p221 = scmp.eq.s32.totalorder %s22, 0
    %p222 = por %p220, %p221
    %s224 = sadd.s32 %s223, 1
    %p227 = scmp.eq.s32.totalorder %s16, 1
    %p228 = scmp.ne.s32.totalorder %s223, %s225
    %p229 = scmp.eq.s32.totalorder %s16, 0
    %p230 = por %p228, %p229
    %p231 = scmp.ne.s32.totalorder %s223, %s225
    %p232 = scmp.eq.s32.totalorder %s21, 1
    %p233 = por %p231, %p232
    %p234 = scmp.ne.s32.totalorder %s225, %s226
    %p235 = scmp.eq.s32.totalorder %s21, 0
    %p236 = por %p234, %p235
    %p237 = scmp.ne.s32.totalorder %s225, %s226
    %p238 = scmp.eq.s32.totalorder %s22, 1
    %p239 = por %p237, %p238
    %p241 = scmp.ne.s32.totalorder %s226, %s240
    %p242 = scmp.eq.s32.totalorder %s22, 0
    %p243 = por %p241, %p242
    %s244 = ssub.s32 %s16, %s23
    %p245 = scmp.eq.s32.totalorder %s244, 0
    %s247 = sadd.s32 %s246, 1
    %s248 = scalar_select %p245, %s246, %s247
    %p251 = pneg %p245
    %p252 = scmp.eq.s32.totalorder %s16, 1
    %p253 = por %p251, %p252
    %p254 = scmp.ne.s32.totalorder %s246, %s249
    %p255 = scmp.eq.s32.totalorder %s16, 0
    %p256 = por %p254, %p255
    %p257 = scmp.ne.s32.totalorder %s246, %s249
    %p258 = scmp.eq.s32.totalorder %s21, 1
    %p259 = por %p257, %p258
    %p260 = scmp.ne.s32.totalorder %s249, %s250
    %p261 = scmp.eq.s32.totalorder %s21, 0
    %p262 = por %p260, %p261
    %p263 = scmp.ne.s32.totalorder %s249, %s250
    %p264 = scmp.eq.s32.totalorder %s22, 1
    %p265 = por %p263, %p264
    %p267 = scmp.ne.s32.totalorder %s250, %s266
    %p268 = scmp.eq.s32.totalorder %s22, 0
    %p269 = por %p267, %p268
    %p270 = scmp.le.s32.totalorder 1, %s16
    %p271 = scmp.lt.s32.totalorder %s16, 3
    %p272 = pnand %p270, %p271
    %p273 = pneg %p272
    // Predicated region
    $region9: #{erm_forward.1} parent=5 // pred_check
      _
    $region10: #{erm_forward.1} parent=5 // pred_check_branch
      %275 = sbr.rel (%p272) target = $region12
    $region11: #{erm_forward.1} parent=5 // pred_region
      %s276 = ssub.s32 %s16, 1
      // Predicated region
      $region13: #{erm_forward.1} parent=11 // pred_check
        %p277 = pneg %p89
      $region14: #{erm_forward.1} parent=11 // pred_check_branch
        %279 = sbr.rel (%p277) target = $region16
      $region15: #{erm_forward.1} parent=11 // pred_region
        _
      $region16: #{erm_forward.1} parent=11 // pred_fallthru
        _
      // Predicated region
      $region17: #{erm_forward.1} parent=11 // pred_check
        %p280 = pneg %p110
      $region18: #{erm_forward.1} parent=11 // pred_check_branch
        %282 = sbr.rel (%p280) target = $region20
      $region19: #{erm_forward.1} parent=11 // pred_region
        _
      $region20: #{erm_forward.1} parent=11 // pred_fallthru
        _
      // Predicated region
      $region21: #{erm_forward.1} parent=11 // pred_check
        %p283 = pneg %p131
      $region22: #{erm_forward.1} parent=11 // pred_check_branch
        %285 = sbr.rel (%p283) target = $region24
      $region23: #{erm_forward.1} parent=11 // pred_region
        _
      $region24: #{erm_forward.1} parent=11 // pred_fallthru
        _
      // Predicated region
      $region25: #{erm_forward.1} parent=11 // pred_check
        %p286 = pneg %p152
      $region26: #{erm_forward.1} parent=11 // pred_check_branch
        %288 = sbr.rel (%p286) target = $region28
      $region27: #{erm_forward.1} parent=11 // pred_region
        _
      $region28: #{erm_forward.1} parent=11 // pred_fallthru
        _
      // Predicated region
      $region29: #{erm_forward.1} parent=11 // pred_check
        %p289 = pneg %p173
      $region30: #{erm_forward.1} parent=11 // pred_check_branch
        %291 = sbr.rel (%p289) target = $region32
      $region31: #{erm_forward.1} parent=11 // pred_region
        _
      $region32: #{erm_forward.1} parent=11 // pred_fallthru
        _
      // Predicated region
      $region33: #{erm_forward.1} parent=11 // pred_check
        %p292 = pneg %p194
      $region34: #{erm_forward.1} parent=11 // pred_check_branch
        %294 = sbr.rel (%p292) target = $region36
      $region35: #{erm_forward.1} parent=11 // pred_region
        _
      $region36: #{erm_forward.1} parent=11 // pred_fallthru
        _
      // Predicated region
      $region37: #{erm_forward.1} parent=11 // pred_check
        %p295 = pneg %p215
      $region38: #{erm_forward.1} parent=11 // pred_check_branch
        %297 = sbr.rel (%p295) target = $region40
      $region39: #{erm_forward.1} parent=11 // pred_region
        _
      $region40: #{erm_forward.1} parent=11 // pred_fallthru
        _
      // Predicated region
      $region41: #{erm_forward.1} parent=11 // pred_check
        %p298 = pneg %p236
      $region42: #{erm_forward.1} parent=11 // pred_check_branch
        %300 = sbr.rel (%p298) target = $region44
      $region43: #{erm_forward.1} parent=11 // pred_region
        _
      $region44: #{erm_forward.1} parent=11 // pred_fallthru
        _
    $region12: #{erm_forward.1} parent=5 // pred_fallthru
      _
    %p301 = scmp.lt.s32.totalorder %s16, 2
    // Predicated region
    $region45: #{erm_forward.1} parent=5 // pred_check
      %p302 = pneg %p301
    $region46: #{erm_forward.1} parent=5 // pred_check_branch
      %304 = sbr.rel (%p302) target = $region48
    $region47: #{erm_forward.1} parent=5 // pred_region
      // Predicated region
      $region49: #{erm_forward.1} parent=47 // pred_check
        %p305 = pneg %p36
      $region50: #{erm_forward.1} parent=47 // pred_check_branch
        %307 = sbr.rel (%p305) target = $region52
      $region51: #{erm_forward.1} parent=47 // pred_region
        %p308 = scmp.lt.s32.totalorder %s16, 1
        %s309 = scalar_select %p308, %s16, 1
        %s310 = smul.addr %s309, 32
        %s311 = smul.addr %s310, 8
        %s312 = scalar_lea.vmem %s0, %s311
      $region52: #{erm_forward.1} parent=47 // pred_fallthru
        _
      // Predicated region
      $region53: #{erm_forward.1} parent=47 // pred_check
        %p313 = pneg %p62
      $region54: #{erm_forward.1} parent=47 // pred_check_branch
        %315 = sbr.rel (%p313) target = $region56
      $region55: #{erm_forward.1} parent=47 // pred_region
        %p316 = scmp.lt.s32.totalorder %s16, 1
        %s317 = scalar_select %p316, %s16, 1
        %s318 = smul.addr %s317, 32
        %s319 = smul.addr %s318, 8
        %s320 = scalar_lea.vmem %s1, %s319
      $region56: #{erm_forward.1} parent=47 // pred_fallthru
        _
    $region48: #{erm_forward.1} parent=5 // pred_fallthru
      _
    %p321 = scmp.le.s32.totalorder 1, %s16
    %p322 = scmp.lt.s32.totalorder %s16, 3
    %p323 = pnand %p321, %p322
    %p324 = pneg %p323
    // Predicated region
    $region57: #{erm_forward.1} parent=5 // pred_check
      _
    $region58: #{erm_forward.1} parent=5 // pred_check_branch
      %326 = sbr.rel (%p323) target = $region60
    $region59: #{erm_forward.1} parent=5 // pred_region
      %s327 = ssub.s32 %s16, 1
      %p328 = scmp.lt.s32.totalorder %s21, 1
      %s329 = scalar_select %p328, %s21, 1
      %s330 = smul.addr %s329, 32
      %s331 = smul.addr %s330, 8
      %s332 = scalar_lea.vmem %s0, %s331
      %p333 = pneg %p42
      %p334 = pneg %p39
      %p335 = scmp.lt.s32.totalorder %s21, 1
      %s336 = scalar_select %p335, %s21, 1
      %s337 = smul.addr %s336, 32
      %s338 = smul.addr %s337, 8
      %s339 = scalar_lea.vmem %s1, %s338
      %p340 = pneg %p68
      %p341 = pneg %p65
      %p342 = pneg %p89
      %p343 = pneg %p86
      %p344 = pneg %p110
      %p345 = pneg %p107
      %p346 = pneg %p131
      %p347 = pneg %p128
      %p348 = pneg %p152
      %p349 = pneg %p149
      %p350 = pneg %p173
      %p351 = pneg %p170
      %p352 = pneg %p194
      %p353 = pneg %p191
      %p354 = pneg %p215
      %p355 = pneg %p212
      %p356 = pneg %p236
      %p357 = pneg %p233
      %p358 = pneg %p262
      %p359 = pneg %p259
      %p360 = scmp.lt.s32.totalorder %s21, 1
      %s361 = scalar_select %p360, %s21, 1
      %s362 = smul.addr %s361, 32
      %s363 = smul.addr %s362, 8
      %s364 = scalar_lea.vmem %s10, %s363
      %p365 = scmp.lt.s32.totalorder %s21, 1
      %s366 = scalar_select %p365, %s21, 1
      %s367 = smul.addr %s366, 32
      %s368 = smul.addr %s367, 8
      %s369 = scalar_lea.vmem %s0, %s368
      %p370 = scmp.lt.s32.totalorder %s21, 1
      %s371 = scalar_select %p370, %s21, 1
      %s372 = smul.addr %s371, 32
      %s373 = smul.addr %s372, 8
      %s374 = scalar_lea.vmem %s1, %s373
      %p375 = scmp.lt.s32.totalorder %s21, 1
      %s376 = scalar_select %p375, %s21, 1
      %s377 = smul.addr %s376, 32
      %s378 = smul.addr %s377, 8
      %s379 = scalar_lea.vmem %s10, %s378
      %v381 = vld [vmem:[%s369] sm:$0xff]
      %v382 = vld [vmem:[%s369 + $0x8] sm:$0xff]
      %v383 = vld [vmem:[%s369 + $0x10] sm:$0xff]
      %v384 = vld [vmem:[%s369 + $0x18] sm:$0xff]
      %v385 = vld [vmem:[%s369 + $0x20] sm:$0xff]
      %v386 = vld [vmem:[%s369 + $0x28] sm:$0xff]
      %v387 = vld [vmem:[%s369 + $0x30] sm:$0xff]
      %v388 = vld [vmem:[%s369 + $0x38] sm:$0xff]
      %v389 = vld [vmem:[%s369 + $0x40] sm:$0xff]
      %v390 = vld [vmem:[%s369 + $0x48] sm:$0xff]
      %v391 = vld [vmem:[%s369 + $0x50] sm:$0xff]
      %v392 = vld [vmem:[%s369 + $0x58] sm:$0xff]
      %v393 = vld [vmem:[%s369 + $0x60] sm:$0xff]
      %v394 = vld [vmem:[%s369 + $0x68] sm:$0xff]
      %v395 = vld [vmem:[%s369 + $0x70] sm:$0xff]
      %v396 = vld [vmem:[%s369 + $0x78] sm:$0xff]
      %v397 = vld [vmem:[%s369 + $0x80] sm:$0xff]
      %v398 = vld [vmem:[%s369 + $0x88] sm:$0xff]
      %v399 = vld [vmem:[%s369 + $0x90] sm:$0xff]
      %v400 = vld [vmem:[%s369 + $0x98] sm:$0xff]
      %v401 = vld [vmem:[%s369 + $0xa0] sm:$0xff]
      %v402 = vld [vmem:[%s369 + $0xa8] sm:$0xff]
      %v403 = vld [vmem:[%s369 + $0xb0] sm:$0xff]
      %v404 = vld [vmem:[%s369 + $0xb8] sm:$0xff]
      %v405 = vld [vmem:[%s369 + $0xc0] sm:$0xff]
      %v406 = vld [vmem:[%s369 + $0xc8] sm:$0xff]
      %v407 = vld [vmem:[%s369 + $0xd0] sm:$0xff]
      %v408 = vld [vmem:[%s369 + $0xd8] sm:$0xff]
      %v409 = vld [vmem:[%s369 + $0xe0] sm:$0xff]
      %v410 = vld [vmem:[%s369 + $0xe8] sm:$0xff]
      %v411 = vld [vmem:[%s369 + $0xf0] sm:$0xff]
      %v412 = vld [vmem:[%s369 + $0xf8] sm:$0xff]
      %v413 = vld [vmem:[%s374] sm:$0xff]
      %v414 = vld [vmem:[%s374 + $0x8] sm:$0xff]
      %v415 = vld [vmem:[%s374 + $0x10] sm:$0xff]
      %v416 = vld [vmem:[%s374 + $0x18] sm:$0xff]
      %v417 = vld [vmem:[%s374 + $0x20] sm:$0xff]
      %v418 = vld [vmem:[%s374 + $0x28] sm:$0xff]
      %v419 = vld [vmem:[%s374 + $0x30] sm:$0xff]
      %v420 = vld [vmem:[%s374 + $0x38] sm:$0xff]
      %v421 = vld [vmem:[%s374 + $0x40] sm:$0xff]
      %v422 = vld [vmem:[%s374 + $0x48] sm:$0xff]
      %v423 = vld [vmem:[%s374 + $0x50] sm:$0xff]
      %v424 = vld [vmem:[%s374 + $0x58] sm:$0xff]
      %v425 = vld [vmem:[%s374 + $0x60] sm:$0xff]
      %v426 = vld [vmem:[%s374 + $0x68] sm:$0xff]
      %v427 = vld [vmem:[%s374 + $0x70] sm:$0xff]
      %v428 = vld [vmem:[%s374 + $0x78] sm:$0xff]
      %v429 = vld [vmem:[%s374 + $0x80] sm:$0xff]
      %v430 = vld [vmem:[%s374 + $0x88] sm:$0xff]
      %v431 = vld [vmem:[%s374 + $0x90] sm:$0xff]
      %v432 = vld [vmem:[%s374 + $0x98] sm:$0xff]
      %v433 = vld [vmem:[%s374 + $0xa0] sm:$0xff]
      %v434 = vld [vmem:[%s374 + $0xa8] sm:$0xff]
      %v435 = vld [vmem:[%s374 + $0xb0] sm:$0xff]
      %v436 = vld [vmem:[%s374 + $0xb8] sm:$0xff]
      %v437 = vld [vmem:[%s374 + $0xc0] sm:$0xff]
      %v438 = vld [vmem:[%s374 + $0xc8] sm:$0xff]
      %v439 = vld [vmem:[%s374 + $0xd0] sm:$0xff]
      %v440 = vld [vmem:[%s374 + $0xd8] sm:$0xff]
      %v441 = vld [vmem:[%s374 + $0xe0] sm:$0xff]
      %v442 = vld [vmem:[%s374 + $0xe8] sm:$0xff]
      %v443 = vld [vmem:[%s374 + $0xf0] sm:$0xff]
      %v444 = vld [vmem:[%s374 + $0xf8] sm:$0xff]
      %v445 = vxor.u32 %v381, 2147483648
      %v446 = vxor.u32 %v382, 2147483648
      %v447 = vxor.u32 %v383, 2147483648
      %v448 = vxor.u32 %v384, 2147483648
      %v449 = vxor.u32 %v385, 2147483648
      %v450 = vxor.u32 %v386, 2147483648
      %v451 = vxor.u32 %v387, 2147483648
      %v452 = vxor.u32 %v388, 2147483648
      %v453 = vxor.u32 %v389, 2147483648
      %v454 = vxor.u32 %v390, 2147483648
      %v455 = vxor.u32 %v391, 2147483648
      %v456 = vxor.u32 %v392, 2147483648
      %v457 = vxor.u32 %v393, 2147483648
      %v458 = vxor.u32 %v394, 2147483648
      %v459 = vxor.u32 %v395, 2147483648
      %v460 = vxor.u32 %v396, 2147483648
      %v461 = vxor.u32 %v397, 2147483648
      %v462 = vxor.u32 %v398, 2147483648
      %v463 = vxor.u32 %v399, 2147483648
      %v464 = vxor.u32 %v400, 2147483648
      %v465 = vxor.u32 %v401, 2147483648
      %v466 = vxor.u32 %v402, 2147483648
      %v467 = vxor.u32 %v403, 2147483648
      %v468 = vxor.u32 %v404, 2147483648
      %v469 = vxor.u32 %v405, 2147483648
      %v470 = vxor.u32 %v406, 2147483648
      %v471 = vxor.u32 %v407, 2147483648
      %v472 = vxor.u32 %v408, 2147483648
      %v473 = vxor.u32 %v409, 2147483648
      %v474 = vxor.u32 %v410, 2147483648
      %v475 = vxor.u32 %v411, 2147483648
      %v476 = vxor.u32 %v412, 2147483648
      %v477 = vmul.f32 %v445, 1.442695
      %v478 = vpow.pop %v477
      %v479 = vmul.f32 %v446, 1.442695
      %v480 = vpow.pop %v479
      %v481 = vmul.f32 %v447, 1.442695
      %v482 = vpow.pop %v481
      %v483 = vmul.f32 %v448, 1.442695
      %v484 = vpow.pop %v483
      %v485 = vmul.f32 %v449, 1.442695
      %v486 = vpow.pop %v485
      %v487 = vmul.f32 %v450, 1.442695
      %v488 = vpow.pop %v487
      %v489 = vmul.f32 %v451, 1.442695
      %v490 = vpow.pop %v489
      %v491 = vmul.f32 %v452, 1.442695
      %v492 = vpow.pop %v491
      %v493 = vmul.f32 %v453, 1.442695
      %v494 = vpow.pop %v493
      %v495 = vmul.f32 %v454, 1.442695
      %v496 = vpow.pop %v495
      %v497 = vmul.f32 %v455, 1.442695
      %v498 = vpow.pop %v497
      %v499 = vmul.f32 %v456, 1.442695
      %v500 = vpow.pop %v499
      %v501 = vmul.f32 %v457, 1.442695
      %v502 = vpow.pop %v501
      %v503 = vmul.f32 %v458, 1.442695
      %v504 = vpow.pop %v503
      %v505 = vmul.f32 %v459, 1.442695
      %v506 = vpow.pop %v505
      %v507 = vmul.f32 %v460, 1.442695
      %v508 = vpow.pop %v507
      %v509 = vmul.f32 %v461, 1.442695
      %v510 = vpow.pop %v509
      %v511 = vmul.f32 %v462, 1.442695
      %v512 = vpow.pop %v511
      %v513 = vmul.f32 %v463, 1.442695
      %v514 = vpow.pop %v513
      %v515 = vmul.f32 %v464, 1.442695
      %v516 = vpow.pop %v515
      %v517 = vmul.f32 %v465, 1.442695
      %v518 = vpow.pop %v517
      %v519 = vmul.f32 %v466, 1.442695
      %v520 = vpow.pop %v519
      %v521 = vmul.f32 %v467, 1.442695
      %v522 = vpow.pop %v521
      %v523 = vmul.f32 %v468, 1.442695
      %v524 = vpow.pop %v523
      %v525 = vmul.f32 %v469, 1.442695
      %v526 = vpow.pop %v525
      %v527 = vmul.f32 %v470, 1.442695
      %v528 = vpow.pop %v527
      %v529 = vmul.f32 %v471, 1.442695
      %v530 = vpow.pop %v529
      %v531 = vmul.f32 %v472, 1.442695
      %v532 = vpow.pop %v531
      %v533 = vmul.f32 %v473, 1.442695
      %v534 = vpow.pop %v533
      %v535 = vmul.f32 %v474, 1.442695
      %v536 = vpow.pop %v535
      %v537 = vmul.f32 %v475, 1.442695
      %v538 = vpow.pop %v537
      %v539 = vmul.f32 %v476, 1.442695
      %v540 = vpow.pop %v539
      %v541 = vadd.f32 %v478, 1.0
      %v542 = vadd.f32 %v480, 1.0
      %v543 = vadd.f32 %v482, 1.0
      %v544 = vadd.f32 %v484, 1.0
      %v545 = vadd.f32 %v486, 1.0
      %v546 = vadd.f32 %v488, 1.0
      %v547 = vadd.f32 %v490, 1.0
      %v548 = vadd.f32 %v492, 1.0
      %v549 = vadd.f32 %v494, 1.0
      %v550 = vadd.f32 %v496, 1.0
      %v551 = vadd.f32 %v498, 1.0
      %v552 = vadd.f32 %v500, 1.0
      %v553 = vadd.f32 %v502, 1.0
      %v554 = vadd.f32 %v504, 1.0
      %v555 = vadd.f32 %v506, 1.0
      %v556 = vadd.f32 %v508, 1.0
      %v557 = vadd.f32 %v510, 1.0
      %v558 = vadd.f32 %v512, 1.0
      %v559 = vadd.f32 %v514, 1.0
      %v560 = vadd.f32 %v516, 1.0
      %v561 = vadd.f32 %v518, 1.0
      %v562 = vadd.f32 %v520, 1.0
      %v563 = vadd.f32 %v522, 1.0
      %v564 = vadd.f32 %v524, 1.0
      %v565 = vadd.f32 %v526, 1.0
      %v566 = vadd.f32 %v528, 1.0
      %v567 = vadd.f32 %v530, 1.0
      %v568 = vadd.f32 %v532, 1.0
      %v569 = vadd.f32 %v534, 1.0
      %v570 = vadd.f32 %v536, 1.0
      %v571 = vadd.f32 %v538, 1.0
      %v572 = vadd.f32 %v540, 1.0
      %v573 = vrcp.pop %v541
      %v574 = vmul.f32 1.0, %v573
      %v575 = vrcp.pop %v542
      %v576 = vmul.f32 1.0, %v575
      %v577 = vrcp.pop %v543
      %v578 = vmul.f32 1.0, %v577
      %v579 = vrcp.pop %v544
      %v580 = vmul.f32 1.0, %v579
      %v581 = vrcp.pop %v545
      %v582 = vmul.f32 1.0, %v581
      %v583 = vrcp.pop %v546
      %v584 = vmul.f32 1.0, %v583
      %v585 = vrcp.pop %v547
      %v586 = vmul.f32 1.0, %v585
      %v587 = vrcp.pop %v548
      %v588 = vmul.f32 1.0, %v587
      %v589 = vrcp.pop %v549
      %v590 = vmul.f32 1.0, %v589
      %v591 = vrcp.pop %v550
      %v592 = vmul.f32 1.0, %v591
      %v593 = vrcp.pop %v551
      %v594 = vmul.f32 1.0, %v593
      %v595 = vrcp.pop %v552
      %v596 = vmul.f32 1.0, %v595
      %v597 = vrcp.pop %v553
      %v598 = vmul.f32 1.0, %v597
      %v599 = vrcp.pop %v554
      %v600 = vmul.f32 1.0, %v599
      %v601 = vrcp.pop %v555
      %v602 = vmul.f32 1.0, %v601
      %v603 = vrcp.pop %v556
      %v604 = vmul.f32 1.0, %v603
      %v605 = vrcp.pop %v557
      %v606 = vmul.f32 1.0, %v605
      %v607 = vrcp.pop %v558
      %v608 = vmul.f32 1.0, %v607
      %v609 = vrcp.pop %v559
      %v610 = vmul.f32 1.0, %v609
      %v611 = vrcp.pop %v560
      %v612 = vmul.f32 1.0, %v611
      %v613 = vrcp.pop %v561
      %v614 = vmul.f32 1.0, %v613
      %v615 = vrcp.pop %v562
      %v616 = vmul.f32 1.0, %v615
      %v617 = vrcp.pop %v563
      %v618 = vmul.f32 1.0, %v617
      %v619 = vrcp.pop %v564
      %v620 = vmul.f32 1.0, %v619
      %v621 = vrcp.pop %v565
      %v622 = vmul.f32 1.0, %v621
      %v623 = vrcp.pop %v566
      %v624 = vmul.f32 1.0, %v623
      %v625 = vrcp.pop %v567
      %v626 = vmul.f32 1.0, %v625
      %v627 = vrcp.pop %v568
      %v628 = vmul.f32 1.0, %v627
      %v629 = vrcp.pop %v569
      %v630 = vmul.f32 1.0, %v629
      %v631 = vrcp.pop %v570
      %v632 = vmul.f32 1.0, %v631
      %v633 = vrcp.pop %v571
      %v634 = vmul.f32 1.0, %v633
      %v635 = vrcp.pop %v572
      %v636 = vmul.f32 1.0, %v635
      %v637 = vmul.f32 %v574, %v413
      %v638 = vmul.f32 %v576, %v414
      %v639 = vmul.f32 %v578, %v415
      %v640 = vmul.f32 %v580, %v416
      %v641 = vmul.f32 %v582, %v417
      %v642 = vmul.f32 %v584, %v418
      %v643 = vmul.f32 %v586, %v419
      %v644 = vmul.f32 %v588, %v420
      %v645 = vmul.f32 %v590, %v421
      %v646 = vmul.f32 %v592, %v422
      %v647 = vmul.f32 %v594, %v423
      %v648 = vmul.f32 %v596, %v424
      %v649 = vmul.f32 %v598, %v425
      %v650 = vmul.f32 %v600, %v426
      %v651 = vmul.f32 %v602, %v427
      %v652 = vmul.f32 %v604, %v428
      %v653 = vmul.f32 %v606, %v429
      %v654 = vmul.f32 %v608, %v430
      %v655 = vmul.f32 %v610, %v431
      %v656 = vmul.f32 %v612, %v432
      %v657 = vmul.f32 %v614, %v433
      %v658 = vmul.f32 %v616, %v434
      %v659 = vmul.f32 %v618, %v435
      %v660 = vmul.f32 %v620, %v436
      %v661 = vmul.f32 %v622, %v437
      %v662 = vmul.f32 %v624, %v438
      %v663 = vmul.f32 %v626, %v439
      %v664 = vmul.f32 %v628, %v440
      %v665 = vmul.f32 %v630, %v441
      %v666 = vmul.f32 %v632, %v442
      %v667 = vmul.f32 %v634, %v443
      %v668 = vmul.f32 %v636, %v444
      %v669 = vpack.c.bf16 %v638, %v637
      %v670 = vpack.c.bf16 %v640, %v639
      %v671 = vpack.c.bf16 %v642, %v641
      %v672 = vpack.c.bf16 %v644, %v643
      %v673 = vpack.c.bf16 %v646, %v645
      %v674 = vpack.c.bf16 %v648, %v647
      %v675 = vpack.c.bf16 %v650, %v649
      %v676 = vpack.c.bf16 %v652, %v651
      %v677 = vpack.c.bf16 %v654, %v653
      %v678 = vpack.c.bf16 %v656, %v655
      %v679 = vpack.c.bf16 %v658, %v657
      %v680 = vpack.c.bf16 %v660, %v659
      %v681 = vpack.c.bf16 %v662, %v661
      %v682 = vpack.c.bf16 %v664, %v663
      %v683 = vpack.c.bf16 %v666, %v665
      %v684 = vpack.c.bf16 %v668, %v667
      %v685 = vld [vmem:[%s2] sm:$0xf]
      %v686 = vld [vmem:[%s3] sm:$0x1]
      %v688 = vlaneseq
      %v689 = vshrl.u32 %v688, 7
      %v690 = vsub.s32 0, %v689
      %v691 = vrot.slane %v686, %v690
      %vm693 = vcmask 64512
      %v695 = vsel %vm693, %v669, 0
      %v698 = vsel %vm693, %v670, 0
      %v701 = vsel %vm693, %v671, 0
      %v704 = vsel %vm693, %v672, 0
      %v707 = vsel %vm693, %v673, 0
      %v710 = vsel %vm693, %v674, 0
      %v713 = vsel %vm693, %v675, 0
      %v716 = vsel %vm693, %v676, 0
      %v719 = vsel %vm693, %v677, 0
      %v722 = vsel %vm693, %v678, 0
      %v725 = vsel %vm693, %v679, 0
      %v728 = vsel %vm693, %v680, 0
      %v731 = vsel %vm693, %v681, 0
      %v734 = vsel %vm693, %v682, 0
      %v737 = vsel %vm693, %v683, 0
      %v740 = vsel %vm693, %v684, 0
      %vm742 = vcmask 1043456
      %v744 = vsel %vm742, %v685, 0
      %746 = vmatprep.subr.bf16.mxu0 0
      %747 = vmatpush1.bf16.msra.mxu0 0
      %748 = vmatprep.subr.bf16.mxu0 0
      %749 = vmatpush1.bf16.msra.mxu0 0
      %750 = vmatprep.subr.bf16.mxu0 0
      %751 = vmatpush1.bf16.msra.mxu0 0
      %752 = vmatprep.subr.bf16.mxu0 0
      %753 = vmatpush1.bf16.msra.mxu0 0
      %754 = vmatprep.subr.bf16.mxu0 0
      %755 = vmatpush1.bf16.msra.mxu0 0
      %756 = vmatprep.subr.bf16.mxu0 0
      %757 = vmatpush1.bf16.msra.mxu0 0
      %758 = vmatprep.subr.bf16.mxu0 0
      %759 = vmatpush1.bf16.msra.mxu0 0
      %760 = vmatprep.subr.bf16.mxu0 0
      %761 = vmatpush1.bf16.msra.mxu0 %v744
      %762 = vmatprep.subr.bf16.mxu0 0
      %763 = vmatpush2.bf16.msra.mxu0 0
      %764 = vmatprep.subr.bf16.mxu0 0
      %765 = vmatpush2.bf16.msra.mxu0 0
      %766 = vmatprep.subr.bf16.mxu0 0
      %767 = vmatpush2.bf16.msra.mxu0 0
      %768 = vmatprep.subr.bf16.mxu0 0
      %769 = vmatpush2.bf16.msra.mxu0 0
      %770 = vmatprep.subr.bf16.mxu0 0
      %771 = vmatpush2.bf16.msra.mxu0 0
      %772 = vmatprep.subr.bf16.mxu0 0
      %773 = vmatpush2.bf16.msra.mxu0 0
      %774 = vmatprep.subr.bf16.mxu0 0
      %775 = vmatpush2.bf16.msra.mxu0 0
      %776 = vmatprep.subr.bf16.mxu0 0
      %777 = vmatpush2.bf16.msra.mxu0 0
      %778 = vmatprep.mubr.bf16.mxu0 0
      %779 = vmatmul.mubr.bf16.gmra.mxu0 %v695
      %v780 = vpop.f32.mrf.mxu0
      %v781 = vadd.f32 %v691, %v780
      %v782 = vpop.f32.mrf.mxu0
      %v783 = vpop.f32.mrf.mxu0
      %v784 = vadd.f32 %v691, %v783
      %v785 = vpop.f32.mrf.mxu0
      %786 = vmatprep.mubr.bf16.mxu0 0
      %787 = vmatmul.mubr.bf16.gmra.mxu0 %v698
      %v788 = vpop.f32.mrf.mxu0
      %v789 = vadd.f32 %v691, %v788
      %v790 = vpop.f32.mrf.mxu0
      %v791 = vpop.f32.mrf.mxu0
      %v792 = vadd.f32 %v691, %v791
      %v793 = vpop.f32.mrf.mxu0
      %794 = vmatprep.mubr.bf16.mxu0 0
      %795 = vmatmul.mubr.bf16.gmra.mxu0 %v701
      %v796 = vpop.f32.mrf.mxu0
      %v797 = vadd.f32 %v691, %v796
      %v798 = vpop.f32.mrf.mxu0
      %v799 = vpop.f32.mrf.mxu0
      %v800 = vadd.f32 %v691, %v799
      %v801 = vpop.f32.mrf.mxu0
      %802 = vmatprep.mubr.bf16.mxu0 0
      %803 = vmatmul.mubr.bf16.gmra.mxu0 %v704
      %v804 = vpop.f32.mrf.mxu0
      %v805 = vadd.f32 %v691, %v804
      %v806 = vpop.f32.mrf.mxu0
      %v807 = vpop.f32.mrf.mxu0
      %v808 = vadd.f32 %v691, %v807
      %v809 = vpop.f32.mrf.mxu0
      %810 = vmatprep.mubr.bf16.mxu0 0
      %811 = vmatmul.mubr.bf16.gmra.mxu0 %v707
      %v812 = vpop.f32.mrf.mxu0
      %v813 = vadd.f32 %v691, %v812
      %v814 = vpop.f32.mrf.mxu0
      %v815 = vpop.f32.mrf.mxu0
      %v816 = vadd.f32 %v691, %v815
      %v817 = vpop.f32.mrf.mxu0
      %818 = vmatprep.mubr.bf16.mxu0 0
      %819 = vmatmul.mubr.bf16.gmra.mxu0 %v710
      %v820 = vpop.f32.mrf.mxu0
      %v821 = vadd.f32 %v691, %v820
      %v822 = vpop.f32.mrf.mxu0
      %v823 = vpop.f32.mrf.mxu0
      %v824 = vadd.f32 %v691, %v823
      %v825 = vpop.f32.mrf.mxu0
      %826 = vmatprep.mubr.bf16.mxu0 0
      %827 = vmatmul.mubr.bf16.gmra.mxu0 %v713
      %v828 = vpop.f32.mrf.mxu0
      %v829 = vadd.f32 %v691, %v828
      %v830 = vpop.f32.mrf.mxu0
      %v831 = vpop.f32.mrf.mxu0
      %v832 = vadd.f32 %v691, %v831
      %v833 = vpop.f32.mrf.mxu0
      %834 = vmatprep.mubr.bf16.mxu0 0
      %835 = vmatmul.mubr.bf16.gmra.mxu0 %v716
      %v836 = vpop.f32.mrf.mxu0
      %v837 = vadd.f32 %v691, %v836
      %v838 = vpop.f32.mrf.mxu0
      %v839 = vpop.f32.mrf.mxu0
      %v840 = vadd.f32 %v691, %v839
      %v841 = vpop.f32.mrf.mxu0
      %842 = vmatprep.mubr.bf16.mxu0 0
      %843 = vmatmul.mubr.bf16.gmra.mxu0 %v719
      %v844 = vpop.f32.mrf.mxu0
      %v845 = vadd.f32 %v691, %v844
      %v846 = vpop.f32.mrf.mxu0
      %v847 = vpop.f32.mrf.mxu0
      %v848 = vadd.f32 %v691, %v847
      %v849 = vpop.f32.mrf.mxu0
      %850 = vmatprep.mubr.bf16.mxu0 0
      %851 = vmatmul.mubr.bf16.gmra.mxu0 %v722
      %v852 = vpop.f32.mrf.mxu0
      %v853 = vadd.f32 %v691, %v852
      %v854 = vpop.f32.mrf.mxu0
      %v855 = vpop.f32.mrf.mxu0
      %v856 = vadd.f32 %v691, %v855
      %v857 = vpop.f32.mrf.mxu0
      %858 = vmatprep.mubr.bf16.mxu0 0
      %859 = vmatmul.mubr.bf16.gmra.mxu0 %v725
      %v860 = vpop.f32.mrf.mxu0
      %v861 = vadd.f32 %v691, %v860
      %v862 = vpop.f32.mrf.mxu0
      %v863 = vpop.f32.mrf.mxu0
      %v864 = vadd.f32 %v691, %v863
      %v865 = vpop.f32.mrf.mxu0
      %866 = vmatprep.mubr.bf16.mxu0 0
      %867 = vmatmul.mubr.bf16.gmra.mxu0 %v728
      %v868 = vpop.f32.mrf.mxu0
      %v869 = vadd.f32 %v691, %v868
      %v870 = vpop.f32.mrf.mxu0
      %v871 = vpop.f32.mrf.mxu0
      %v872 = vadd.f32 %v691, %v871
      %v873 = vpop.f32.mrf.mxu0
      %874 = vmatprep.mubr.bf16.mxu0 0
      %875 = vmatmul.mubr.bf16.gmra.mxu0 %v731
      %v876 = vpop.f32.mrf.mxu0
      %v877 = vadd.f32 %v691, %v876
      %v878 = vpop.f32.mrf.mxu0
      %v879 = vpop.f32.mrf.mxu0
      %v880 = vadd.f32 %v691, %v879
      %v881 = vpop.f32.mrf.mxu0
      %882 = vmatprep.mubr.bf16.mxu0 0
      %883 = vmatmul.mubr.bf16.gmra.mxu0 %v734
      %v884 = vpop.f32.mrf.mxu0
      %v885 = vadd.f32 %v691, %v884
      %v886 = vpop.f32.mrf.mxu0
      %v887 = vpop.f32.mrf.mxu0
      %v888 = vadd.f32 %v691, %v887
      %v889 = vpop.f32.mrf.mxu0
      %890 = vmatprep.mubr.bf16.mxu0 0
      %891 = vmatmul.mubr.bf16.gmra.mxu0 %v737
      %v892 = vpop.f32.mrf.mxu0
      %v893 = vadd.f32 %v691, %v892
      %v894 = vpop.f32.mrf.mxu0
      %v895 = vpop.f32.mrf.mxu0
      %v896 = vadd.f32 %v691, %v895
      %v897 = vpop.f32.mrf.mxu0
      %898 = vmatprep.mubr.bf16.mxu0 0
      %899 = vmatmul.mubr.bf16.gmra.mxu0 %v740
      %v900 = vpop.f32.mrf.mxu0
      %v901 = vadd.f32 %v691, %v900
      %v902 = vpop.f32.mrf.mxu0
      %v903 = vpop.f32.mrf.mxu0
      %v904 = vadd.f32 %v691, %v903
      %v905 = vpop.f32.mrf.mxu0
      %906 = vdwg.mxu0
      %vm907 = vcmask 130048
      %908 = vst.msk [vmem:[#allocation2] sm:$0xff] %vm907, 0.0
      %909 = vst.msk [vmem:[#allocation2 + $0x8] sm:$0xff] %vm907, 0.0
      %vm910 = vcmask 123904
      %911 = vst.msk [vmem:[#allocation2 + $0x10] sm:$0x3] %vm910, 0.0
      %912 = vst.msk [vmem:[#allocation2 + $0x18] sm:$0xff] %vm907, 0.0
      %913 = vst.msk [vmem:[#allocation2 + $0x20] sm:$0xff] %vm907, 0.0
      %914 = vst.msk [vmem:[#allocation2 + $0x28] sm:$0x3] %vm910, 0.0
      %915 = vst.msk [vmem:[#allocation2 + $0x30] sm:$0xff] %vm907, 0.0
      %916 = vst.msk [vmem:[#allocation2 + $0x38] sm:$0xff] %vm907, 0.0
      %917 = vst.msk [vmem:[#allocation2 + $0x40] sm:$0x3] %vm910, 0.0
      %918 = vst.msk [vmem:[#allocation2 + $0x48] sm:$0xff] %vm907, 0.0
      %919 = vst.msk [vmem:[#allocation2 + $0x50] sm:$0xff] %vm907, 0.0
      %920 = vst.msk [vmem:[#allocation2 + $0x58] sm:$0x3] %vm910, 0.0
      %921 = vst.msk [vmem:[#allocation2 + $0x60] sm:$0xff] %vm907, 0.0
      %922 = vst.msk [vmem:[#allocation2 + $0x68] sm:$0xff] %vm907, 0.0
      %923 = vst.msk [vmem:[#allocation2 + $0x70] sm:$0x3] %vm910, 0.0
      %924 = vst.msk [vmem:[#allocation2 + $0x78] sm:$0xff] %vm907, 0.0
      %925 = vst.msk [vmem:[#allocation2 + $0x80] sm:$0xff] %vm907, 0.0
      %926 = vst.msk [vmem:[#allocation2 + $0x88] sm:$0x3] %vm910, 0.0
      %927 = vst.msk [vmem:[#allocation2 + $0x90] sm:$0xff] %vm907, 0.0
      %928 = vst.msk [vmem:[#allocation2 + $0x98] sm:$0xff] %vm907, 0.0
      %929 = vst.msk [vmem:[#allocation2 + $0xa0] sm:$0x3] %vm910, 0.0
      %930 = vst.msk [vmem:[#allocation2 + $0xa8] sm:$0xff] %vm907, 0.0
      %931 = vst.msk [vmem:[#allocation2 + $0xb0] sm:$0xff] %vm907, 0.0
      %932 = vst.msk [vmem:[#allocation2 + $0xb8] sm:$0x3] %vm910, 0.0
      %933 = vst.msk [vmem:[#allocation2 + $0xc0] sm:$0xff] %vm907, 0.0
      %934 = vst.msk [vmem:[#allocation2 + $0xc8] sm:$0xff] %vm907, 0.0
      %935 = vst.msk [vmem:[#allocation2 + $0xd0] sm:$0x3] %vm910, 0.0
      %936 = vst.msk [vmem:[#allocation2 + $0xd8] sm:$0xff] %vm907, 0.0
      %937 = vst.msk [vmem:[#allocation2 + $0xe0] sm:$0xff] %vm907, 0.0
      %938 = vst.msk [vmem:[#allocation2 + $0xe8] sm:$0x3] %vm910, 0.0
      %939 = vst.msk [vmem:[#allocation2 + $0xf0] sm:$0xff] %vm907, 0.0
      %940 = vst.msk [vmem:[#allocation2 + $0xf8] sm:$0xff] %vm907, 0.0
      %941 = vst.msk [vmem:[#allocation2 + $0x100] sm:$0x3] %vm910, 0.0
      %942 = vst.msk [vmem:[#allocation2 + $0x108] sm:$0xff] %vm907, 0.0
      %943 = vst.msk [vmem:[#allocation2 + $0x110] sm:$0xff] %vm907, 0.0
      %944 = vst.msk [vmem:[#allocation2 + $0x118] sm:$0x3] %vm910, 0.0
      %945 = vst.msk [vmem:[#allocation2 + $0x120] sm:$0xff] %vm907, 0.0
      %946 = vst.msk [vmem:[#allocation2 + $0x128] sm:$0xff] %vm907, 0.0
      %947 = vst.msk [vmem:[#allocation2 + $0x130] sm:$0x3] %vm910, 0.0
      %948 = vst.msk [vmem:[#allocation2 + $0x138] sm:$0xff] %vm907, 0.0
      %949 = vst.msk [vmem:[#allocation2 + $0x140] sm:$0xff] %vm907, 0.0
      %950 = vst.msk [vmem:[#allocation2 + $0x148] sm:$0x3] %vm910, 0.0
      %951 = vst.msk [vmem:[#allocation2 + $0x150] sm:$0xff] %vm907, 0.0
      %952 = vst.msk [vmem:[#allocation2 + $0x158] sm:$0xff] %vm907, 0.0
      %953 = vst.msk [vmem:[#allocation2 + $0x160] sm:$0x3] %vm910, 0.0
      %954 = vst.msk [vmem:[#allocation2 + $0x168] sm:$0xff] %vm907, 0.0
      %955 = vst.msk [vmem:[#allocation2 + $0x170] sm:$0xff] %vm907, 0.0
      %956 = vst.msk [vmem:[#allocation2 + $0x178] sm:$0x3] %vm910, 0.0
      %957 = vst.msk [vmem:[#allocation2 + $0x180] sm:$0xff] %vm907, 0.0
      %958 = vst.msk [vmem:[#allocation2 + $0x188] sm:$0xff] %vm907, 0.0
      %959 = vst.msk [vmem:[#allocation2 + $0x190] sm:$0x3] %vm910, 0.0
      %960 = vst.msk [vmem:[#allocation2 + $0x198] sm:$0xff] %vm907, 0.0
      %961 = vst.msk [vmem:[#allocation2 + $0x1a0] sm:$0xff] %vm907, 0.0
      %962 = vst.msk [vmem:[#allocation2 + $0x1a8] sm:$0x3] %vm910, 0.0
      %s963 = scalar_lea.vmem [#allocation2], 24
      %964 = vst.msk [vmem:[%s963 + $0x1] sm:$0xff] %vm907, %v781
      %965 = vst.msk [vmem:[%s963 + $0x9] sm:$0xff] %vm907, %v784
      %966 = vst.msk [vmem:[%s963 + $0x19] sm:$0xff] %vm907, %v789
      %967 = vst.msk [vmem:[%s963 + $0x21] sm:$0xff] %vm907, %v792
      %968 = vst.msk [vmem:[%s963 + $0x31] sm:$0xff] %vm907, %v797
      %969 = vst.msk [vmem:[%s963 + $0x39] sm:$0xff] %vm907, %v800
      %970 = vst.msk [vmem:[%s963 + $0x49] sm:$0xff] %vm907, %v805
      %971 = vst.msk [vmem:[%s963 + $0x51] sm:$0xff] %vm907, %v808
      %972 = vst.msk [vmem:[%s963 + $0x61] sm:$0xff] %vm907, %v813
      %973 = vst.msk [vmem:[%s963 + $0x69] sm:$0xff] %vm907, %v816
      %974 = vst.msk [vmem:[%s963 + $0x79] sm:$0xff] %vm907, %v821
      %975 = vst.msk [vmem:[%s963 + $0x81] sm:$0xff] %vm907, %v824
      %976 = vst.msk [vmem:[%s963 + $0x91] sm:$0xff] %vm907, %v829
      %977 = vst.msk [vmem:[%s963 + $0x99] sm:$0xff] %vm907, %v832
      %978 = vst.msk [vmem:[%s963 + $0xa9] sm:$0xff] %vm907, %v837
      %979 = vst.msk [vmem:[%s963 + $0xb1] sm:$0xff] %vm907, %v840
      %980 = vst.msk [vmem:[%s963 + $0xc1] sm:$0xff] %vm907, %v845
      %981 = vst.msk [vmem:[%s963 + $0xc9] sm:$0xff] %vm907, %v848
      %982 = vst.msk [vmem:[%s963 + $0xd9] sm:$0xff] %vm907, %v853
      %983 = vst.msk [vmem:[%s963 + $0xe1] sm:$0xff] %vm907, %v856
      %984 = vst.msk [vmem:[%s963 + $0xf1] sm:$0xff] %vm907, %v861
      %985 = vst.msk [vmem:[%s963 + $0xf9] sm:$0xff] %vm907, %v864
      %986 = vst.msk [vmem:[%s963 + $0x109] sm:$0xff] %vm907, %v869
      %987 = vst.msk [vmem:[%s963 + $0x111] sm:$0xff] %vm907, %v872
      %988 = vst.msk [vmem:[%s963 + $0x121] sm:$0xff] %vm907, %v877
      %989 = vst.msk [vmem:[%s963 + $0x129] sm:$0xff] %vm907, %v880
      %990 = vst.msk [vmem:[%s963 + $0x139] sm:$0xff] %vm907, %v885
      %991 = vst.msk [vmem:[%s963 + $0x141] sm:$0xff] %vm907, %v888
      %992 = vst.msk [vmem:[%s963 + $0x151] sm:$0xff] %vm907, %v893
      %993 = vst.msk [vmem:[%s963 + $0x159] sm:$0xff] %vm907, %v896
      %994 = vst.msk [vmem:[%s963 + $0x169] sm:$0xff] %vm907, %v901
      %995 = vst.msk [vmem:[%s963 + $0x171] sm:$0xff] %vm907, %v904
      %v996 = vld [vmem:[#allocation2] sm:$0xff]
      %v997 = vld [vmem:[#allocation2 + $0x8] sm:$0xff]
      %v998 = vld [vmem:[#allocation2 + $0x18] sm:$0xff]
      %v999 = vld [vmem:[#allocation2 + $0x20] sm:$0xff]
      %v1000 = vld [vmem:[#allocation2 + $0x30] sm:$0xff]
      %v1001 = vld [vmem:[#allocation2 + $0x38] sm:$0xff]
      %v1002 = vld [vmem:[#allocation2 + $0x48] sm:$0xff]
      %v1003 = vld [vmem:[#allocation2 + $0x50] sm:$0xff]
      %v1004 = vld [vmem:[#allocation2 + $0x60] sm:$0xff]
      %v1005 = vld [vmem:[#allocation2 + $0x68] sm:$0xff]
      %v1006 = vld [vmem:[#allocation2 + $0x78] sm:$0xff]
      %v1007 = vld [vmem:[#allocation2 + $0x80] sm:$0xff]
      %v1008 = vld [vmem:[#allocation2 + $0x90] sm:$0xff]
      %v1009 = vld [vmem:[#allocation2 + $0x98] sm:$0xff]
      %v1010 = vld [vmem:[#allocation2 + $0xa8] sm:$0xff]
      %v1011 = vld [vmem:[#allocation2 + $0xb0] sm:$0xff]
      %v1012 = vld [vmem:[#allocation2 + $0xc0] sm:$0xff]
      %v1013 = vld [vmem:[#allocation2 + $0xc8] sm:$0xff]
      %v1014 = vld [vmem:[#allocation2 + $0xd8] sm:$0xff]
      %v1015 = vld [vmem:[#allocation2 + $0xe0] sm:$0xff]
      %v1016 = vld [vmem:[#allocation2 + $0xf0] sm:$0xff]
      %v1017 = vld [vmem:[#allocation2 + $0xf8] sm:$0xff]
      %v1018 = vld [vmem:[#allocation2 + $0x108] sm:$0xff]
      %v1019 = vld [vmem:[#allocation2 + $0x110] sm:$0xff]
      %v1020 = vld [vmem:[#allocation2 + $0x120] sm:$0xff]
      %v1021 = vld [vmem:[#allocation2 + $0x128] sm:$0xff]
      %v1022 = vld [vmem:[#allocation2 + $0x138] sm:$0xff]
      %v1023 = vld [vmem:[#allocation2 + $0x140] sm:$0xff]
      %v1024 = vld [vmem:[#allocation2 + $0x150] sm:$0xff]
      %v1025 = vld [vmem:[#allocation2 + $0x158] sm:$0xff]
      %v1026 = vld [vmem:[#allocation2 + $0x168] sm:$0xff]
      %v1027 = vld [vmem:[#allocation2 + $0x170] sm:$0xff]
      %v1028 = vld [vmem:[#allocation2 + $0x1] sm:$0xff]
      %v1029 = vld [vmem:[#allocation2 + $0x9] sm:$0xff]
      %v1030 = vld [vmem:[#allocation2 + $0x19] sm:$0xff]
      %v1031 = vld [vmem:[#allocation2 + $0x21] sm:$0xff]
      %v1032 = vld [vmem:[#allocation2 + $0x31] sm:$0xff]
      %v1033 = vld [vmem:[#allocation2 + $0x39] sm:$0xff]
      %v1034 = vld [vmem:[#allocation2 + $0x49] sm:$0xff]
      %v1035 = vld [vmem:[#allocation2 + $0x51] sm:$0xff]
      %v1036 = vld [vmem:[#allocation2 + $0x61] sm:$0xff]
      %v1037 = vld [vmem:[#allocation2 + $0x69] sm:$0xff]
      %v1038 = vld [vmem:[#allocation2 + $0x79] sm:$0xff]
      %v1039 = vld [vmem:[#allocation2 + $0x81] sm:$0xff]
      %v1040 = vld [vmem:[#allocation2 + $0x91] sm:$0xff]
      %v1041 = vld [vmem:[#allocation2 + $0x99] sm:$0xff]
      %v1042 = vld [vmem:[#allocation2 + $0xa9] sm:$0xff]
      %v1043 = vld [vmem:[#allocation2 + $0xb1] sm:$0xff]
      %v1044 = vld [vmem:[#allocation2 + $0xc1] sm:$0xff]
      %v1045 = vld [vmem:[#allocation2 + $0xc9] sm:$0xff]
      %v1046 = vld [vmem:[#allocation2 + $0xd9] sm:$0xff]
      %v1047 = vld [vmem:[#allocation2 + $0xe1] sm:$0xff]
      %v1048 = vld [vmem:[#allocation2 + $0xf1] sm:$0xff]
      %v1049 = vld [vmem:[#allocation2 + $0xf9] sm:$0xff]
      %v1050 = vld [vmem:[#allocation2 + $0x109] sm:$0xff]
      %v1051 = vld [vmem:[#allocation2 + $0x111] sm:$0xff]
      %v1052 = vld [vmem:[#allocation2 + $0x121] sm:$0xff]
      %v1053 = vld [vmem:[#allocation2 + $0x129] sm:$0xff]
      %v1054 = vld [vmem:[#allocation2 + $0x139] sm:$0xff]
      %v1055 = vld [vmem:[#allocation2 + $0x141] sm:$0xff]
      %v1056 = vld [vmem:[#allocation2 + $0x151] sm:$0xff]
      %v1057 = vld [vmem:[#allocation2 + $0x159] sm:$0xff]
      %v1058 = vld [vmem:[#allocation2 + $0x169] sm:$0xff]
      %v1059 = vld [vmem:[#allocation2 + $0x171] sm:$0xff]
      %v1060 = vld [vmem:[#allocation2 + $0x2] sm:$0xff]
      %v1061 = vld [vmem:[#allocation2 + $0xa] sm:$0xff]
      %v1062 = vld [vmem:[#allocation2 + $0x1a] sm:$0xff]
      %v1063 = vld [vmem:[#allocation2 + $0x22] sm:$0xff]
      %v1064 = vld [vmem:[#allocation2 + $0x32] sm:$0xff]
      %v1065 = vld [vmem:[#allocation2 + $0x3a] sm:$0xff]
      %v1066 = vld [vmem:[#allocation2 + $0x4a] sm:$0xff]
      %v1067 = vld [vmem:[#allocation2 + $0x52] sm:$0xff]
      %v1068 = vld [vmem:[#allocation2 + $0x62] sm:$0xff]
      %v1069 = vld [vmem:[#allocation2 + $0x6a] sm:$0xff]
      %v1070 = vld [vmem:[#allocation2 + $0x7a] sm:$0xff]
      %v1071 = vld [vmem:[#allocation2 + $0x82] sm:$0xff]
      %v1072 = vld [vmem:[#allocation2 + $0x92] sm:$0xff]
      %v1073 = vld [vmem:[#allocation2 + $0x9a] sm:$0xff]
      %v1074 = vld [vmem:[#allocation2 + $0xaa] sm:$0xff]
      %v1075 = vld [vmem:[#allocation2 + $0xb2] sm:$0xff]
      %v1076 = vld [vmem:[#allocation2 + $0xc2] sm:$0xff]
      %v1077 = vld [vmem:[#allocation2 + $0xca] sm:$0xff]
      %v1078 = vld [vmem:[#allocation2 + $0xda] sm:$0xff]
      %v1079 = vld [vmem:[#allocation2 + $0xe2] sm:$0xff]
      %v1080 = vld [vmem:[#allocation2 + $0xf2] sm:$0xff]
      %v1081 = vld [vmem:[#allocation2 + $0xfa] sm:$0xff]
      %v1082 = vld [vmem:[#allocation2 + $0x10a] sm:$0xff]
      %v1083 = vld [vmem:[#allocation2 + $0x112] sm:$0xff]
      %v1084 = vld [vmem:[#allocation2 + $0x122] sm:$0xff]
      %v1085 = vld [vmem:[#allocation2 + $0x12a] sm:$0xff]
      %v1086 = vld [vmem:[#allocation2 + $0x13a] sm:$0xff]
      %v1087 = vld [vmem:[#allocation2 + $0x142] sm:$0xff]
      %v1088 = vld [vmem:[#allocation2 + $0x152] sm:$0xff]
      %v1089 = vld [vmem:[#allocation2 + $0x15a] sm:$0xff]
      %v1090 = vld [vmem:[#allocation2 + $0x16a] sm:$0xff]
      %v1091 = vld [vmem:[#allocation2 + $0x172] sm:$0xff]
      %v1092 = vld [vmem:[%s963] sm:$0xff]
      %v1093 = vld [vmem:[%s963 + $0x8] sm:$0xff]
      %v1094 = vld [vmem:[%s963 + $0x18] sm:$0xff]
      %v1095 = vld [vmem:[%s963 + $0x20] sm:$0xff]
      %v1096 = vld [vmem:[%s963 + $0x30] sm:$0xff]
      %v1097 = vld [vmem:[%s963 + $0x38] sm:$0xff]
      %v1098 = vld [vmem:[%s963 + $0x48] sm:$0xff]
      %v1099 = vld [vmem:[%s963 + $0x50] sm:$0xff]
      %v1100 = vld [vmem:[%s963 + $0x60] sm:$0xff]
      %v1101 = vld [vmem:[%s963 + $0x68] sm:$0xff]
      %v1102 = vld [vmem:[%s963 + $0x78] sm:$0xff]
      %v1103 = vld [vmem:[%s963 + $0x80] sm:$0xff]
      %v1104 = vld [vmem:[%s963 + $0x90] sm:$0xff]
      %v1105 = vld [vmem:[%s963 + $0x98] sm:$0xff]
      %v1106 = vld [vmem:[%s963 + $0xa8] sm:$0xff]
      %v1107 = vld [vmem:[%s963 + $0xb0] sm:$0xff]
      %v1108 = vld [vmem:[%s963 + $0xc0] sm:$0xff]
      %v1109 = vld [vmem:[%s963 + $0xc8] sm:$0xff]
      %v1110 = vld [vmem:[%s963 + $0xd8] sm:$0xff]
      %v1111 = vld [vmem:[%s963 + $0xe0] sm:$0xff]
      %v1112 = vld [vmem:[%s963 + $0xf0] sm:$0xff]
      %v1113 = vld [vmem:[%s963 + $0xf8] sm:$0xff]
      %v1114 = vld [vmem:[%s963 + $0x108] sm:$0xff]
      %v1115 = vld [vmem:[%s963 + $0x110] sm:$0xff]
      %v1116 = vld [vmem:[%s963 + $0x120] sm:$0xff]
      %v1117 = vld [vmem:[%s963 + $0x128] sm:$0xff]
      %v1118 = vld [vmem:[%s963 + $0x138] sm:$0xff]
      %v1119 = vld [vmem:[%s963 + $0x140] sm:$0xff]
      %v1120 = vld [vmem:[%s963 + $0x150] sm:$0xff]
      %v1121 = vld [vmem:[%s963 + $0x158] sm:$0xff]
      %v1122 = vld [vmem:[%s963 + $0x168] sm:$0xff]
      %v1123 = vld [vmem:[%s963 + $0x170] sm:$0xff]
      %v1124 = vld [vmem:[%s963 + $0x1] sm:$0xff]
      %v1125 = vld [vmem:[%s963 + $0x9] sm:$0xff]
      %v1126 = vld [vmem:[%s963 + $0x19] sm:$0xff]
      %v1127 = vld [vmem:[%s963 + $0x21] sm:$0xff]
      %v1128 = vld [vmem:[%s963 + $0x31] sm:$0xff]
      %v1129 = vld [vmem:[%s963 + $0x39] sm:$0xff]
      %v1130 = vld [vmem:[%s963 + $0x49] sm:$0xff]
      %v1131 = vld [vmem:[%s963 + $0x51] sm:$0xff]
      %v1132 = vld [vmem:[%s963 + $0x61] sm:$0xff]
      %v1133 = vld [vmem:[%s963 + $0x69] sm:$0xff]
      %v1134 = vld [vmem:[%s963 + $0x79] sm:$0xff]
      %v1135 = vld [vmem:[%s963 + $0x81] sm:$0xff]
      %v1136 = vld [vmem:[%s963 + $0x91] sm:$0xff]
      %v1137 = vld [vmem:[%s963 + $0x99] sm:$0xff]
      %v1138 = vld [vmem:[%s963 + $0xa9] sm:$0xff]
      %v1139 = vld [vmem:[%s963 + $0xb1] sm:$0xff]
      %v1140 = vld [vmem:[%s963 + $0xc1] sm:$0xff]
      %v1141 = vld [vmem:[%s963 + $0xc9] sm:$0xff]
      %v1142 = vld [vmem:[%s963 + $0xd9] sm:$0xff]
      %v1143 = vld [vmem:[%s963 + $0xe1] sm:$0xff]
      %v1144 = vld [vmem:[%s963 + $0xf1] sm:$0xff]
      %v1145 = vld [vmem:[%s963 + $0xf9] sm:$0xff]
      %v1146 = vld [vmem:[%s963 + $0x109] sm:$0xff]
      %v1147 = vld [vmem:[%s963 + $0x111] sm:$0xff]
      %v1148 = vld [vmem:[%s963 + $0x121] sm:$0xff]
      %v1149 = vld [vmem:[%s963 + $0x129] sm:$0xff]
      %v1150 = vld [vmem:[%s963 + $0x139] sm:$0xff]
      %v1151 = vld [vmem:[%s963 + $0x141] sm:$0xff]
      %v1152 = vld [vmem:[%s963 + $0x151] sm:$0xff]
      %v1153 = vld [vmem:[%s963 + $0x159] sm:$0xff]
      %v1154 = vld [vmem:[%s963 + $0x169] sm:$0xff]
      %v1155 = vld [vmem:[%s963 + $0x171] sm:$0xff]
      %v1156 = vld [vmem:[%s963 + $0x2] sm:$0xff]
      %v1157 = vld [vmem:[%s963 + $0xa] sm:$0xff]
      %v1158 = vld [vmem:[%s963 + $0x1a] sm:$0xff]
      %v1159 = vld [vmem:[%s963 + $0x22] sm:$0xff]
      %v1160 = vld [vmem:[%s963 + $0x32] sm:$0xff]
      %v1161 = vld [vmem:[%s963 + $0x3a] sm:$0xff]
      %v1162 = vld [vmem:[%s963 + $0x4a] sm:$0xff]
      %v1163 = vld [vmem:[%s963 + $0x52] sm:$0xff]
      %v1164 = vld [vmem:[%s963 + $0x62] sm:$0xff]
      %v1165 = vld [vmem:[%s963 + $0x6a] sm:$0xff]
      %v1166 = vld [vmem:[%s963 + $0x7a] sm:$0xff]
      %v1167 = vld [vmem:[%s963 + $0x82] sm:$0xff]
      %v1168 = vld [vmem:[%s963 + $0x92] sm:$0xff]
      %v1169 = vld [vmem:[%s963 + $0x9a] sm:$0xff]
      %v1170 = vld [vmem:[%s963 + $0xaa] sm:$0xff]
      %v1171 = vld [vmem:[%s963 + $0xb2] sm:$0xff]
      %v1172 = vld [vmem:[%s963 + $0xc2] sm:$0xff]
      %v1173 = vld [vmem:[%s963 + $0xca] sm:$0xff]
      %v1174 = vld [vmem:[%s963 + $0xda] sm:$0xff]
      %v1175 = vld [vmem:[%s963 + $0xe2] sm:$0xff]
      %v1176 = vld [vmem:[%s963 + $0xf2] sm:$0xff]
      %v1177 = vld [vmem:[%s963 + $0xfa] sm:$0xff]
      %v1178 = vld [vmem:[%s963 + $0x10a] sm:$0xff]
      %v1179 = vld [vmem:[%s963 + $0x112] sm:$0xff]
      %v1180 = vld [vmem:[%s963 + $0x122] sm:$0xff]
      %v1181 = vld [vmem:[%s963 + $0x12a] sm:$0xff]
      %v1182 = vld [vmem:[%s963 + $0x13a] sm:$0xff]
      %v1183 = vld [vmem:[%s963 + $0x142] sm:$0xff]
      %v1184 = vld [vmem:[%s963 + $0x152] sm:$0xff]
      %v1185 = vld [vmem:[%s963 + $0x15a] sm:$0xff]
      %v1186 = vld [vmem:[%s963 + $0x16a] sm:$0xff]
      %v1187 = vld [vmem:[%s963 + $0x172] sm:$0xff]
      %s1188 = scalar_lea.vmem [#allocation2], 48
      %v1189 = vld [vmem:[%s1188] sm:$0xff]
      %v1190 = vld [vmem:[%s1188 + $0x8] sm:$0xff]
      %v1191 = vld [vmem:[%s1188 + $0x18] sm:$0xff]
      %v1192 = vld [vmem:[%s1188 + $0x20] sm:$0xff]
      %v1193 = vld [vmem:[%s1188 + $0x30] sm:$0xff]
      %v1194 = vld [vmem:[%s1188 + $0x38] sm:$0xff]
      %v1195 = vld [vmem:[%s1188 + $0x48] sm:$0xff]
      %v1196 = vld [vmem:[%s1188 + $0x50] sm:$0xff]
      %v1197 = vld [vmem:[%s1188 + $0x60] sm:$0xff]
      %v1198 = vld [vmem:[%s1188 + $0x68] sm:$0xff]
      %v1199 = vld [vmem:[%s1188 + $0x78] sm:$0xff]
      %v1200 = vld [vmem:[%s1188 + $0x80] sm:$0xff]
      %v1201 = vld [vmem:[%s1188 + $0x90] sm:$0xff]
      %v1202 = vld [vmem:[%s1188 + $0x98] sm:$0xff]
      %v1203 = vld [vmem:[%s1188 + $0xa8] sm:$0xff]
      %v1204 = vld [vmem:[%s1188 + $0xb0] sm:$0xff]
      %v1205 = vld [vmem:[%s1188 + $0xc0] sm:$0xff]
      %v1206 = vld [vmem:[%s1188 + $0xc8] sm:$0xff]
      %v1207 = vld [vmem:[%s1188 + $0xd8] sm:$0xff]
      %v1208 = vld [vmem:[%s1188 + $0xe0] sm:$0xff]
      %v1209 = vld [vmem:[%s1188 + $0xf0] sm:$0xff]
      %v1210 = vld [vmem:[%s1188 + $0xf8] sm:$0xff]
      %v1211 = vld [vmem:[%s1188 + $0x108] sm:$0xff]
      %v1212 = vld [vmem:[%s1188 + $0x110] sm:$0xff]
      %v1213 = vld [vmem:[%s1188 + $0x120] sm:$0xff]
      %v1214 = vld [vmem:[%s1188 + $0x128] sm:$0xff]
      %v1215 = vld [vmem:[%s1188 + $0x138] sm:$0xff]
      %v1216 = vld [vmem:[%s1188 + $0x140] sm:$0xff]
      %v1217 = vld [vmem:[%s1188 + $0x150] sm:$0xff]
      %v1218 = vld [vmem:[%s1188 + $0x158] sm:$0xff]
      %v1219 = vld [vmem:[%s1188 + $0x168] sm:$0xff]
      %v1220 = vld [vmem:[%s1188 + $0x170] sm:$0xff]
      %v1221 = vld [vmem:[%s1188 + $0x1] sm:$0xff]
      %v1222 = vld [vmem:[%s1188 + $0x9] sm:$0xff]
      %v1223 = vld [vmem:[%s1188 + $0x19] sm:$0xff]
      %v1224 = vld [vmem:[%s1188 + $0x21] sm:$0xff]
      %v1225 = vld [vmem:[%s1188 + $0x31] sm:$0xff]
      %v1226 = vld [vmem:[%s1188 + $0x39] sm:$0xff]
      %v1227 = vld [vmem:[%s1188 + $0x49] sm:$0xff]
      %v1228 = vld [vmem:[%s1188 + $0x51] sm:$0xff]
      %v1229 = vld [vmem:[%s1188 + $0x61] sm:$0xff]
      %v1230 = vld [vmem:[%s1188 + $0x69] sm:$0xff]
      %v1231 = vld [vmem:[%s1188 + $0x79] sm:$0xff]
      %v1232 = vld [vmem:[%s1188 + $0x81] sm:$0xff]
      %v1233 = vld [vmem:[%s1188 + $0x91] sm:$0xff]
      %v1234 = vld [vmem:[%s1188 + $0x99] sm:$0xff]
      %v1235 = vld [vmem:[%s1188 + $0xa9] sm:$0xff]
      %v1236 = vld [vmem:[%s1188 + $0xb1] sm:$0xff]
      %v1237 = vld [vmem:[%s1188 + $0xc1] sm:$0xff]
      %v1238 = vld [vmem:[%s1188 + $0xc9] sm:$0xff]
      %v1239 = vld [vmem:[%s1188 + $0xd9] sm:$0xff]
      %v1240 = vld [vmem:[%s1188 + $0xe1] sm:$0xff]
      %v1241 = vld [vmem:[%s1188 + $0xf1] sm:$0xff]
      %v1242 = vld [vmem:[%s1188 + $0xf9] sm:$0xff]
      %v1243 = vld [vmem:[%s1188 + $0x109] sm:$0xff]
      %v1244 = vld [vmem:[%s1188 + $0x111] sm:$0xff]
      %v1245 = vld [vmem:[%s1188 + $0x121] sm:$0xff]
      %v1246 = vld [vmem:[%s1188 + $0x129] sm:$0xff]
      %v1247 = vld [vmem:[%s1188 + $0x139] sm:$0xff]
      %v1248 = vld [vmem:[%s1188 + $0x141] sm:$0xff]
      %v1249 = vld [vmem:[%s1188 + $0x151] sm:$0xff]
      %v1250 = vld [vmem:[%s1188 + $0x159] sm:$0xff]
      %v1251 = vld [vmem:[%s1188 + $0x169] sm:$0xff]
      %v1252 = vld [vmem:[%s1188 + $0x171] sm:$0xff]
      %v1253 = vld [vmem:[%s1188 + $0x2] sm:$0xff]
      %v1254 = vld [vmem:[%s1188 + $0xa] sm:$0xff]
      %v1255 = vld [vmem:[%s1188 + $0x1a] sm:$0xff]
      %v1256 = vld [vmem:[%s1188 + $0x22] sm:$0xff]
      %v1257 = vld [vmem:[%s1188 + $0x32] sm:$0xff]
      %v1258 = vld [vmem:[%s1188 + $0x3a] sm:$0xff]
      %v1259 = vld [vmem:[%s1188 + $0x4a] sm:$0xff]
      %v1260 = vld [vmem:[%s1188 + $0x52] sm:$0xff]
      %v1261 = vld [vmem:[%s1188 + $0x62] sm:$0xff]
      %v1262 = vld [vmem:[%s1188 + $0x6a] sm:$0xff]
      %v1263 = vld [vmem:[%s1188 + $0x7a] sm:$0xff]
      %v1264 = vld [vmem:[%s1188 + $0x82] sm:$0xff]
      %v1265 = vld [vmem:[%s1188 + $0x92] sm:$0xff]
      %v1266 = vld [vmem:[%s1188 + $0x9a] sm:$0xff]
      %v1267 = vld [vmem:[%s1188 + $0xaa] sm:$0xff]
      %v1268 = vld [vmem:[%s1188 + $0xb2] sm:$0xff]
      %v1269 = vld [vmem:[%s1188 + $0xc2] sm:$0xff]
      %v1270 = vld [vmem:[%s1188 + $0xca] sm:$0xff]
      %v1271 = vld [vmem:[%s1188 + $0xda] sm:$0xff]
      %v1272 = vld [vmem:[%s1188 + $0xe2] sm:$0xff]
      %v1273 = vld [vmem:[%s1188 + $0xf2] sm:$0xff]
      %v1274 = vld [vmem:[%s1188 + $0xfa] sm:$0xff]
      %v1275 = vld [vmem:[%s1188 + $0x10a] sm:$0xff]
      %v1276 = vld [vmem:[%s1188 + $0x112] sm:$0xff]
      %v1277 = vld [vmem:[%s1188 + $0x122] sm:$0xff]
      %v1278 = vld [vmem:[%s1188 + $0x12a] sm:$0xff]
      %v1279 = vld [vmem:[%s1188 + $0x13a] sm:$0xff]
      %v1280 = vld [vmem:[%s1188 + $0x142] sm:$0xff]
      %v1281 = vld [vmem:[%s1188 + $0x152] sm:$0xff]
      %v1282 = vld [vmem:[%s1188 + $0x15a] sm:$0xff]
      %v1283 = vld [vmem:[%s1188 + $0x16a] sm:$0xff]
      %v1284 = vld [vmem:[%s1188 + $0x172] sm:$0xff]
      %1317 = vrot.lane.b32.xlu0 %v1028, 16
      %v1318 = vpop.permute.xlu0 %1317
      %1319 = vrot.lane.b32.xlu0 %v1029, 16
      %v1320 = vpop.permute.xlu0 %1319
      %1321 = vrot.lane.b32.xlu0 %v1030, 16
      %v1322 = vpop.permute.xlu0 %1321
      %1323 = vrot.lane.b32.xlu0 %v1031, 16
      %v1324 = vpop.permute.xlu0 %1323
      %1325 = vrot.lane.b32.xlu0 %v1032, 16
      %v1326 = vpop.permute.xlu0 %1325
      %1327 = vrot.lane.b32.xlu0 %v1033, 16
      %v1328 = vpop.permute.xlu0 %1327
      %1329 = vrot.lane.b32.xlu0 %v1034, 16
      %v1330 = vpop.permute.xlu0 %1329
      %1331 = vrot.lane.b32.xlu0 %v1035, 16
      %v1332 = vpop.permute.xlu0 %1331
      %1333 = vrot.lane.b32.xlu0 %v1036, 16
      %v1334 = vpop.permute.xlu0 %1333
      %1335 = vrot.lane.b32.xlu0 %v1037, 16
      %v1336 = vpop.permute.xlu0 %1335
      %1337 = vrot.lane.b32.xlu0 %v1038, 16
      %v1338 = vpop.permute.xlu0 %1337
      %1339 = vrot.lane.b32.xlu0 %v1039, 16
      %v1340 = vpop.permute.xlu0 %1339
      %1341 = vrot.lane.b32.xlu0 %v1040, 16
      %v1342 = vpop.permute.xlu0 %1341
      %1343 = vrot.lane.b32.xlu0 %v1041, 16
      %v1344 = vpop.permute.xlu0 %1343
      %1345 = vrot.lane.b32.xlu0 %v1042, 16
      %v1346 = vpop.permute.xlu0 %1345
      %1347 = vrot.lane.b32.xlu0 %v1043, 16
      %v1348 = vpop.permute.xlu0 %1347
      %1349 = vrot.lane.b32.xlu0 %v1044, 16
      %v1350 = vpop.permute.xlu0 %1349
      %1351 = vrot.lane.b32.xlu0 %v1045, 16
      %v1352 = vpop.permute.xlu0 %1351
      %1353 = vrot.lane.b32.xlu0 %v1046, 16
      %v1354 = vpop.permute.xlu0 %1353
      %1355 = vrot.lane.b32.xlu0 %v1047, 16
      %v1356 = vpop.permute.xlu0 %1355
      %1357 = vrot.lane.b32.xlu0 %v1048, 16
      %v1358 = vpop.permute.xlu0 %1357
      %1359 = vrot.lane.b32.xlu0 %v1049, 16
      %v1360 = vpop.permute.xlu0 %1359
      %1361 = vrot.lane.b32.xlu0 %v1050, 16
      %v1362 = vpop.permute.xlu0 %1361
      %1363 = vrot.lane.b32.xlu0 %v1051, 16
      %v1364 = vpop.permute.xlu0 %1363
      %1365 = vrot.lane.b32.xlu0 %v1052, 16
      %v1366 = vpop.permute.xlu0 %1365
      %1367 = vrot.lane.b32.xlu0 %v1053, 16
      %v1368 = vpop.permute.xlu0 %1367
      %1369 = vrot.lane.b32.xlu0 %v1054, 16
      %v1370 = vpop.permute.xlu0 %1369
      %1371 = vrot.lane.b32.xlu0 %v1055, 16
      %v1372 = vpop.permute.xlu0 %1371
      %1373 = vrot.lane.b32.xlu0 %v1056, 16
      %v1374 = vpop.permute.xlu0 %1373
      %1375 = vrot.lane.b32.xlu0 %v1057, 16
      %v1376 = vpop.permute.xlu0 %1375
      %1377 = vrot.lane.b32.xlu0 %v1058, 16
      %v1378 = vpop.permute.xlu0 %1377
      %1379 = vrot.lane.b32.xlu0 %v1059, 16
      %v1380 = vpop.permute.xlu0 %1379
      %1445 = vrot.lane.b32.xlu0 %v1060, 32
      %v1446 = vpop.permute.xlu0 %1445
      %1447 = vrot.lane.b32.xlu0 %v1061, 32
      %v1448 = vpop.permute.xlu0 %1447
      %1449 = vrot.lane.b32.xlu0 %v1062, 32
      %v1450 = vpop.permute.xlu0 %1449
      %1451 = vrot.lane.b32.xlu0 %v1063, 32
      %v1452 = vpop.permute.xlu0 %1451
      %1453 = vrot.lane.b32.xlu0 %v1064, 32
      %v1454 = vpop.permute.xlu0 %1453
      %1455 = vrot.lane.b32.xlu0 %v1065, 32
      %v1456 = vpop.permute.xlu0 %1455
      %1457 = vrot.lane.b32.xlu0 %v1066, 32
      %v1458 = vpop.permute.xlu0 %1457
      %1459 = vrot.lane.b32.xlu0 %v1067, 32
      %v1460 = vpop.permute.xlu0 %1459
      %1461 = vrot.lane.b32.xlu0 %v1068, 32
      %v1462 = vpop.permute.xlu0 %1461
      %1463 = vrot.lane.b32.xlu0 %v1069, 32
      %v1464 = vpop.permute.xlu0 %1463
      %1465 = vrot.lane.b32.xlu0 %v1070, 32
      %v1466 = vpop.permute.xlu0 %1465
      %1467 = vrot.lane.b32.xlu0 %v1071, 32
      %v1468 = vpop.permute.xlu0 %1467
      %1469 = vrot.lane.b32.xlu0 %v1072, 32
      %v1470 = vpop.permute.xlu0 %1469
      %1471 = vrot.lane.b32.xlu0 %v1073, 32
      %v1472 = vpop.permute.xlu0 %1471
      %1473 = vrot.lane.b32.xlu0 %v1074, 32
      %v1474 = vpop.permute.xlu0 %1473
      %1475 = vrot.lane.b32.xlu0 %v1075, 32
      %v1476 = vpop.permute.xlu0 %1475
      %1477 = vrot.lane.b32.xlu0 %v1076, 32
      %v1478 = vpop.permute.xlu0 %1477
      %1479 = vrot.lane.b32.xlu0 %v1077, 32
      %v1480 = vpop.permute.xlu0 %1479
      %1481 = vrot.lane.b32.xlu0 %v1078, 32
      %v1482 = vpop.permute.xlu0 %1481
      %1483 = vrot.lane.b32.xlu0 %v1079, 32
      %v1484 = vpop.permute.xlu0 %1483
      %1485 = vrot.lane.b32.xlu0 %v1080, 32
      %v1486 = vpop.permute.xlu0 %1485
      %1487 = vrot.lane.b32.xlu0 %v1081, 32
      %v1488 = vpop.permute.xlu0 %1487
      %1489 = vrot.lane.b32.xlu0 %v1082, 32
      %v1490 = vpop.permute.xlu0 %1489
      %1491 = vrot.lane.b32.xlu0 %v1083, 32
      %v1492 = vpop.permute.xlu0 %1491
      %1493 = vrot.lane.b32.xlu0 %v1084, 32
      %v1494 = vpop.permute.xlu0 %1493
      %1495 = vrot.lane.b32.xlu0 %v1085, 32
      %v1496 = vpop.permute.xlu0 %1495
      %1497 = vrot.lane.b32.xlu0 %v1086, 32
      %v1498 = vpop.permute.xlu0 %1497
      %1499 = vrot.lane.b32.xlu0 %v1087, 32
      %v1500 = vpop.permute.xlu0 %1499
      %1501 = vrot.lane.b32.xlu0 %v1088, 32
      %v1502 = vpop.permute.xlu0 %1501
      %1503 = vrot.lane.b32.xlu0 %v1089, 32
      %v1504 = vpop.permute.xlu0 %1503
      %1505 = vrot.lane.b32.xlu0 %v1090, 32
      %v1506 = vpop.permute.xlu0 %1505
      %1507 = vrot.lane.b32.xlu0 %v1091, 32
      %v1508 = vpop.permute.xlu0 %1507
      %1573 = vrot.lane.b32.xlu0 %v1092, 48
      %v1574 = vpop.permute.xlu0 %1573
      %1575 = vrot.lane.b32.xlu0 %v1093, 48
      %v1576 = vpop.permute.xlu0 %1575
      %1577 = vrot.lane.b32.xlu0 %v1094, 48
      %v1578 = vpop.permute.xlu0 %1577
      %1579 = vrot.lane.b32.xlu0 %v1095, 48
      %v1580 = vpop.permute.xlu0 %1579
      %1581 = vrot.lane.b32.xlu0 %v1096, 48
      %v1582 = vpop.permute.xlu0 %1581
      %1583 = vrot.lane.b32.xlu0 %v1097, 48
      %v1584 = vpop.permute.xlu0 %1583
      %1585 = vrot.lane.b32.xlu0 %v1098, 48
      %v1586 = vpop.permute.xlu0 %1585
      %1587 = vrot.lane.b32.xlu0 %v1099, 48
      %v1588 = vpop.permute.xlu0 %1587
      %1589 = vrot.lane.b32.xlu0 %v1100, 48
      %v1590 = vpop.permute.xlu0 %1589
      %1591 = vrot.lane.b32.xlu0 %v1101, 48
      %v1592 = vpop.permute.xlu0 %1591
      %1593 = vrot.lane.b32.xlu0 %v1102, 48
      %v1594 = vpop.permute.xlu0 %1593
      %1595 = vrot.lane.b32.xlu0 %v1103, 48
      %v1596 = vpop.permute.xlu0 %1595
      %1597 = vrot.lane.b32.xlu0 %v1104, 48
      %v1598 = vpop.permute.xlu0 %1597
      %1599 = vrot.lane.b32.xlu0 %v1105, 48
      %v1600 = vpop.permute.xlu0 %1599
      %1601 = vrot.lane.b32.xlu0 %v1106, 48
      %v1602 = vpop.permute.xlu0 %1601
      %1603 = vrot.lane.b32.xlu0 %v1107, 48
      %v1604 = vpop.permute.xlu0 %1603
      %1605 = vrot.lane.b32.xlu0 %v1108, 48
      %v1606 = vpop.permute.xlu0 %1605
      %1607 = vrot.lane.b32.xlu0 %v1109, 48
      %v1608 = vpop.permute.xlu0 %1607
      %1609 = vrot.lane.b32.xlu0 %v1110, 48
      %v1610 = vpop.permute.xlu0 %1609
      %1611 = vrot.lane.b32.xlu0 %v1111, 48
      %v1612 = vpop.permute.xlu0 %1611
      %1613 = vrot.lane.b32.xlu0 %v1112, 48
      %v1614 = vpop.permute.xlu0 %1613
      %1615 = vrot.lane.b32.xlu0 %v1113, 48
      %v1616 = vpop.permute.xlu0 %1615
      %1617 = vrot.lane.b32.xlu0 %v1114, 48
      %v1618 = vpop.permute.xlu0 %1617
      %1619 = vrot.lane.b32.xlu0 %v1115, 48
      %v1620 = vpop.permute.xlu0 %1619
      %1621 = vrot.lane.b32.xlu0 %v1116, 48
      %v1622 = vpop.permute.xlu0 %1621
      %1623 = vrot.lane.b32.xlu0 %v1117, 48
      %v1624 = vpop.permute.xlu0 %1623
      %1625 = vrot.lane.b32.xlu0 %v1118, 48
      %v1626 = vpop.permute.xlu0 %1625
      %1627 = vrot.lane.b32.xlu0 %v1119, 48
      %v1628 = vpop.permute.xlu0 %1627
      %1629 = vrot.lane.b32.xlu0 %v1120, 48
      %v1630 = vpop.permute.xlu0 %1629
      %1631 = vrot.lane.b32.xlu0 %v1121, 48
      %v1632 = vpop.permute.xlu0 %1631
      %1633 = vrot.lane.b32.xlu0 %v1122, 48
      %v1634 = vpop.permute.xlu0 %1633
      %1635 = vrot.lane.b32.xlu0 %v1123, 48
      %v1636 = vpop.permute.xlu0 %1635
      %1701 = vrot.lane.b32.xlu0 %v1124, 64
      %v1702 = vpop.permute.xlu0 %1701
      %1703 = vrot.lane.b32.xlu0 %v1125, 64
      %v1704 = vpop.permute.xlu0 %1703
      %1705 = vrot.lane.b32.xlu0 %v1126, 64
      %v1706 = vpop.permute.xlu0 %1705
      %1707 = vrot.lane.b32.xlu0 %v1127, 64
      %v1708 = vpop.permute.xlu0 %1707
      %1709 = vrot.lane.b32.xlu0 %v1128, 64
      %v1710 = vpop.permute.xlu0 %1709
      %1711 = vrot.lane.b32.xlu0 %v1129, 64
      %v1712 = vpop.permute.xlu0 %1711
      %1713 = vrot.lane.b32.xlu0 %v1130, 64
      %v1714 = vpop.permute.xlu0 %1713
      %1715 = vrot.lane.b32.xlu0 %v1131, 64
      %v1716 = vpop.permute.xlu0 %1715
      %1717 = vrot.lane.b32.xlu0 %v1132, 64
      %v1718 = vpop.permute.xlu0 %1717
      %1719 = vrot.lane.b32.xlu0 %v1133, 64
      %v1720 = vpop.permute.xlu0 %1719
      %1721 = vrot.lane.b32.xlu0 %v1134, 64
      %v1722 = vpop.permute.xlu0 %1721
      %1723 = vrot.lane.b32.xlu0 %v1135, 64
      %v1724 = vpop.permute.xlu0 %1723
      %1725 = vrot.lane.b32.xlu0 %v1136, 64
      %v1726 = vpop.permute.xlu0 %1725
      %1727 = vrot.lane.b32.xlu0 %v1137, 64
      %v1728 = vpop.permute.xlu0 %1727
      %1729 = vrot.lane.b32.xlu0 %v1138, 64
      %v1730 = vpop.permute.xlu0 %1729
      %1731 = vrot.lane.b32.xlu0 %v1139, 64
      %v1732 = vpop.permute.xlu0 %1731
      %1733 = vrot.lane.b32.xlu0 %v1140, 64
      %v1734 = vpop.permute.xlu0 %1733
      %1735 = vrot.lane.b32.xlu0 %v1141, 64
      %v1736 = vpop.permute.xlu0 %1735
      %1737 = vrot.lane.b32.xlu0 %v1142, 64
      %v1738 = vpop.permute.xlu0 %1737
      %1739 = vrot.lane.b32.xlu0 %v1143, 64
      %v1740 = vpop.permute.xlu0 %1739
      %1741 = vrot.lane.b32.xlu0 %v1144, 64
      %v1742 = vpop.permute.xlu0 %1741
      %1743 = vrot.lane.b32.xlu0 %v1145, 64
      %v1744 = vpop.permute.xlu0 %1743
      %1745 = vrot.lane.b32.xlu0 %v1146, 64
      %v1746 = vpop.permute.xlu0 %1745
      %1747 = vrot.lane.b32.xlu0 %v1147, 64
      %v1748 = vpop.permute.xlu0 %1747
      %1749 = vrot.lane.b32.xlu0 %v1148, 64
      %v1750 = vpop.permute.xlu0 %1749
      %1751 = vrot.lane.b32.xlu0 %v1149, 64
      %v1752 = vpop.permute.xlu0 %1751
      %1753 = vrot.lane.b32.xlu0 %v1150, 64
      %v1754 = vpop.permute.xlu0 %1753
      %1755 = vrot.lane.b32.xlu0 %v1151, 64
      %v1756 = vpop.permute.xlu0 %1755
      %1757 = vrot.lane.b32.xlu0 %v1152, 64
      %v1758 = vpop.permute.xlu0 %1757
      %1759 = vrot.lane.b32.xlu0 %v1153, 64
      %v1760 = vpop.permute.xlu0 %1759
      %1761 = vrot.lane.b32.xlu0 %v1154, 64
      %v1762 = vpop.permute.xlu0 %1761
      %1763 = vrot.lane.b32.xlu0 %v1155, 64
      %v1764 = vpop.permute.xlu0 %1763
      %1829 = vrot.lane.b32.xlu0 %v1156, 80
      %v1830 = vpop.permute.xlu0 %1829
      %1831 = vrot.lane.b32.xlu0 %v1157, 80
      %v1832 = vpop.permute.xlu0 %1831
      %1833 = vrot.lane.b32.xlu0 %v1158, 80
      %v1834 = vpop.permute.xlu0 %1833
      %1835 = vrot.lane.b32.xlu0 %v1159, 80
      %v1836 = vpop.permute.xlu0 %1835
      %1837 = vrot.lane.b32.xlu0 %v1160, 80
      %v1838 = vpop.permute.xlu0 %1837
      %1839 = vrot.lane.b32.xlu0 %v1161, 80
      %v1840 = vpop.permute.xlu0 %1839
      %1841 = vrot.lane.b32.xlu0 %v1162, 80
      %v1842 = vpop.permute.xlu0 %1841
      %1843 = vrot.lane.b32.xlu0 %v1163, 80
      %v1844 = vpop.permute.xlu0 %1843
      %1845 = vrot.lane.b32.xlu0 %v1164, 80
      %v1846 = vpop.permute.xlu0 %1845
      %1847 = vrot.lane.b32.xlu0 %v1165, 80
      %v1848 = vpop.permute.xlu0 %1847
      %1849 = vrot.lane.b32.xlu0 %v1166, 80
      %v1850 = vpop.permute.xlu0 %1849
      %1851 = vrot.lane.b32.xlu0 %v1167, 80
      %v1852 = vpop.permute.xlu0 %1851
      %1853 = vrot.lane.b32.xlu0 %v1168, 80
      %v1854 = vpop.permute.xlu0 %1853
      %1855 = vrot.lane.b32.xlu0 %v1169, 80
      %v1856 = vpop.permute.xlu0 %1855
      %1857 = vrot.lane.b32.xlu0 %v1170, 80
      %v1858 = vpop.permute.xlu0 %1857
      %1859 = vrot.lane.b32.xlu0 %v1171, 80
      %v1860 = vpop.permute.xlu0 %1859
      %1861 = vrot.lane.b32.xlu0 %v1172, 80
      %v1862 = vpop.permute.xlu0 %1861
      %1863 = vrot.lane.b32.xlu0 %v1173, 80
      %v1864 = vpop.permute.xlu0 %1863
      %1865 = vrot.lane.b32.xlu0 %v1174, 80
      %v1866 = vpop.permute.xlu0 %1865
      %1867 = vrot.lane.b32.xlu0 %v1175, 80
      %v1868 = vpop.permute.xlu0 %1867
      %1869 = vrot.lane.b32.xlu0 %v1176, 80
      %v1870 = vpop.permute.xlu0 %1869
      %1871 = vrot.lane.b32.xlu0 %v1177, 80
      %v1872 = vpop.permute.xlu0 %1871
      %1873 = vrot.lane.b32.xlu0 %v1178, 80
      %v1874 = vpop.permute.xlu0 %1873
      %1875 = vrot.lane.b32.xlu0 %v1179, 80
      %v1876 = vpop.permute.xlu0 %1875
      %1877 = vrot.lane.b32.xlu0 %v1180, 80
      %v1878 = vpop.permute.xlu0 %1877
      %1879 = vrot.lane.b32.xlu0 %v1181, 80
      %v1880 = vpop.permute.xlu0 %1879
      %1881 = vrot.lane.b32.xlu0 %v1182, 80
      %v1882 = vpop.permute.xlu0 %1881
      %1883 = vrot.lane.b32.xlu0 %v1183, 80
      %v1884 = vpop.permute.xlu0 %1883
      %1885 = vrot.lane.b32.xlu0 %v1184, 80
      %v1886 = vpop.permute.xlu0 %1885
      %1887 = vrot.lane.b32.xlu0 %v1185, 80
      %v1888 = vpop.permute.xlu0 %1887
      %1889 = vrot.lane.b32.xlu0 %v1186, 80
      %v1890 = vpop.permute.xlu0 %1889
      %1891 = vrot.lane.b32.xlu0 %v1187, 80
      %v1892 = vpop.permute.xlu0 %1891
      %1957 = vrot.lane.b32.xlu0 %v1189, 96
      %v1958 = vpop.permute.xlu0 %1957
      %1959 = vrot.lane.b32.xlu0 %v1190, 96
      %v1960 = vpop.permute.xlu0 %1959
      %1961 = vrot.lane.b32.xlu0 %v1191, 96
      %v1962 = vpop.permute.xlu0 %1961
      %1963 = vrot.lane.b32.xlu0 %v1192, 96
      %v1964 = vpop.permute.xlu0 %1963
      %1965 = vrot.lane.b32.xlu0 %v1193, 96
      %v1966 = vpop.permute.xlu0 %1965
      %1967 = vrot.lane.b32.xlu0 %v1194, 96
      %v1968 = vpop.permute.xlu0 %1967
      %1969 = vrot.lane.b32.xlu0 %v1195, 96
      %v1970 = vpop.permute.xlu0 %1969
      %1971 = vrot.lane.b32.xlu0 %v1196, 96
      %v1972 = vpop.permute.xlu0 %1971
      %1973 = vrot.lane.b32.xlu0 %v1197, 96
      %v1974 = vpop.permute.xlu0 %1973
      %1975 = vrot.lane.b32.xlu0 %v1198, 96
      %v1976 = vpop.permute.xlu0 %1975
      %1977 = vrot.lane.b32.xlu0 %v1199, 96
      %v1978 = vpop.permute.xlu0 %1977
      %1979 = vrot.lane.b32.xlu0 %v1200, 96
      %v1980 = vpop.permute.xlu0 %1979
      %1981 = vrot.lane.b32.xlu0 %v1201, 96
      %v1982 = vpop.permute.xlu0 %1981
      %1983 = vrot.lane.b32.xlu0 %v1202, 96
      %v1984 = vpop.permute.xlu0 %1983
      %1985 = vrot.lane.b32.xlu0 %v1203, 96
      %v1986 = vpop.permute.xlu0 %1985
      %1987 = vrot.lane.b32.xlu0 %v1204, 96
      %v1988 = vpop.permute.xlu0 %1987
      %1989 = vrot.lane.b32.xlu0 %v1205, 96
      %v1990 = vpop.permute.xlu0 %1989
      %1991 = vrot.lane.b32.xlu0 %v1206, 96
      %v1992 = vpop.permute.xlu0 %1991
      %1993 = vrot.lane.b32.xlu0 %v1207, 96
      %v1994 = vpop.permute.xlu0 %1993
      %1995 = vrot.lane.b32.xlu0 %v1208, 96
      %v1996 = vpop.permute.xlu0 %1995
      %1997 = vrot.lane.b32.xlu0 %v1209, 96
      %v1998 = vpop.permute.xlu0 %1997
      %1999 = vrot.lane.b32.xlu0 %v1210, 96
      %v2000 = vpop.permute.xlu0 %1999
      %2001 = vrot.lane.b32.xlu0 %v1211, 96
      %v2002 = vpop.permute.xlu0 %2001
      %2003 = vrot.lane.b32.xlu0 %v1212, 96
      %v2004 = vpop.permute.xlu0 %2003
      %2005 = vrot.lane.b32.xlu0 %v1213, 96
      %v2006 = vpop.permute.xlu0 %2005
      %2007 = vrot.lane.b32.xlu0 %v1214, 96
      %v2008 = vpop.permute.xlu0 %2007
      %2009 = vrot.lane.b32.xlu0 %v1215, 96
      %v2010 = vpop.permute.xlu0 %2009
      %2011 = vrot.lane.b32.xlu0 %v1216, 96
      %v2012 = vpop.permute.xlu0 %2011
      %2013 = vrot.lane.b32.xlu0 %v1217, 96
      %v2014 = vpop.permute.xlu0 %2013
      %2015 = vrot.lane.b32.xlu0 %v1218, 96
      %v2016 = vpop.permute.xlu0 %2015
      %2017 = vrot.lane.b32.xlu0 %v1219, 96
      %v2018 = vpop.permute.xlu0 %2017
      %2019 = vrot.lane.b32.xlu0 %v1220, 96
      %v2020 = vpop.permute.xlu0 %2019
      %2085 = vrot.lane.b32.xlu0 %v1221, 112
      %v2086 = vpop.permute.xlu0 %2085
      %2087 = vrot.lane.b32.xlu0 %v1222, 112
      %v2088 = vpop.permute.xlu0 %2087
      %2089 = vrot.lane.b32.xlu0 %v1223, 112
      %v2090 = vpop.permute.xlu0 %2089
      %2091 = vrot.lane.b32.xlu0 %v1224, 112
      %v2092 = vpop.permute.xlu0 %2091
      %2093 = vrot.lane.b32.xlu0 %v1225, 112
      %v2094 = vpop.permute.xlu0 %2093
      %2095 = vrot.lane.b32.xlu0 %v1226, 112
      %v2096 = vpop.permute.xlu0 %2095
      %2097 = vrot.lane.b32.xlu0 %v1227, 112
      %v2098 = vpop.permute.xlu0 %2097
      %2099 = vrot.lane.b32.xlu0 %v1228, 112
      %v2100 = vpop.permute.xlu0 %2099
      %2101 = vrot.lane.b32.xlu0 %v1229, 112
      %v2102 = vpop.permute.xlu0 %2101
      %2103 = vrot.lane.b32.xlu0 %v1230, 112
      %v2104 = vpop.permute.xlu0 %2103
      %2105 = vrot.lane.b32.xlu0 %v1231, 112
      %v2106 = vpop.permute.xlu0 %2105
      %2107 = vrot.lane.b32.xlu0 %v1232, 112
      %v2108 = vpop.permute.xlu0 %2107
      %2109 = vrot.lane.b32.xlu0 %v1233, 112
      %v2110 = vpop.permute.xlu0 %2109
      %2111 = vrot.lane.b32.xlu0 %v1234, 112
      %v2112 = vpop.permute.xlu0 %2111
      %2113 = vrot.lane.b32.xlu0 %v1235, 112
      %v2114 = vpop.permute.xlu0 %2113
      %2115 = vrot.lane.b32.xlu0 %v1236, 112
      %v2116 = vpop.permute.xlu0 %2115
      %2117 = vrot.lane.b32.xlu0 %v1237, 112
      %v2118 = vpop.permute.xlu0 %2117
      %2119 = vrot.lane.b32.xlu0 %v1238, 112
      %v2120 = vpop.permute.xlu0 %2119
      %2121 = vrot.lane.b32.xlu0 %v1239, 112
      %v2122 = vpop.permute.xlu0 %2121
      %2123 = vrot.lane.b32.xlu0 %v1240, 112
      %v2124 = vpop.permute.xlu0 %2123
      %2125 = vrot.lane.b32.xlu0 %v1241, 112
      %v2126 = vpop.permute.xlu0 %2125
      %2127 = vrot.lane.b32.xlu0 %v1242, 112
      %v2128 = vpop.permute.xlu0 %2127
      %2129 = vrot.lane.b32.xlu0 %v1243, 112
      %v2130 = vpop.permute.xlu0 %2129
      %2131 = vrot.lane.b32.xlu0 %v1244, 112
      %v2132 = vpop.permute.xlu0 %2131
      %2133 = vrot.lane.b32.xlu0 %v1245, 112
      %v2134 = vpop.permute.xlu0 %2133
      %2135 = vrot.lane.b32.xlu0 %v1246, 112
      %v2136 = vpop.permute.xlu0 %2135
      %2137 = vrot.lane.b32.xlu0 %v1247, 112
      %v2138 = vpop.permute.xlu0 %2137
      %2139 = vrot.lane.b32.xlu0 %v1248, 112
      %v2140 = vpop.permute.xlu0 %2139
      %2141 = vrot.lane.b32.xlu0 %v1249, 112
      %v2142 = vpop.permute.xlu0 %2141
      %2143 = vrot.lane.b32.xlu0 %v1250, 112
      %v2144 = vpop.permute.xlu0 %2143
      %2145 = vrot.lane.b32.xlu0 %v1251, 112
      %v2146 = vpop.permute.xlu0 %2145
      %2147 = vrot.lane.b32.xlu0 %v1252, 112
      %v2148 = vpop.permute.xlu0 %2147
      %v2181 = vsel %vm907, %v996, %v1318
      %v2182 = vsel %vm907, %v997, %v1320
      %v2183 = vsel %vm907, %v998, %v1322
      %v2184 = vsel %vm907, %v999, %v1324
      %v2185 = vsel %vm907, %v1000, %v1326
      %v2186 = vsel %vm907, %v1001, %v1328
      %v2187 = vsel %vm907, %v1002, %v1330
      %v2188 = vsel %vm907, %v1003, %v1332
      %v2189 = vsel %vm907, %v1004, %v1334
      %v2190 = vsel %vm907, %v1005, %v1336
      %v2191 = vsel %vm907, %v1006, %v1338
      %v2192 = vsel %vm907, %v1007, %v1340
      %v2193 = vsel %vm907, %v1008, %v1342
      %v2194 = vsel %vm907, %v1009, %v1344
      %v2195 = vsel %vm907, %v1010, %v1346
      %v2196 = vsel %vm907, %v1011, %v1348
      %v2197 = vsel %vm907, %v1012, %v1350
      %v2198 = vsel %vm907, %v1013, %v1352
      %v2199 = vsel %vm907, %v1014, %v1354
      %v2200 = vsel %vm907, %v1015, %v1356
      %v2201 = vsel %vm907, %v1016, %v1358
      %v2202 = vsel %vm907, %v1017, %v1360
      %v2203 = vsel %vm907, %v1018, %v1362
      %v2204 = vsel %vm907, %v1019, %v1364
      %v2205 = vsel %vm907, %v1020, %v1366
      %v2206 = vsel %vm907, %v1021, %v1368
      %v2207 = vsel %vm907, %v1022, %v1370
      %v2208 = vsel %vm907, %v1023, %v1372
      %v2209 = vsel %vm907, %v1024, %v1374
      %v2210 = vsel %vm907, %v1025, %v1376
      %v2211 = vsel %vm907, %v1026, %v1378
      %v2212 = vsel %vm907, %v1027, %v1380
      %vm2213 = vcmask 261120
      %v2214 = vsel %vm2213, %v2181, %v1446
      %v2215 = vsel %vm2213, %v2182, %v1448
      %v2216 = vsel %vm2213, %v2183, %v1450
      %v2217 = vsel %vm2213, %v2184, %v1452
      %v2218 = vsel %vm2213, %v2185, %v1454
      %v2219 = vsel %vm2213, %v2186, %v1456
      %v2220 = vsel %vm2213, %v2187, %v1458
      %v2221 = vsel %vm2213, %v2188, %v1460
      %v2222 = vsel %vm2213, %v2189, %v1462
      %v2223 = vsel %vm2213, %v2190, %v1464
      %v2224 = vsel %vm2213, %v2191, %v1466
      %v2225 = vsel %vm2213, %v2192, %v1468
      %v2226 = vsel %vm2213, %v2193, %v1470
      %v2227 = vsel %vm2213, %v2194, %v1472
      %v2228 = vsel %vm2213, %v2195, %v1474
      %v2229 = vsel %vm2213, %v2196, %v1476
      %v2230 = vsel %vm2213, %v2197, %v1478
      %v2231 = vsel %vm2213, %v2198, %v1480
      %v2232 = vsel %vm2213, %v2199, %v1482
      %v2233 = vsel %vm2213, %v2200, %v1484
      %v2234 = vsel %vm2213, %v2201, %v1486
      %v2235 = vsel %vm2213, %v2202, %v1488
      %v2236 = vsel %vm2213, %v2203, %v1490
      %v2237 = vsel %vm2213, %v2204, %v1492
      %v2238 = vsel %vm2213, %v2205, %v1494
      %v2239 = vsel %vm2213, %v2206, %v1496
      %v2240 = vsel %vm2213, %v2207, %v1498
      %v2241 = vsel %vm2213, %v2208, %v1500
      %v2242 = vsel %vm2213, %v2209, %v1502
      %v2243 = vsel %vm2213, %v2210, %v1504
      %v2244 = vsel %vm2213, %v2211, %v1506
      %v2245 = vsel %vm2213, %v2212, %v1508
      %vm2246 = vcmask 392192
      %v2247 = vsel %vm2246, %v2214, %v1574
      %v2248 = vsel %vm2246, %v2215, %v1576
      %v2249 = vsel %vm2246, %v2216, %v1578
      %v2250 = vsel %vm2246, %v2217, %v1580
      %v2251 = vsel %vm2246, %v2218, %v1582
      %v2252 = vsel %vm2246, %v2219, %v1584
      %v2253 = vsel %vm2246, %v2220, %v1586
      %v2254 = vsel %vm2246, %v2221, %v1588
      %v2255 = vsel %vm2246, %v2222, %v1590
      %v2256 = vsel %vm2246, %v2223, %v1592
      %v2257 = vsel %vm2246, %v2224, %v1594
      %v2258 = vsel %vm2246, %v2225, %v1596
      %v2259 = vsel %vm2246, %v2226, %v1598
      %v2260 = vsel %vm2246, %v2227, %v1600
      %v2261 = vsel %vm2246, %v2228, %v1602
      %v2262 = vsel %vm2246, %v2229, %v1604
      %v2263 = vsel %vm2246, %v2230, %v1606
      %v2264 = vsel %vm2246, %v2231, %v1608
      %v2265 = vsel %vm2246, %v2232, %v1610
      %v2266 = vsel %vm2246, %v2233, %v1612
      %v2267 = vsel %vm2246, %v2234, %v1614
      %v2268 = vsel %vm2246, %v2235, %v1616
      %v2269 = vsel %vm2246, %v2236, %v1618
      %v2270 = vsel %vm2246, %v2237, %v1620
      %v2271 = vsel %vm2246, %v2238, %v1622
      %v2272 = vsel %vm2246, %v2239, %v1624
      %v2273 = vsel %vm2246, %v2240, %v1626
      %v2274 = vsel %vm2246, %v2241, %v1628
      %v2275 = vsel %vm2246, %v2242, %v1630
      %v2276 = vsel %vm2246, %v2243, %v1632
      %v2277 = vsel %vm2246, %v2244, %v1634
      %v2278 = vsel %vm2246, %v2245, %v1636
      %vm2279 = vcmask 523264
      %v2280 = vsel %vm2279, %v2247, %v1702
      %v2281 = vsel %vm2279, %v2248, %v1704
      %v2282 = vsel %vm2279, %v2249, %v1706
      %v2283 = vsel %vm2279, %v2250, %v1708
      %v2284 = vsel %vm2279, %v2251, %v1710
      %v2285 = vsel %vm2279, %v2252, %v1712
      %v2286 = vsel %vm2279, %v2253, %v1714
      %v2287 = vsel %vm2279, %v2254, %v1716
      %v2288 = vsel %vm2279, %v2255, %v1718
      %v2289 = vsel %vm2279, %v2256, %v1720
      %v2290 = vsel %vm2279, %v2257, %v1722
      %v2291 = vsel %vm2279, %v2258, %v1724
      %v2292 = vsel %vm2279, %v2259, %v1726
      %v2293 = vsel %vm2279, %v2260, %v1728
      %v2294 = vsel %vm2279, %v2261, %v1730
      %v2295 = vsel %vm2279, %v2262, %v1732
      %v2296 = vsel %vm2279, %v2263, %v1734
      %v2297 = vsel %vm2279, %v2264, %v1736
      %v2298 = vsel %vm2279, %v2265, %v1738
      %v2299 = vsel %vm2279, %v2266, %v1740
      %v2300 = vsel %vm2279, %v2267, %v1742
      %v2301 = vsel %vm2279, %v2268, %v1744
      %v2302 = vsel %vm2279, %v2269, %v1746
      %v2303 = vsel %vm2279, %v2270, %v1748
      %v2304 = vsel %vm2279, %v2271, %v1750
      %v2305 = vsel %vm2279, %v2272, %v1752
      %v2306 = vsel %vm2279, %v2273, %v1754
      %v2307 = vsel %vm2279, %v2274, %v1756
      %v2308 = vsel %vm2279, %v2275, %v1758
      %v2309 = vsel %vm2279, %v2276, %v1760
      %v2310 = vsel %vm2279, %v2277, %v1762
      %v2311 = vsel %vm2279, %v2278, %v1764
      %vm2312 = vcmask 654336
      %v2313 = vsel %vm2312, %v2280, %v1830
      %v2314 = vsel %vm2312, %v2281, %v1832
      %v2315 = vsel %vm2312, %v2282, %v1834
      %v2316 = vsel %vm2312, %v2283, %v1836
      %v2317 = vsel %vm2312, %v2284, %v1838
      %v2318 = vsel %vm2312, %v2285, %v1840
      %v2319 = vsel %vm2312, %v2286, %v1842
      %v2320 = vsel %vm2312, %v2287, %v1844
      %v2321 = vsel %vm2312, %v2288, %v1846
      %v2322 = vsel %vm2312, %v2289, %v1848
      %v2323 = vsel %vm2312, %v2290, %v1850
      %v2324 = vsel %vm2312, %v2291, %v1852
      %v2325 = vsel %vm2312, %v2292, %v1854
      %v2326 = vsel %vm2312, %v2293, %v1856
      %v2327 = vsel %vm2312, %v2294, %v1858
      %v2328 = vsel %vm2312, %v2295, %v1860
      %v2329 = vsel %vm2312, %v2296, %v1862
      %v2330 = vsel %vm2312, %v2297, %v1864
      %v2331 = vsel %vm2312, %v2298, %v1866
      %v2332 = vsel %vm2312, %v2299, %v1868
      %v2333 = vsel %vm2312, %v2300, %v1870
      %v2334 = vsel %vm2312, %v2301, %v1872
      %v2335 = vsel %vm2312, %v2302, %v1874
      %v2336 = vsel %vm2312, %v2303, %v1876
      %v2337 = vsel %vm2312, %v2304, %v1878
      %v2338 = vsel %vm2312, %v2305, %v1880
      %v2339 = vsel %vm2312, %v2306, %v1882
      %v2340 = vsel %vm2312, %v2307, %v1884
      %v2341 = vsel %vm2312, %v2308, %v1886
      %v2342 = vsel %vm2312, %v2309, %v1888
      %v2343 = vsel %vm2312, %v2310, %v1890
      %v2344 = vsel %vm2312, %v2311, %v1892
      %vm2345 = vcmask 785408
      %v2346 = vsel %vm2345, %v2313, %v1958
      %v2347 = vsel %vm2345, %v2314, %v1960
      %v2348 = vsel %vm2345, %v2315, %v1962
      %v2349 = vsel %vm2345, %v2316, %v1964
      %v2350 = vsel %vm2345, %v2317, %v1966
      %v2351 = vsel %vm2345, %v2318, %v1968
      %v2352 = vsel %vm2345, %v2319, %v1970
      %v2353 = vsel %vm2345, %v2320, %v1972
      %v2354 = vsel %vm2345, %v2321, %v1974
      %v2355 = vsel %vm2345, %v2322, %v1976
      %v2356 = vsel %vm2345, %v2323, %v1978
      %v2357 = vsel %vm2345, %v2324, %v1980
      %v2358 = vsel %vm2345, %v2325, %v1982
      %v2359 = vsel %vm2345, %v2326, %v1984
      %v2360 = vsel %vm2345, %v2327, %v1986
      %v2361 = vsel %vm2345, %v2328, %v1988
      %v2362 = vsel %vm2345, %v2329, %v1990
      %v2363 = vsel %vm2345, %v2330, %v1992
      %v2364 = vsel %vm2345, %v2331, %v1994
      %v2365 = vsel %vm2345, %v2332, %v1996
      %v2366 = vsel %vm2345, %v2333, %v1998
      %v2367 = vsel %vm2345, %v2334, %v2000
      %v2368 = vsel %vm2345, %v2335, %v2002
      %v2369 = vsel %vm2345, %v2336, %v2004
      %v2370 = vsel %vm2345, %v2337, %v2006
      %v2371 = vsel %vm2345, %v2338, %v2008
      %v2372 = vsel %vm2345, %v2339, %v2010
      %v2373 = vsel %vm2345, %v2340, %v2012
      %v2374 = vsel %vm2345, %v2341, %v2014
      %v2375 = vsel %vm2345, %v2342, %v2016
      %v2376 = vsel %vm2345, %v2343, %v2018
      %v2377 = vsel %vm2345, %v2344, %v2020
      %vm2378 = vcmask 916480
      %v2379 = vsel %vm2378, %v2346, %v2086
      %v2380 = vsel %vm2378, %v2347, %v2088
      %v2381 = vsel %vm2378, %v2348, %v2090
      %v2382 = vsel %vm2378, %v2349, %v2092
      %v2383 = vsel %vm2378, %v2350, %v2094
      %v2384 = vsel %vm2378, %v2351, %v2096
      %v2385 = vsel %vm2378, %v2352, %v2098
      %v2386 = vsel %vm2378, %v2353, %v2100
      %v2387 = vsel %vm2378, %v2354, %v2102
      %v2388 = vsel %vm2378, %v2355, %v2104
      %v2389 = vsel %vm2378, %v2356, %v2106
      %v2390 = vsel %vm2378, %v2357, %v2108
      %v2391 = vsel %vm2378, %v2358, %v2110
      %v2392 = vsel %vm2378, %v2359, %v2112
      %v2393 = vsel %vm2378, %v2360, %v2114
      %v2394 = vsel %vm2378, %v2361, %v2116
      %v2395 = vsel %vm2378, %v2362, %v2118
      %v2396 = vsel %vm2378, %v2363, %v2120
      %v2397 = vsel %vm2378, %v2364, %v2122
      %v2398 = vsel %vm2378, %v2365, %v2124
      %v2399 = vsel %vm2378, %v2366, %v2126
      %v2400 = vsel %vm2378, %v2367, %v2128
      %v2401 = vsel %vm2378, %v2368, %v2130
      %v2402 = vsel %vm2378, %v2369, %v2132
      %v2403 = vsel %vm2378, %v2370, %v2134
      %v2404 = vsel %vm2378, %v2371, %v2136
      %v2405 = vsel %vm2378, %v2372, %v2138
      %v2406 = vsel %vm2378, %v2373, %v2140
      %v2407 = vsel %vm2378, %v2374, %v2142
      %v2408 = vsel %vm2378, %v2375, %v2144
      %v2409 = vsel %vm2378, %v2376, %v2146
      %v2410 = vsel %vm2378, %v2377, %v2148
      %v2411 = vpack.c.bf16 %v2380, %v2379
      %v2412 = vpack.c.bf16 %v1254, %v1253
      %v2413 = vpack.c.bf16 %v2382, %v2381
      %v2414 = vpack.c.bf16 %v1256, %v1255
      %v2415 = vpack.c.bf16 %v2384, %v2383
      %v2416 = vpack.c.bf16 %v1258, %v1257
      %v2417 = vpack.c.bf16 %v2386, %v2385
      %v2418 = vpack.c.bf16 %v1260, %v1259
      %v2419 = vpack.c.bf16 %v2388, %v2387
      %v2420 = vpack.c.bf16 %v1262, %v1261
      %v2421 = vpack.c.bf16 %v2390, %v2389
      %v2422 = vpack.c.bf16 %v1264, %v1263
      %v2423 = vpack.c.bf16 %v2392, %v2391
      %v2424 = vpack.c.bf16 %v1266, %v1265
      %v2425 = vpack.c.bf16 %v2394, %v2393
      %v2426 = vpack.c.bf16 %v1268, %v1267
      %v2427 = vpack.c.bf16 %v2396, %v2395
      %v2428 = vpack.c.bf16 %v1270, %v1269
      %v2429 = vpack.c.bf16 %v2398, %v2397
      %v2430 = vpack.c.bf16 %v1272, %v1271
      %v2431 = vpack.c.bf16 %v2400, %v2399
      %v2432 = vpack.c.bf16 %v1274, %v1273
      %v2433 = vpack.c.bf16 %v2402, %v2401
      %v2434 = vpack.c.bf16 %v1276, %v1275
      %v2435 = vpack.c.bf16 %v2404, %v2403
      %v2436 = vpack.c.bf16 %v1278, %v1277
      %v2437 = vpack.c.bf16 %v2406, %v2405
      %v2438 = vpack.c.bf16 %v1280, %v1279
      %v2439 = vpack.c.bf16 %v2408, %v2407
      %v2440 = vpack.c.bf16 %v1282, %v1281
      %v2441 = vpack.c.bf16 %v2410, %v2409
      %v2442 = vpack.c.bf16 %v1284, %v1283
      %v2443 = vld [vmem:[%s4] sm:$0xf]
      %v2444 = vld [vmem:[%s4 + $0x4] sm:$0xf]
      %v2445 = vld [vmem:[%s4 + $0x8] sm:$0xf]
      %v2446 = vld [vmem:[%s4 + $0xc] sm:$0xf]
      %v2447 = vld [vmem:[%s4 + $0x10] sm:$0xf]
      %v2448 = vld [vmem:[%s4 + $0x14] sm:$0xf]
      %v2449 = vld [vmem:[%s4 + $0x18] sm:$0xf]
      %v2450 = vld [vmem:[%s4 + $0x1c] sm:$0xf]
      %v2451 = vld [vmem:[%s4 + $0x20] sm:$0xf]
      %v2452 = vld [vmem:[%s4 + $0x24] sm:$0xf]
      %v2453 = vld [vmem:[%s4 + $0x28] sm:$0xf]
      %v2454 = vld [vmem:[%s4 + $0x2c] sm:$0xf]
      %v2455 = vld [vmem:[%s4 + $0x30] sm:$0xf]
      %v2456 = vld [vmem:[%s4 + $0x34] sm:$0xf]
      %v2457 = vld [vmem:[%s4 + $0x38] sm:$0xf]
      %v2458 = vld [vmem:[%s4 + $0x3c] sm:$0xf]
      %v2459 = vld [vmem:[%s4 + $0x40] sm:$0xf]
      %v2460 = vld [vmem:[%s4 + $0x44] sm:$0xf]
      %v2461 = vld [vmem:[%s5] sm:$0x1]
      %v2463 = vlaneseq
      %v2464 = vshrl.u32 %v2463, 7
      %v2465 = vsub.s32 0, %v2464
      %v2466 = vrot.slane %v2461, %v2465
      %v2486 = vunpack.c.l.b16 %v2443
      %v2487 = vunpack.c.l.b16 %v2444
      %v2488 = vunpack.c.l.b16 %v2445
      %v2489 = vunpack.c.l.b16 %v2446
      %v2490 = vunpack.c.l.b16 %v2447
      %v2491 = vunpack.c.l.b16 %v2448
      %v2492 = vunpack.c.l.b16 %v2449
      %v2493 = vunpack.c.l.b16 %v2450
      %v2494 = vunpack.c.l.b16 %v2451
      %v2495 = vunpack.c.l.b16 %v2452
      %v2496 = vunpack.c.l.b16 %v2453
      %v2497 = vunpack.c.l.b16 %v2454
      %v2498 = vunpack.c.l.b16 %v2455
      %v2499 = vunpack.c.l.b16 %v2456
      %v2500 = vunpack.c.l.b16 %v2457
      %v2501 = vunpack.c.l.b16 %v2458
      %v2502 = vunpack.c.l.b16 %v2459
      %v2503 = vunpack.c.l.b16 %v2460
      %v2504 = vpack.c.b16 %v2487, %v2486
      %v2505 = vpack.c.b16 %v2489, %v2488
      %v2506 = vpack.c.b16 %v2491, %v2490
      %v2507 = vpack.c.b16 %v2493, %v2492
      %v2508 = vpack.c.b16 %v2495, %v2494
      %v2509 = vpack.c.b16 %v2497, %v2496
      %v2510 = vpack.c.b16 %v2499, %v2498
      %v2511 = vpack.c.b16 %v2501, %v2500
      %v2512 = vpack.c.b16 %v2503, %v2502
      %v2523 = vsel %vm907, %v2412, 0
      %v2526 = vsel %vm907, %v2414, 0
      %v2529 = vsel %vm907, %v2416, 0
      %v2532 = vsel %vm907, %v2418, 0
      %v2535 = vsel %vm907, %v2420, 0
      %v2538 = vsel %vm907, %v2422, 0
      %v2541 = vsel %vm907, %v2424, 0
      %v2544 = vsel %vm907, %v2426, 0
      %v2547 = vsel %vm907, %v2428, 0
      %v2550 = vsel %vm907, %v2430, 0
      %v2553 = vsel %vm907, %v2432, 0
      %v2556 = vsel %vm907, %v2434, 0
      %v2559 = vsel %vm907, %v2436, 0
      %v2562 = vsel %vm907, %v2438, 0
      %v2565 = vsel %vm907, %v2440, 0
      %v2568 = vsel %vm907, %v2442, 0
      %2570 = vmatprep.subr.bf16.mxu0 0
      %2571 = vmatpush1.bf16.msra.mxu0 %v2511
      %2572 = vmatprep.subr.bf16.mxu0 0
      %2573 = vmatpush1.bf16.msra.mxu0 %v2510
      %2574 = vmatprep.subr.bf16.mxu0 0
      %2575 = vmatpush1.bf16.msra.mxu0 %v2509
      %2576 = vmatprep.subr.bf16.mxu0 0
      %2577 = vmatpush1.bf16.msra.mxu0 %v2508
      %2578 = vmatprep.subr.bf16.mxu0 0
      %2579 = vmatpush1.bf16.msra.mxu0 %v2507
      %2580 = vmatprep.subr.bf16.mxu0 0
      %2581 = vmatpush1.bf16.msra.mxu0 %v2506
      %2582 = vmatprep.subr.bf16.mxu0 0
      %2583 = vmatpush1.bf16.msra.mxu0 %v2505
      %2584 = vmatprep.subr.bf16.mxu0 0
      %2585 = vmatpush1.bf16.msra.mxu0 %v2504
      %2586 = vmatprep.subr.bf16.mxu0 0
      %2587 = vmatpush2.bf16.msra.mxu0 0
      %2588 = vmatprep.subr.bf16.mxu0 0
      %2589 = vmatpush2.bf16.msra.mxu0 0
      %2590 = vmatprep.subr.bf16.mxu0 0
      %2591 = vmatpush2.bf16.msra.mxu0 0
      %2592 = vmatprep.subr.bf16.mxu0 0
      %2593 = vmatpush2.bf16.msra.mxu0 0
      %2594 = vmatprep.subr.bf16.mxu0 0
      %2595 = vmatpush2.bf16.msra.mxu0 0
      %2596 = vmatprep.subr.bf16.mxu0 0
      %2597 = vmatpush2.bf16.msra.mxu0 0
      %2598 = vmatprep.subr.bf16.mxu0 0
      %2599 = vmatpush2.bf16.msra.mxu0 0
      %2600 = vmatprep.subr.bf16.mxu0 0
      %2601 = vmatpush2.bf16.msra.mxu0 %v2512
      %2602 = vmatprep.mubr.bf16.mxu0 %v2523
      %2603 = vmatmul.mubr.bf16.gmra.mxu0 %v2411
      %v2604 = vpop.f32.mrf.mxu0
      %v2605 = vadd.f32 %v2466, %v2604
      %v2606 = vpop.f32.mrf.mxu0
      %v2607 = vpop.f32.mrf.mxu0
      %v2608 = vadd.f32 %v2466, %v2607
      %v2609 = vpop.f32.mrf.mxu0
      %2610 = vmatprep.mubr.bf16.mxu0 %v2526
      %2611 = vmatmul.mubr.bf16.gmra.mxu0 %v2413
      %v2612 = vpop.f32.mrf.mxu0
      %v2613 = vadd.f32 %v2466, %v2612
      %v2614 = vpop.f32.mrf.mxu0
      %v2615 = vpop.f32.mrf.mxu0
      %v2616 = vadd.f32 %v2466, %v2615
      %v2617 = vpop.f32.mrf.mxu0
      %2618 = vmatprep.mubr.bf16.mxu0 %v2529
      %2619 = vmatmul.mubr.bf16.gmra.mxu0 %v2415
      %v2620 = vpop.f32.mrf.mxu0
      %v2621 = vadd.f32 %v2466, %v2620
      %v2622 = vpop.f32.mrf.mxu0
      %v2623 = vpop.f32.mrf.mxu0
      %v2624 = vadd.f32 %v2466, %v2623
      %v2625 = vpop.f32.mrf.mxu0
      %2626 = vmatprep.mubr.bf16.mxu0 %v2532
      %2627 = vmatmul.mubr.bf16.gmra.mxu0 %v2417
      %v2628 = vpop.f32.mrf.mxu0
      %v2629 = vadd.f32 %v2466, %v2628
      %v2630 = vpop.f32.mrf.mxu0
      %v2631 = vpop.f32.mrf.mxu0
      %v2632 = vadd.f32 %v2466, %v2631
      %v2633 = vpop.f32.mrf.mxu0
      %2634 = vmatprep.mubr.bf16.mxu0 %v2535
      %2635 = vmatmul.mubr.bf16.gmra.mxu0 %v2419
      %v2636 = vpop.f32.mrf.mxu0
      %v2637 = vadd.f32 %v2466, %v2636
      %v2638 = vpop.f32.mrf.mxu0
      %v2639 = vpop.f32.mrf.mxu0
      %v2640 = vadd.f32 %v2466, %v2639
      %v2641 = vpop.f32.mrf.mxu0
      %2642 = vmatprep.mubr.bf16.mxu0 %v2538
      %2643 = vmatmul.mubr.bf16.gmra.mxu0 %v2421
      %v2644 = vpop.f32.mrf.mxu0
      %v2645 = vadd.f32 %v2466, %v2644
      %v2646 = vpop.f32.mrf.mxu0
      %v2647 = vpop.f32.mrf.mxu0
      %v2648 = vadd.f32 %v2466, %v2647
      %v2649 = vpop.f32.mrf.mxu0
      %2650 = vmatprep.mubr.bf16.mxu0 %v2541
      %2651 = vmatmul.mubr.bf16.gmra.mxu0 %v2423
      %v2652 = vpop.f32.mrf.mxu0
      %v2653 = vadd.f32 %v2466, %v2652
      %v2654 = vpop.f32.mrf.mxu0
      %v2655 = vpop.f32.mrf.mxu0
      %v2656 = vadd.f32 %v2466, %v2655
      %v2657 = vpop.f32.mrf.mxu0
      %2658 = vmatprep.mubr.bf16.mxu0 %v2544
      %2659 = vmatmul.mubr.bf16.gmra.mxu0 %v2425
      %v2660 = vpop.f32.mrf.mxu0
      %v2661 = vadd.f32 %v2466, %v2660
      %v2662 = vpop.f32.mrf.mxu0
      %v2663 = vpop.f32.mrf.mxu0
      %v2664 = vadd.f32 %v2466, %v2663
      %v2665 = vpop.f32.mrf.mxu0
      %2666 = vmatprep.mubr.bf16.mxu0 %v2547
      %2667 = vmatmul.mubr.bf16.gmra.mxu0 %v2427
      %v2668 = vpop.f32.mrf.mxu0
      %v2669 = vadd.f32 %v2466, %v2668
      %v2670 = vpop.f32.mrf.mxu0
      %v2671 = vpop.f32.mrf.mxu0
      %v2672 = vadd.f32 %v2466, %v2671
      %v2673 = vpop.f32.mrf.mxu0
      %2674 = vmatprep.mubr.bf16.mxu0 %v2550
      %2675 = vmatmul.mubr.bf16.gmra.mxu0 %v2429
      %v2676 = vpop.f32.mrf.mxu0
      %v2677 = vadd.f32 %v2466, %v2676
      %v2678 = vpop.f32.mrf.mxu0
      %v2679 = vpop.f32.mrf.mxu0
      %v2680 = vadd.f32 %v2466, %v2679
      %v2681 = vpop.f32.mrf.mxu0
      %2682 = vmatprep.mubr.bf16.mxu0 %v2553
      %2683 = vmatmul.mubr.bf16.gmra.mxu0 %v2431
      %v2684 = vpop.f32.mrf.mxu0
      %v2685 = vadd.f32 %v2466, %v2684
      %v2686 = vpop.f32.mrf.mxu0
      %v2687 = vpop.f32.mrf.mxu0
      %v2688 = vadd.f32 %v2466, %v2687
      %v2689 = vpop.f32.mrf.mxu0
      %2690 = vmatprep.mubr.bf16.mxu0 %v2556
      %2691 = vmatmul.mubr.bf16.gmra.mxu0 %v2433
      %v2692 = vpop.f32.mrf.mxu0
      %v2693 = vadd.f32 %v2466, %v2692
      %v2694 = vpop.f32.mrf.mxu0
      %v2695 = vpop.f32.mrf.mxu0
      %v2696 = vadd.f32 %v2466, %v2695
      %v2697 = vpop.f32.mrf.mxu0
      %2698 = vmatprep.mubr.bf16.mxu0 %v2559
      %2699 = vmatmul.mubr.bf16.gmra.mxu0 %v2435
      %v2700 = vpop.f32.mrf.mxu0
      %v2701 = vadd.f32 %v2466, %v2700
      %v2702 = vpop.f32.mrf.mxu0
      %v2703 = vpop.f32.mrf.mxu0
      %v2704 = vadd.f32 %v2466, %v2703
      %v2705 = vpop.f32.mrf.mxu0
      %2706 = vmatprep.mubr.bf16.mxu0 %v2562
      %2707 = vmatmul.mubr.bf16.gmra.mxu0 %v2437
      %v2708 = vpop.f32.mrf.mxu0
      %v2709 = vadd.f32 %v2466, %v2708
      %v2710 = vpop.f32.mrf.mxu0
      %v2711 = vpop.f32.mrf.mxu0
      %v2712 = vadd.f32 %v2466, %v2711
      %v2713 = vpop.f32.mrf.mxu0
      %2714 = vmatprep.mubr.bf16.mxu0 %v2565
      %2715 = vmatmul.mubr.bf16.gmra.mxu0 %v2439
      %v2716 = vpop.f32.mrf.mxu0
      %v2717 = vadd.f32 %v2466, %v2716
      %v2718 = vpop.f32.mrf.mxu0
      %v2719 = vpop.f32.mrf.mxu0
      %v2720 = vadd.f32 %v2466, %v2719
      %v2721 = vpop.f32.mrf.mxu0
      %2722 = vmatprep.mubr.bf16.mxu0 %v2568
      %2723 = vmatmul.mubr.bf16.gmra.mxu0 %v2441
      %v2724 = vpop.f32.mrf.mxu0
      %v2725 = vadd.f32 %v2466, %v2724
      %v2726 = vpop.f32.mrf.mxu0
      %v2727 = vpop.f32.mrf.mxu0
      %v2728 = vadd.f32 %v2466, %v2727
      %v2729 = vpop.f32.mrf.mxu0
      %2730 = vdwg.mxu0
      %v2731 = vxor.u32 %v2605, 2147483648
      %v2732 = vxor.u32 %v2608, 2147483648
      %v2733 = vxor.u32 %v2613, 2147483648
      %v2734 = vxor.u32 %v2616, 2147483648
      %v2735 = vxor.u32 %v2621, 2147483648
      %v2736 = vxor.u32 %v2624, 2147483648
      %v2737 = vxor.u32 %v2629, 2147483648
      %v2738 = vxor.u32 %v2632, 2147483648
      %v2739 = vxor.u32 %v2637, 2147483648
      %v2740 = vxor.u32 %v2640, 2147483648
      %v2741 = vxor.u32 %v2645, 2147483648
      %v2742 = vxor.u32 %v2648, 2147483648
      %v2743 = vxor.u32 %v2653, 2147483648
      %v2744 = vxor.u32 %v2656, 2147483648
      %v2745 = vxor.u32 %v2661, 2147483648
      %v2746 = vxor.u32 %v2664, 2147483648
      %v2747 = vxor.u32 %v2669, 2147483648
      %v2748 = vxor.u32 %v2672, 2147483648
      %v2749 = vxor.u32 %v2677, 2147483648
      %v2750 = vxor.u32 %v2680, 2147483648
      %v2751 = vxor.u32 %v2685, 2147483648
      %v2752 = vxor.u32 %v2688, 2147483648
      %v2753 = vxor.u32 %v2693, 2147483648
      %v2754 = vxor.u32 %v2696, 2147483648
      %v2755 = vxor.u32 %v2701, 2147483648
      %v2756 = vxor.u32 %v2704, 2147483648
      %v2757 = vxor.u32 %v2709, 2147483648
      %v2758 = vxor.u32 %v2712, 2147483648
      %v2759 = vxor.u32 %v2717, 2147483648
      %v2760 = vxor.u32 %v2720, 2147483648
      %v2761 = vxor.u32 %v2725, 2147483648
      %v2762 = vxor.u32 %v2728, 2147483648
      %v2763 = vmul.f32 %v2731, 1.442695
      %v2764 = vpow.pop %v2763
      %v2765 = vmul.f32 %v2732, 1.442695
      %v2766 = vpow.pop %v2765
      %v2767 = vmul.f32 %v2733, 1.442695
      %v2768 = vpow.pop %v2767
      %v2769 = vmul.f32 %v2734, 1.442695
      %v2770 = vpow.pop %v2769
      %v2771 = vmul.f32 %v2735, 1.442695
      %v2772 = vpow.pop %v2771
      %v2773 = vmul.f32 %v2736, 1.442695
      %v2774 = vpow.pop %v2773
      %v2775 = vmul.f32 %v2737, 1.442695
      %v2776 = vpow.pop %v2775
      %v2777 = vmul.f32 %v2738, 1.442695
      %v2778 = vpow.pop %v2777
      %v2779 = vmul.f32 %v2739, 1.442695
      %v2780 = vpow.pop %v2779
      %v2781 = vmul.f32 %v2740, 1.442695
      %v2782 = vpow.pop %v2781
      %v2783 = vmul.f32 %v2741, 1.442695
      %v2784 = vpow.pop %v2783
      %v2785 = vmul.f32 %v2742, 1.442695
      %v2786 = vpow.pop %v2785
      %v2787 = vmul.f32 %v2743, 1.442695
      %v2788 = vpow.pop %v2787
      %v2789 = vmul.f32 %v2744, 1.442695
      %v2790 = vpow.pop %v2789
      %v2791 = vmul.f32 %v2745, 1.442695
      %v2792 = vpow.pop %v2791
      %v2793 = vmul.f32 %v2746, 1.442695
      %v2794 = vpow.pop %v2793
      %v2795 = vmul.f32 %v2747, 1.442695
      %v2796 = vpow.pop %v2795
      %v2797 = vmul.f32 %v2748, 1.442695
      %v2798 = vpow.pop %v2797
      %v2799 = vmul.f32 %v2749, 1.442695
      %v2800 = vpow.pop %v2799
      %v2801 = vmul.f32 %v2750, 1.442695
      %v2802 = vpow.pop %v2801
      %v2803 = vmul.f32 %v2751, 1.442695
      %v2804 = vpow.pop %v2803
      %v2805 = vmul.f32 %v2752, 1.442695
      %v2806 = vpow.pop %v2805
      %v2807 = vmul.f32 %v2753, 1.442695
      %v2808 = vpow.pop %v2807
      %v2809 = vmul.f32 %v2754, 1.442695
      %v2810 = vpow.pop %v2809
      %v2811 = vmul.f32 %v2755, 1.442695
      %v2812 = vpow.pop %v2811
      %v2813 = vmul.f32 %v2756, 1.442695
      %v2814 = vpow.pop %v2813
      %v2815 = vmul.f32 %v2757, 1.442695
      %v2816 = vpow.pop %v2815
      %v2817 = vmul.f32 %v2758, 1.442695
      %v2818 = vpow.pop %v2817
      %v2819 = vmul.f32 %v2759, 1.442695
      %v2820 = vpow.pop %v2819
      %v2821 = vmul.f32 %v2760, 1.442695
      %v2822 = vpow.pop %v2821
      %v2823 = vmul.f32 %v2761, 1.442695
      %v2824 = vpow.pop %v2823
      %v2825 = vmul.f32 %v2762, 1.442695
      %v2826 = vpow.pop %v2825
      %v2827 = vadd.f32 %v2764, 1.0
      %v2828 = vadd.f32 %v2766, 1.0
      %v2829 = vadd.f32 %v2768, 1.0
      %v2830 = vadd.f32 %v2770, 1.0
      %v2831 = vadd.f32 %v2772, 1.0
      %v2832 = vadd.f32 %v2774, 1.0
      %v2833 = vadd.f32 %v2776, 1.0
      %v2834 = vadd.f32 %v2778, 1.0
      %v2835 = vadd.f32 %v2780, 1.0
      %v2836 = vadd.f32 %v2782, 1.0
      %v2837 = vadd.f32 %v2784, 1.0
      %v2838 = vadd.f32 %v2786, 1.0
      %v2839 = vadd.f32 %v2788, 1.0
      %v2840 = vadd.f32 %v2790, 1.0
      %v2841 = vadd.f32 %v2792, 1.0
      %v2842 = vadd.f32 %v2794, 1.0
      %v2843 = vadd.f32 %v2796, 1.0
      %v2844 = vadd.f32 %v2798, 1.0
      %v2845 = vadd.f32 %v2800, 1.0
      %v2846 = vadd.f32 %v2802, 1.0
      %v2847 = vadd.f32 %v2804, 1.0
      %v2848 = vadd.f32 %v2806, 1.0
      %v2849 = vadd.f32 %v2808, 1.0
      %v2850 = vadd.f32 %v2810, 1.0
      %v2851 = vadd.f32 %v2812, 1.0
      %v2852 = vadd.f32 %v2814, 1.0
      %v2853 = vadd.f32 %v2816, 1.0
      %v2854 = vadd.f32 %v2818, 1.0
      %v2855 = vadd.f32 %v2820, 1.0
      %v2856 = vadd.f32 %v2822, 1.0
      %v2857 = vadd.f32 %v2824, 1.0
      %v2858 = vadd.f32 %v2826, 1.0
      %v2859 = vrcp.pop %v2827
      %v2860 = vmul.f32 1.0, %v2859
      %v2861 = vrcp.pop %v2828
      %v2862 = vmul.f32 1.0, %v2861
      %v2863 = vrcp.pop %v2829
      %v2864 = vmul.f32 1.0, %v2863
      %v2865 = vrcp.pop %v2830
      %v2866 = vmul.f32 1.0, %v2865
      %v2867 = vrcp.pop %v2831
      %v2868 = vmul.f32 1.0, %v2867
      %v2869 = vrcp.pop %v2832
      %v2870 = vmul.f32 1.0, %v2869
      %v2871 = vrcp.pop %v2833
      %v2872 = vmul.f32 1.0, %v2871
      %v2873 = vrcp.pop %v2834
      %v2874 = vmul.f32 1.0, %v2873
      %v2875 = vrcp.pop %v2835
      %v2876 = vmul.f32 1.0, %v2875
      %v2877 = vrcp.pop %v2836
      %v2878 = vmul.f32 1.0, %v2877
      %v2879 = vrcp.pop %v2837
      %v2880 = vmul.f32 1.0, %v2879
      %v2881 = vrcp.pop %v2838
      %v2882 = vmul.f32 1.0, %v2881
      %v2883 = vrcp.pop %v2839
      %v2884 = vmul.f32 1.0, %v2883
      %v2885 = vrcp.pop %v2840
      %v2886 = vmul.f32 1.0, %v2885
      %v2887 = vrcp.pop %v2841
      %v2888 = vmul.f32 1.0, %v2887
      %v2889 = vrcp.pop %v2842
      %v2890 = vmul.f32 1.0, %v2889
      %v2891 = vrcp.pop %v2843
      %v2892 = vmul.f32 1.0, %v2891
      %v2893 = vrcp.pop %v2844
      %v2894 = vmul.f32 1.0, %v2893
      %v2895 = vrcp.pop %v2845
      %v2896 = vmul.f32 1.0, %v2895
      %v2897 = vrcp.pop %v2846
      %v2898 = vmul.f32 1.0, %v2897
      %v2899 = vrcp.pop %v2847
      %v2900 = vmul.f32 1.0, %v2899
      %v2901 = vrcp.pop %v2848
      %v2902 = vmul.f32 1.0, %v2901
      %v2903 = vrcp.pop %v2849
      %v2904 = vmul.f32 1.0, %v2903
      %v2905 = vrcp.pop %v2850
      %v2906 = vmul.f32 1.0, %v2905
      %v2907 = vrcp.pop %v2851
      %v2908 = vmul.f32 1.0, %v2907
      %v2909 = vrcp.pop %v2852
      %v2910 = vmul.f32 1.0, %v2909
      %v2911 = vrcp.pop %v2853
      %v2912 = vmul.f32 1.0, %v2911
      %v2913 = vrcp.pop %v2854
      %v2914 = vmul.f32 1.0, %v2913
      %v2915 = vrcp.pop %v2855
      %v2916 = vmul.f32 1.0, %v2915
      %v2917 = vrcp.pop %v2856
      %v2918 = vmul.f32 1.0, %v2917
      %v2919 = vrcp.pop %v2857
      %v2920 = vmul.f32 1.0, %v2919
      %v2921 = vrcp.pop %v2858
      %v2922 = vmul.f32 1.0, %v2921
      %2924 = vset.pattern.permute.xlu0 0
      %2925 = vperm.xlu0 %2924, %v2860
      %v2926 = vpop.permute.xlu0 %2925
      %2929 = vset.pattern.permute.xlu0 0
      %2930 = vperm.xlu0 %2929, %v2862
      %v2931 = vpop.permute.xlu0 %2930
      %2934 = vset.pattern.permute.xlu0 0
      %2935 = vperm.xlu0 %2934, %v2864
      %v2936 = vpop.permute.xlu0 %2935
      %2939 = vset.pattern.permute.xlu0 0
      %2940 = vperm.xlu0 %2939, %v2866
      %v2941 = vpop.permute.xlu0 %2940
      %2944 = vset.pattern.permute.xlu0 0
      %2945 = vperm.xlu0 %2944, %v2868
      %v2946 = vpop.permute.xlu0 %2945
      %2949 = vset.pattern.permute.xlu0 0
      %2950 = vperm.xlu0 %2949, %v2870
      %v2951 = vpop.permute.xlu0 %2950
      %2954 = vset.pattern.permute.xlu0 0
      %2955 = vperm.xlu0 %2954, %v2872
      %v2956 = vpop.permute.xlu0 %2955
      %2959 = vset.pattern.permute.xlu0 0
      %2960 = vperm.xlu0 %2959, %v2874
      %v2961 = vpop.permute.xlu0 %2960
      %2964 = vset.pattern.permute.xlu0 0
      %2965 = vperm.xlu0 %2964, %v2876
      %v2966 = vpop.permute.xlu0 %2965
      %2969 = vset.pattern.permute.xlu0 0
      %2970 = vperm.xlu0 %2969, %v2878
      %v2971 = vpop.permute.xlu0 %2970
      %2974 = vset.pattern.permute.xlu0 0
      %2975 = vperm.xlu0 %2974, %v2880
      %v2976 = vpop.permute.xlu0 %2975
      %2979 = vset.pattern.permute.xlu0 0
      %2980 = vperm.xlu0 %2979, %v2882
      %v2981 = vpop.permute.xlu0 %2980
      %2984 = vset.pattern.permute.xlu0 0
      %2985 = vperm.xlu0 %2984, %v2884
      %v2986 = vpop.permute.xlu0 %2985
      %2989 = vset.pattern.permute.xlu0 0
      %2990 = vperm.xlu0 %2989, %v2886
      %v2991 = vpop.permute.xlu0 %2990
      %2994 = vset.pattern.permute.xlu0 0
      %2995 = vperm.xlu0 %2994, %v2888
      %v2996 = vpop.permute.xlu0 %2995
      %2999 = vset.pattern.permute.xlu0 0
      %3000 = vperm.xlu0 %2999, %v2890
      %v3001 = vpop.permute.xlu0 %3000
      %3004 = vset.pattern.permute.xlu0 0
      %3005 = vperm.xlu0 %3004, %v2892
      %v3006 = vpop.permute.xlu0 %3005
      %3009 = vset.pattern.permute.xlu0 0
      %3010 = vperm.xlu0 %3009, %v2894
      %v3011 = vpop.permute.xlu0 %3010
      %3014 = vset.pattern.permute.xlu0 0
      %3015 = vperm.xlu0 %3014, %v2896
      %v3016 = vpop.permute.xlu0 %3015
      %3019 = vset.pattern.permute.xlu0 0
      %3020 = vperm.xlu0 %3019, %v2898
      %v3021 = vpop.permute.xlu0 %3020
      %3024 = vset.pattern.permute.xlu0 0
      %3025 = vperm.xlu0 %3024, %v2900
      %v3026 = vpop.permute.xlu0 %3025
      %3029 = vset.pattern.permute.xlu0 0
      %3030 = vperm.xlu0 %3029, %v2902
      %v3031 = vpop.permute.xlu0 %3030
      %3034 = vset.pattern.permute.xlu0 0
      %3035 = vperm.xlu0 %3034, %v2904
      %v3036 = vpop.permute.xlu0 %3035
      %3039 = vset.pattern.permute.xlu0 0
      %3040 = vperm.xlu0 %3039, %v2906
      %v3041 = vpop.permute.xlu0 %3040
      %3044 = vset.pattern.permute.xlu0 0
      %3045 = vperm.xlu0 %3044, %v2908
      %v3046 = vpop.permute.xlu0 %3045
      %3049 = vset.pattern.permute.xlu0 0
      %3050 = vperm.xlu0 %3049, %v2910
      %v3051 = vpop.permute.xlu0 %3050
      %3054 = vset.pattern.permute.xlu0 0
      %3055 = vperm.xlu0 %3054, %v2912
      %v3056 = vpop.permute.xlu0 %3055
      %3059 = vset.pattern.permute.xlu0 0
      %3060 = vperm.xlu0 %3059, %v2914
      %v3061 = vpop.permute.xlu0 %3060
      %3064 = vset.pattern.permute.xlu0 0
      %3065 = vperm.xlu0 %3064, %v2916
      %v3066 = vpop.permute.xlu0 %3065
      %3069 = vset.pattern.permute.xlu0 0
      %3070 = vperm.xlu0 %3069, %v2918
      %v3071 = vpop.permute.xlu0 %3070
      %3074 = vset.pattern.permute.xlu0 0
      %3075 = vperm.xlu0 %3074, %v2920
      %v3076 = vpop.permute.xlu0 %3075
      %3079 = vset.pattern.permute.xlu0 0
      %3080 = vperm.xlu0 %3079, %v2922
      %v3081 = vpop.permute.xlu0 %3080
      %v3083 = vmul.f32 %v996, %v2926
      %v3084 = vmul.f32 %v997, %v2931
      %v3085 = vmul.f32 %v998, %v2936
      %v3086 = vmul.f32 %v999, %v2941
      %v3087 = vmul.f32 %v1000, %v2946
      %v3088 = vmul.f32 %v1001, %v2951
      %v3089 = vmul.f32 %v1002, %v2956
      %v3090 = vmul.f32 %v1003, %v2961
      %v3091 = vmul.f32 %v1004, %v2966
      %v3092 = vmul.f32 %v1005, %v2971
      %v3093 = vmul.f32 %v1006, %v2976
      %v3094 = vmul.f32 %v1007, %v2981
      %v3095 = vmul.f32 %v1008, %v2986
      %v3096 = vmul.f32 %v1009, %v2991
      %v3097 = vmul.f32 %v1010, %v2996
      %v3098 = vmul.f32 %v1011, %v3001
      %v3099 = vmul.f32 %v1012, %v3006
      %v3100 = vmul.f32 %v1013, %v3011
      %v3101 = vmul.f32 %v1014, %v3016
      %v3102 = vmul.f32 %v1015, %v3021
      %v3103 = vmul.f32 %v1016, %v3026
      %v3104 = vmul.f32 %v1017, %v3031
      %v3105 = vmul.f32 %v1018, %v3036
      %v3106 = vmul.f32 %v1019, %v3041
      %v3107 = vmul.f32 %v1020, %v3046
      %v3108 = vmul.f32 %v1021, %v3051
      %v3109 = vmul.f32 %v1022, %v3056
      %v3110 = vmul.f32 %v1023, %v3061
      %v3111 = vmul.f32 %v1024, %v3066
      %v3112 = vmul.f32 %v1025, %v3071
      %v3113 = vmul.f32 %v1026, %v3076
      %v3114 = vmul.f32 %v1027, %v3081
      %3115 = vset.pattern.permute.xlu0 1
      %3116 = vperm.xlu0 %3115, %v2860
      %v3117 = vpop.permute.xlu0 %3116
      %3119 = vset.pattern.permute.xlu0 1
      %3120 = vperm.xlu0 %3119, %v2862
      %v3121 = vpop.permute.xlu0 %3120
      %3123 = vset.pattern.permute.xlu0 1
      %3124 = vperm.xlu0 %3123, %v2864
      %v3125 = vpop.permute.xlu0 %3124
      %3127 = vset.pattern.permute.xlu0 1
      %3128 = vperm.xlu0 %3127, %v2866
      %v3129 = vpop.permute.xlu0 %3128
      %3131 = vset.pattern.permute.xlu0 1
      %3132 = vperm.xlu0 %3131, %v2868
      %v3133 = vpop.permute.xlu0 %3132
      %3135 = vset.pattern.permute.xlu0 1
      %3136 = vperm.xlu0 %3135, %v2870
      %v3137 = vpop.permute.xlu0 %3136
      %3139 = vset.pattern.permute.xlu0 1
      %3140 = vperm.xlu0 %3139, %v2872
      %v3141 = vpop.permute.xlu0 %3140
      %3143 = vset.pattern.permute.xlu0 1
      %3144 = vperm.xlu0 %3143, %v2874
      %v3145 = vpop.permute.xlu0 %3144
      %3147 = vset.pattern.permute.xlu0 1
      %3148 = vperm.xlu0 %3147, %v2876
      %v3149 = vpop.permute.xlu0 %3148
      %3151 = vset.pattern.permute.xlu0 1
      %3152 = vperm.xlu0 %3151, %v2878
      %v3153 = vpop.permute.xlu0 %3152
      %3155 = vset.pattern.permute.xlu0 1
      %3156 = vperm.xlu0 %3155, %v2880
      %v3157 = vpop.permute.xlu0 %3156
      %3159 = vset.pattern.permute.xlu0 1
      %3160 = vperm.xlu0 %3159, %v2882
      %v3161 = vpop.permute.xlu0 %3160
      %3163 = vset.pattern.permute.xlu0 1
      %3164 = vperm.xlu0 %3163, %v2884
      %v3165 = vpop.permute.xlu0 %3164
      %3167 = vset.pattern.permute.xlu0 1
      %3168 = vperm.xlu0 %3167, %v2886
      %v3169 = vpop.permute.xlu0 %3168
      %3171 = vset.pattern.permute.xlu0 1
      %3172 = vperm.xlu0 %3171, %v2888
      %v3173 = vpop.permute.xlu0 %3172
      %3175 = vset.pattern.permute.xlu0 1
      %3176 = vperm.xlu0 %3175, %v2890
      %v3177 = vpop.permute.xlu0 %3176
      %3179 = vset.pattern.permute.xlu0 1
      %3180 = vperm.xlu0 %3179, %v2892
      %v3181 = vpop.permute.xlu0 %3180
      %3183 = vset.pattern.permute.xlu0 1
      %3184 = vperm.xlu0 %3183, %v2894
      %v3185 = vpop.permute.xlu0 %3184
      %3187 = vset.pattern.permute.xlu0 1
      %3188 = vperm.xlu0 %3187, %v2896
      %v3189 = vpop.permute.xlu0 %3188
      %3191 = vset.pattern.permute.xlu0 1
      %3192 = vperm.xlu0 %3191, %v2898
      %v3193 = vpop.permute.xlu0 %3192
      %3195 = vset.pattern.permute.xlu0 1
      %3196 = vperm.xlu0 %3195, %v2900
      %v3197 = vpop.permute.xlu0 %3196
      %3199 = vset.pattern.permute.xlu0 1
      %3200 = vperm.xlu0 %3199, %v2902
      %v3201 = vpop.permute.xlu0 %3200
      %3203 = vset.pattern.permute.xlu0 1
      %3204 = vperm.xlu0 %3203, %v2904
      %v3205 = vpop.permute.xlu0 %3204
      %3207 = vset.pattern.permute.xlu0 1
      %3208 = vperm.xlu0 %3207, %v2906
      %v3209 = vpop.permute.xlu0 %3208
      %3211 = vset.pattern.permute.xlu0 1
      %3212 = vperm.xlu0 %3211, %v2908
      %v3213 = vpop.permute.xlu0 %3212
      %3215 = vset.pattern.permute.xlu0 1
      %3216 = vperm.xlu0 %3215, %v2910
      %v3217 = vpop.permute.xlu0 %3216
      %3219 = vset.pattern.permute.xlu0 1
      %3220 = vperm.xlu0 %3219, %v2912
      %v3221 = vpop.permute.xlu0 %3220
      %3223 = vset.pattern.permute.xlu0 1
      %3224 = vperm.xlu0 %3223, %v2914
      %v3225 = vpop.permute.xlu0 %3224
      %3227 = vset.pattern.permute.xlu0 1
      %3228 = vperm.xlu0 %3227, %v2916
      %v3229 = vpop.permute.xlu0 %3228
      %3231 = vset.pattern.permute.xlu0 1
      %3232 = vperm.xlu0 %3231, %v2918
      %v3233 = vpop.permute.xlu0 %3232
      %3235 = vset.pattern.permute.xlu0 1
      %3236 = vperm.xlu0 %3235, %v2920
      %v3237 = vpop.permute.xlu0 %3236
      %3239 = vset.pattern.permute.xlu0 1
      %3240 = vperm.xlu0 %3239, %v2922
      %v3241 = vpop.permute.xlu0 %3240
      %v3243 = vmul.f32 %v1028, %v3117
      %v3244 = vmul.f32 %v1029, %v3121
      %v3245 = vmul.f32 %v1030, %v3125
      %v3246 = vmul.f32 %v1031, %v3129
      %v3247 = vmul.f32 %v1032, %v3133
      %v3248 = vmul.f32 %v1033, %v3137
      %v3249 = vmul.f32 %v1034, %v3141
      %v3250 = vmul.f32 %v1035, %v3145
      %v3251 = vmul.f32 %v1036, %v3149
      %v3252 = vmul.f32 %v1037, %v3153
      %v3253 = vmul.f32 %v1038, %v3157
      %v3254 = vmul.f32 %v1039, %v3161
      %v3255 = vmul.f32 %v1040, %v3165
      %v3256 = vmul.f32 %v1041, %v3169
      %v3257 = vmul.f32 %v1042, %v3173
      %v3258 = vmul.f32 %v1043, %v3177
      %v3259 = vmul.f32 %v1044, %v3181
      %v3260 = vmul.f32 %v1045, %v3185
      %v3261 = vmul.f32 %v1046, %v3189
      %v3262 = vmul.f32 %v1047, %v3193
      %v3263 = vmul.f32 %v1048, %v3197
      %v3264 = vmul.f32 %v1049, %v3201
      %v3265 = vmul.f32 %v1050, %v3205
      %v3266 = vmul.f32 %v1051, %v3209
      %v3267 = vmul.f32 %v1052, %v3213
      %v3268 = vmul.f32 %v1053, %v3217
      %v3269 = vmul.f32 %v1054, %v3221
      %v3270 = vmul.f32 %v1055, %v3225
      %v3271 = vmul.f32 %v1056, %v3229
      %v3272 = vmul.f32 %v1057, %v3233
      %v3273 = vmul.f32 %v1058, %v3237
      %v3274 = vmul.f32 %v1059, %v3241
      %3275 = vset.pattern.permute.xlu0 2
      %3276 = vperm.xlu0 %3275, %v2860
      %v3277 = vpop.permute.xlu0 %3276
      %3279 = vset.pattern.permute.xlu0 2
      %3280 = vperm.xlu0 %3279, %v2862
      %v3281 = vpop.permute.xlu0 %3280
      %3283 = vset.pattern.permute.xlu0 2
      %3284 = vperm.xlu0 %3283, %v2864
      %v3285 = vpop.permute.xlu0 %3284
      %3287 = vset.pattern.permute.xlu0 2
      %3288 = vperm.xlu0 %3287, %v2866
      %v3289 = vpop.permute.xlu0 %3288
      %3291 = vset.pattern.permute.xlu0 2
      %3292 = vperm.xlu0 %3291, %v2868
      %v3293 = vpop.permute.xlu0 %3292
      %3295 = vset.pattern.permute.xlu0 2
      %3296 = vperm.xlu0 %3295, %v2870
      %v3297 = vpop.permute.xlu0 %3296
      %3299 = vset.pattern.permute.xlu0 2
      %3300 = vperm.xlu0 %3299, %v2872
      %v3301 = vpop.permute.xlu0 %3300
      %3303 = vset.pattern.permute.xlu0 2
      %3304 = vperm.xlu0 %3303, %v2874
      %v3305 = vpop.permute.xlu0 %3304
      %3307 = vset.pattern.permute.xlu0 2
      %3308 = vperm.xlu0 %3307, %v2876
      %v3309 = vpop.permute.xlu0 %3308
      %3311 = vset.pattern.permute.xlu0 2
      %3312 = vperm.xlu0 %3311, %v2878
      %v3313 = vpop.permute.xlu0 %3312
      %3315 = vset.pattern.permute.xlu0 2
      %3316 = vperm.xlu0 %3315, %v2880
      %v3317 = vpop.permute.xlu0 %3316
      %3319 = vset.pattern.permute.xlu0 2
      %3320 = vperm.xlu0 %3319, %v2882
      %v3321 = vpop.permute.xlu0 %3320
      %3323 = vset.pattern.permute.xlu0 2
      %3324 = vperm.xlu0 %3323, %v2884
      %v3325 = vpop.permute.xlu0 %3324
      %3327 = vset.pattern.permute.xlu0 2
      %3328 = vperm.xlu0 %3327, %v2886
      %v3329 = vpop.permute.xlu0 %3328
      %3331 = vset.pattern.permute.xlu0 2
      %3332 = vperm.xlu0 %3331, %v2888
      %v3333 = vpop.permute.xlu0 %3332
      %3335 = vset.pattern.permute.xlu0 2
      %3336 = vperm.xlu0 %3335, %v2890
      %v3337 = vpop.permute.xlu0 %3336
      %3339 = vset.pattern.permute.xlu0 2
      %3340 = vperm.xlu0 %3339, %v2892
      %v3341 = vpop.permute.xlu0 %3340
      %3343 = vset.pattern.permute.xlu0 2
      %3344 = vperm.xlu0 %3343, %v2894
      %v3345 = vpop.permute.xlu0 %3344
      %3347 = vset.pattern.permute.xlu0 2
      %3348 = vperm.xlu0 %3347, %v2896
      %v3349 = vpop.permute.xlu0 %3348
      %3351 = vset.pattern.permute.xlu0 2
      %3352 = vperm.xlu0 %3351, %v2898
      %v3353 = vpop.permute.xlu0 %3352
      %3355 = vset.pattern.permute.xlu0 2
      %3356 = vperm.xlu0 %3355, %v2900
      %v3357 = vpop.permute.xlu0 %3356
      %3359 = vset.pattern.permute.xlu0 2
      %3360 = vperm.xlu0 %3359, %v2902
      %v3361 = vpop.permute.xlu0 %3360
      %3363 = vset.pattern.permute.xlu0 2
      %3364 = vperm.xlu0 %3363, %v2904
      %v3365 = vpop.permute.xlu0 %3364
      %3367 = vset.pattern.permute.xlu0 2
      %3368 = vperm.xlu0 %3367, %v2906
      %v3369 = vpop.permute.xlu0 %3368
      %3371 = vset.pattern.permute.xlu0 2
      %3372 = vperm.xlu0 %3371, %v2908
      %v3373 = vpop.permute.xlu0 %3372
      %3375 = vset.pattern.permute.xlu0 2
      %3376 = vperm.xlu0 %3375, %v2910
      %v3377 = vpop.permute.xlu0 %3376
      %3379 = vset.pattern.permute.xlu0 2
      %3380 = vperm.xlu0 %3379, %v2912
      %v3381 = vpop.permute.xlu0 %3380
      %3383 = vset.pattern.permute.xlu0 2
      %3384 = vperm.xlu0 %3383, %v2914
      %v3385 = vpop.permute.xlu0 %3384
      %3387 = vset.pattern.permute.xlu0 2
      %3388 = vperm.xlu0 %3387, %v2916
      %v3389 = vpop.permute.xlu0 %3388
      %3391 = vset.pattern.permute.xlu0 2
      %3392 = vperm.xlu0 %3391, %v2918
      %v3393 = vpop.permute.xlu0 %3392
      %3395 = vset.pattern.permute.xlu0 2
      %3396 = vperm.xlu0 %3395, %v2920
      %v3397 = vpop.permute.xlu0 %3396
      %3399 = vset.pattern.permute.xlu0 2
      %3400 = vperm.xlu0 %3399, %v2922
      %v3401 = vpop.permute.xlu0 %3400
      %v3403 = vmul.f32 %v1060, %v3277
      %v3404 = vmul.f32 %v1061, %v3281
      %v3405 = vmul.f32 %v1062, %v3285
      %v3406 = vmul.f32 %v1063, %v3289
      %v3407 = vmul.f32 %v1064, %v3293
      %v3408 = vmul.f32 %v1065, %v3297
      %v3409 = vmul.f32 %v1066, %v3301
      %v3410 = vmul.f32 %v1067, %v3305
      %v3411 = vmul.f32 %v1068, %v3309
      %v3412 = vmul.f32 %v1069, %v3313
      %v3413 = vmul.f32 %v1070, %v3317
      %v3414 = vmul.f32 %v1071, %v3321
      %v3415 = vmul.f32 %v1072, %v3325
      %v3416 = vmul.f32 %v1073, %v3329
      %v3417 = vmul.f32 %v1074, %v3333
      %v3418 = vmul.f32 %v1075, %v3337
      %v3419 = vmul.f32 %v1076, %v3341
      %v3420 = vmul.f32 %v1077, %v3345
      %v3421 = vmul.f32 %v1078, %v3349
      %v3422 = vmul.f32 %v1079, %v3353
      %v3423 = vmul.f32 %v1080, %v3357
      %v3424 = vmul.f32 %v1081, %v3361
      %v3425 = vmul.f32 %v1082, %v3365
      %v3426 = vmul.f32 %v1083, %v3369
      %v3427 = vmul.f32 %v1084, %v3373
      %v3428 = vmul.f32 %v1085, %v3377
      %v3429 = vmul.f32 %v1086, %v3381
      %v3430 = vmul.f32 %v1087, %v3385
      %v3431 = vmul.f32 %v1088, %v3389
      %v3432 = vmul.f32 %v1089, %v3393
      %v3433 = vmul.f32 %v1090, %v3397
      %v3434 = vmul.f32 %v1091, %v3401
      %3435 = vset.pattern.permute.xlu0 3
      %3436 = vperm.xlu0 %3435, %v2860
      %v3437 = vpop.permute.xlu0 %3436
      %3439 = vset.pattern.permute.xlu0 3
      %3440 = vperm.xlu0 %3439, %v2862
      %v3441 = vpop.permute.xlu0 %3440
      %3443 = vset.pattern.permute.xlu0 3
      %3444 = vperm.xlu0 %3443, %v2864
      %v3445 = vpop.permute.xlu0 %3444
      %3447 = vset.pattern.permute.xlu0 3
      %3448 = vperm.xlu0 %3447, %v2866
      %v3449 = vpop.permute.xlu0 %3448
      %3451 = vset.pattern.permute.xlu0 3
      %3452 = vperm.xlu0 %3451, %v2868
      %v3453 = vpop.permute.xlu0 %3452
      %3455 = vset.pattern.permute.xlu0 3
      %3456 = vperm.xlu0 %3455, %v2870
      %v3457 = vpop.permute.xlu0 %3456
      %3459 = vset.pattern.permute.xlu0 3
      %3460 = vperm.xlu0 %3459, %v2872
      %v3461 = vpop.permute.xlu0 %3460
      %3463 = vset.pattern.permute.xlu0 3
      %3464 = vperm.xlu0 %3463, %v2874
      %v3465 = vpop.permute.xlu0 %3464
      %3467 = vset.pattern.permute.xlu0 3
      %3468 = vperm.xlu0 %3467, %v2876
      %v3469 = vpop.permute.xlu0 %3468
      %3471 = vset.pattern.permute.xlu0 3
      %3472 = vperm.xlu0 %3471, %v2878
      %v3473 = vpop.permute.xlu0 %3472
      %3475 = vset.pattern.permute.xlu0 3
      %3476 = vperm.xlu0 %3475, %v2880
      %v3477 = vpop.permute.xlu0 %3476
      %3479 = vset.pattern.permute.xlu0 3
      %3480 = vperm.xlu0 %3479, %v2882
      %v3481 = vpop.permute.xlu0 %3480
      %3483 = vset.pattern.permute.xlu0 3
      %3484 = vperm.xlu0 %3483, %v2884
      %v3485 = vpop.permute.xlu0 %3484
      %3487 = vset.pattern.permute.xlu0 3
      %3488 = vperm.xlu0 %3487, %v2886
      %v3489 = vpop.permute.xlu0 %3488
      %3491 = vset.pattern.permute.xlu0 3
      %3492 = vperm.xlu0 %3491, %v2888
      %v3493 = vpop.permute.xlu0 %3492
      %3495 = vset.pattern.permute.xlu0 3
      %3496 = vperm.xlu0 %3495, %v2890
      %v3497 = vpop.permute.xlu0 %3496
      %3499 = vset.pattern.permute.xlu0 3
      %3500 = vperm.xlu0 %3499, %v2892
      %v3501 = vpop.permute.xlu0 %3500
      %3503 = vset.pattern.permute.xlu0 3
      %3504 = vperm.xlu0 %3503, %v2894
      %v3505 = vpop.permute.xlu0 %3504
      %3507 = vset.pattern.permute.xlu0 3
      %3508 = vperm.xlu0 %3507, %v2896
      %v3509 = vpop.permute.xlu0 %3508
      %3511 = vset.pattern.permute.xlu0 3
      %3512 = vperm.xlu0 %3511, %v2898
      %v3513 = vpop.permute.xlu0 %3512
      %3515 = vset.pattern.permute.xlu0 3
      %3516 = vperm.xlu0 %3515, %v2900
      %v3517 = vpop.permute.xlu0 %3516
      %3519 = vset.pattern.permute.xlu0 3
      %3520 = vperm.xlu0 %3519, %v2902
      %v3521 = vpop.permute.xlu0 %3520
      %3523 = vset.pattern.permute.xlu0 3
      %3524 = vperm.xlu0 %3523, %v2904
      %v3525 = vpop.permute.xlu0 %3524
      %3527 = vset.pattern.permute.xlu0 3
      %3528 = vperm.xlu0 %3527, %v2906
      %v3529 = vpop.permute.xlu0 %3528
      %3531 = vset.pattern.permute.xlu0 3
      %3532 = vperm.xlu0 %3531, %v2908
      %v3533 = vpop.permute.xlu0 %3532
      %3535 = vset.pattern.permute.xlu0 3
      %3536 = vperm.xlu0 %3535, %v2910
      %v3537 = vpop.permute.xlu0 %3536
      %3539 = vset.pattern.permute.xlu0 3
      %3540 = vperm.xlu0 %3539, %v2912
      %v3541 = vpop.permute.xlu0 %3540
      %3543 = vset.pattern.permute.xlu0 3
      %3544 = vperm.xlu0 %3543, %v2914
      %v3545 = vpop.permute.xlu0 %3544
      %3547 = vset.pattern.permute.xlu0 3
      %3548 = vperm.xlu0 %3547, %v2916
      %v3549 = vpop.permute.xlu0 %3548
      %3551 = vset.pattern.permute.xlu0 3
      %3552 = vperm.xlu0 %3551, %v2918
      %v3553 = vpop.permute.xlu0 %3552
      %3555 = vset.pattern.permute.xlu0 3
      %3556 = vperm.xlu0 %3555, %v2920
      %v3557 = vpop.permute.xlu0 %3556
      %3559 = vset.pattern.permute.xlu0 3
      %3560 = vperm.xlu0 %3559, %v2922
      %v3561 = vpop.permute.xlu0 %3560
      %v3563 = vmul.f32 %v1092, %v3437
      %v3564 = vmul.f32 %v1093, %v3441
      %v3565 = vmul.f32 %v1094, %v3445
      %v3566 = vmul.f32 %v1095, %v3449
      %v3567 = vmul.f32 %v1096, %v3453
      %v3568 = vmul.f32 %v1097, %v3457
      %v3569 = vmul.f32 %v1098, %v3461
      %v3570 = vmul.f32 %v1099, %v3465
      %v3571 = vmul.f32 %v1100, %v3469
      %v3572 = vmul.f32 %v1101, %v3473
      %v3573 = vmul.f32 %v1102, %v3477
      %v3574 = vmul.f32 %v1103, %v3481
      %v3575 = vmul.f32 %v1104, %v3485
      %v3576 = vmul.f32 %v1105, %v3489
      %v3577 = vmul.f32 %v1106, %v3493
      %v3578 = vmul.f32 %v1107, %v3497
      %v3579 = vmul.f32 %v1108, %v3501
      %v3580 = vmul.f32 %v1109, %v3505
      %v3581 = vmul.f32 %v1110, %v3509
      %v3582 = vmul.f32 %v1111, %v3513
      %v3583 = vmul.f32 %v1112, %v3517
      %v3584 = vmul.f32 %v1113, %v3521
      %v3585 = vmul.f32 %v1114, %v3525
      %v3586 = vmul.f32 %v1115, %v3529
      %v3587 = vmul.f32 %v1116, %v3533
      %v3588 = vmul.f32 %v1117, %v3537
      %v3589 = vmul.f32 %v1118, %v3541
      %v3590 = vmul.f32 %v1119, %v3545
      %v3591 = vmul.f32 %v1120, %v3549
      %v3592 = vmul.f32 %v1121, %v3553
      %v3593 = vmul.f32 %v1122, %v3557
      %v3594 = vmul.f32 %v1123, %v3561
      %3595 = vset.pattern.permute.xlu0 4
      %3596 = vperm.xlu0 %3595, %v2860
      %v3597 = vpop.permute.xlu0 %3596
      %3599 = vset.pattern.permute.xlu0 4
      %3600 = vperm.xlu0 %3599, %v2862
      %v3601 = vpop.permute.xlu0 %3600
      %3603 = vset.pattern.permute.xlu0 4
      %3604 = vperm.xlu0 %3603, %v2864
      %v3605 = vpop.permute.xlu0 %3604
      %3607 = vset.pattern.permute.xlu0 4
      %3608 = vperm.xlu0 %3607, %v2866
      %v3609 = vpop.permute.xlu0 %3608
      %3611 = vset.pattern.permute.xlu0 4
      %3612 = vperm.xlu0 %3611, %v2868
      %v3613 = vpop.permute.xlu0 %3612
      %3615 = vset.pattern.permute.xlu0 4
      %3616 = vperm.xlu0 %3615, %v2870
      %v3617 = vpop.permute.xlu0 %3616
      %3619 = vset.pattern.permute.xlu0 4
      %3620 = vperm.xlu0 %3619, %v2872
      %v3621 = vpop.permute.xlu0 %3620
      %3623 = vset.pattern.permute.xlu0 4
      %3624 = vperm.xlu0 %3623, %v2874
      %v3625 = vpop.permute.xlu0 %3624
      %3627 = vset.pattern.permute.xlu0 4
      %3628 = vperm.xlu0 %3627, %v2876
      %v3629 = vpop.permute.xlu0 %3628
      %3631 = vset.pattern.permute.xlu0 4
      %3632 = vperm.xlu0 %3631, %v2878
      %v3633 = vpop.permute.xlu0 %3632
      %3635 = vset.pattern.permute.xlu0 4
      %3636 = vperm.xlu0 %3635, %v2880
      %v3637 = vpop.permute.xlu0 %3636
      %3639 = vset.pattern.permute.xlu0 4
      %3640 = vperm.xlu0 %3639, %v2882
      %v3641 = vpop.permute.xlu0 %3640
      %3643 = vset.pattern.permute.xlu0 4
      %3644 = vperm.xlu0 %3643, %v2884
      %v3645 = vpop.permute.xlu0 %3644
      %3647 = vset.pattern.permute.xlu0 4
      %3648 = vperm.xlu0 %3647, %v2886
      %v3649 = vpop.permute.xlu0 %3648
      %3651 = vset.pattern.permute.xlu0 4
      %3652 = vperm.xlu0 %3651, %v2888
      %v3653 = vpop.permute.xlu0 %3652
      %3655 = vset.pattern.permute.xlu0 4
      %3656 = vperm.xlu0 %3655, %v2890
      %v3657 = vpop.permute.xlu0 %3656
      %3659 = vset.pattern.permute.xlu0 4
      %3660 = vperm.xlu0 %3659, %v2892
      %v3661 = vpop.permute.xlu0 %3660
      %3663 = vset.pattern.permute.xlu0 4
      %3664 = vperm.xlu0 %3663, %v2894
      %v3665 = vpop.permute.xlu0 %3664
      %3667 = vset.pattern.permute.xlu0 4
      %3668 = vperm.xlu0 %3667, %v2896
      %v3669 = vpop.permute.xlu0 %3668
      %3671 = vset.pattern.permute.xlu0 4
      %3672 = vperm.xlu0 %3671, %v2898
      %v3673 = vpop.permute.xlu0 %3672
      %3675 = vset.pattern.permute.xlu0 4
      %3676 = vperm.xlu0 %3675, %v2900
      %v3677 = vpop.permute.xlu0 %3676
      %3679 = vset.pattern.permute.xlu0 4
      %3680 = vperm.xlu0 %3679, %v2902
      %v3681 = vpop.permute.xlu0 %3680
      %3683 = vset.pattern.permute.xlu0 4
      %3684 = vperm.xlu0 %3683, %v2904
      %v3685 = vpop.permute.xlu0 %3684
      %3687 = vset.pattern.permute.xlu0 4
      %3688 = vperm.xlu0 %3687, %v2906
      %v3689 = vpop.permute.xlu0 %3688
      %3691 = vset.pattern.permute.xlu0 4
      %3692 = vperm.xlu0 %3691, %v2908
      %v3693 = vpop.permute.xlu0 %3692
      %3695 = vset.pattern.permute.xlu0 4
      %3696 = vperm.xlu0 %3695, %v2910
      %v3697 = vpop.permute.xlu0 %3696
      %3699 = vset.pattern.permute.xlu0 4
      %3700 = vperm.xlu0 %3699, %v2912
      %v3701 = vpop.permute.xlu0 %3700
      %3703 = vset.pattern.permute.xlu0 4
      %3704 = vperm.xlu0 %3703, %v2914
      %v3705 = vpop.permute.xlu0 %3704
      %3707 = vset.pattern.permute.xlu0 4
      %3708 = vperm.xlu0 %3707, %v2916
      %v3709 = vpop.permute.xlu0 %3708
      %3711 = vset.pattern.permute.xlu0 4
      %3712 = vperm.xlu0 %3711, %v2918
      %v3713 = vpop.permute.xlu0 %3712
      %3715 = vset.pattern.permute.xlu0 4
      %3716 = vperm.xlu0 %3715, %v2920
      %v3717 = vpop.permute.xlu0 %3716
      %3719 = vset.pattern.permute.xlu0 4
      %3720 = vperm.xlu0 %3719, %v2922
      %v3721 = vpop.permute.xlu0 %3720
      %v3723 = vmul.f32 %v1124, %v3597
      %v3724 = vmul.f32 %v1125, %v3601
      %v3725 = vmul.f32 %v1126, %v3605
      %v3726 = vmul.f32 %v1127, %v3609
      %v3727 = vmul.f32 %v1128, %v3613
      %v3728 = vmul.f32 %v1129, %v3617
      %v3729 = vmul.f32 %v1130, %v3621
      %v3730 = vmul.f32 %v1131, %v3625
      %v3731 = vmul.f32 %v1132, %v3629
      %v3732 = vmul.f32 %v1133, %v3633
      %v3733 = vmul.f32 %v1134, %v3637
      %v3734 = vmul.f32 %v1135, %v3641
      %v3735 = vmul.f32 %v1136, %v3645
      %v3736 = vmul.f32 %v1137, %v3649
      %v3737 = vmul.f32 %v1138, %v3653
      %v3738 = vmul.f32 %v1139, %v3657
      %v3739 = vmul.f32 %v1140, %v3661
      %v3740 = vmul.f32 %v1141, %v3665
      %v3741 = vmul.f32 %v1142, %v3669
      %v3742 = vmul.f32 %v1143, %v3673
      %v3743 = vmul.f32 %v1144, %v3677
      %v3744 = vmul.f32 %v1145, %v3681
      %v3745 = vmul.f32 %v1146, %v3685
      %v3746 = vmul.f32 %v1147, %v3689
      %v3747 = vmul.f32 %v1148, %v3693
      %v3748 = vmul.f32 %v1149, %v3697
      %v3749 = vmul.f32 %v1150, %v3701
      %v3750 = vmul.f32 %v1151, %v3705
      %v3751 = vmul.f32 %v1152, %v3709
      %v3752 = vmul.f32 %v1153, %v3713
      %v3753 = vmul.f32 %v1154, %v3717
      %v3754 = vmul.f32 %v1155, %v3721
      %3755 = vset.pattern.permute.xlu0 5
      %3756 = vperm.xlu0 %3755, %v2860
      %v3757 = vpop.permute.xlu0 %3756
      %3759 = vset.pattern.permute.xlu0 5
      %3760 = vperm.xlu0 %3759, %v2862
      %v3761 = vpop.permute.xlu0 %3760
      %3763 = vset.pattern.permute.xlu0 5
      %3764 = vperm.xlu0 %3763, %v2864
      %v3765 = vpop.permute.xlu0 %3764
      %3767 = vset.pattern.permute.xlu0 5
      %3768 = vperm.xlu0 %3767, %v2866
      %v3769 = vpop.permute.xlu0 %3768
      %3771 = vset.pattern.permute.xlu0 5
      %3772 = vperm.xlu0 %3771, %v2868
      %v3773 = vpop.permute.xlu0 %3772
      %3775 = vset.pattern.permute.xlu0 5
      %3776 = vperm.xlu0 %3775, %v2870
      %v3777 = vpop.permute.xlu0 %3776
      %3779 = vset.pattern.permute.xlu0 5
      %3780 = vperm.xlu0 %3779, %v2872
      %v3781 = vpop.permute.xlu0 %3780
      %3783 = vset.pattern.permute.xlu0 5
      %3784 = vperm.xlu0 %3783, %v2874
      %v3785 = vpop.permute.xlu0 %3784
      %3787 = vset.pattern.permute.xlu0 5
      %3788 = vperm.xlu0 %3787, %v2876
      %v3789 = vpop.permute.xlu0 %3788
      %3791 = vset.pattern.permute.xlu0 5
      %3792 = vperm.xlu0 %3791, %v2878
      %v3793 = vpop.permute.xlu0 %3792
      %3795 = vset.pattern.permute.xlu0 5
      %3796 = vperm.xlu0 %3795, %v2880
      %v3797 = vpop.permute.xlu0 %3796
      %3799 = vset.pattern.permute.xlu0 5
      %3800 = vperm.xlu0 %3799, %v2882
      %v3801 = vpop.permute.xlu0 %3800
      %3803 = vset.pattern.permute.xlu0 5
      %3804 = vperm.xlu0 %3803, %v2884
      %v3805 = vpop.permute.xlu0 %3804
      %3807 = vset.pattern.permute.xlu0 5
      %3808 = vperm.xlu0 %3807, %v2886
      %v3809 = vpop.permute.xlu0 %3808
      %3811 = vset.pattern.permute.xlu0 5
      %3812 = vperm.xlu0 %3811, %v2888
      %v3813 = vpop.permute.xlu0 %3812
      %3815 = vset.pattern.permute.xlu0 5
      %3816 = vperm.xlu0 %3815, %v2890
      %v3817 = vpop.permute.xlu0 %3816
      %3819 = vset.pattern.permute.xlu0 5
      %3820 = vperm.xlu0 %3819, %v2892
      %v3821 = vpop.permute.xlu0 %3820
      %3823 = vset.pattern.permute.xlu0 5
      %3824 = vperm.xlu0 %3823, %v2894
      %v3825 = vpop.permute.xlu0 %3824
      %3827 = vset.pattern.permute.xlu0 5
      %3828 = vperm.xlu0 %3827, %v2896
      %v3829 = vpop.permute.xlu0 %3828
      %3831 = vset.pattern.permute.xlu0 5
      %3832 = vperm.xlu0 %3831, %v2898
      %v3833 = vpop.permute.xlu0 %3832
      %3835 = vset.pattern.permute.xlu0 5
      %3836 = vperm.xlu0 %3835, %v2900
      %v3837 = vpop.permute.xlu0 %3836
      %3839 = vset.pattern.permute.xlu0 5
      %3840 = vperm.xlu0 %3839, %v2902
      %v3841 = vpop.permute.xlu0 %3840
      %3843 = vset.pattern.permute.xlu0 5
      %3844 = vperm.xlu0 %3843, %v2904
      %v3845 = vpop.permute.xlu0 %3844
      %3847 = vset.pattern.permute.xlu0 5
      %3848 = vperm.xlu0 %3847, %v2906
      %v3849 = vpop.permute.xlu0 %3848
      %3851 = vset.pattern.permute.xlu0 5
      %3852 = vperm.xlu0 %3851, %v2908
      %v3853 = vpop.permute.xlu0 %3852
      %3855 = vset.pattern.permute.xlu0 5
      %3856 = vperm.xlu0 %3855, %v2910
      %v3857 = vpop.permute.xlu0 %3856
      %3859 = vset.pattern.permute.xlu0 5
      %3860 = vperm.xlu0 %3859, %v2912
      %v3861 = vpop.permute.xlu0 %3860
      %3863 = vset.pattern.permute.xlu0 5
      %3864 = vperm.xlu0 %3863, %v2914
      %v3865 = vpop.permute.xlu0 %3864
      %3867 = vset.pattern.permute.xlu0 5
      %3868 = vperm.xlu0 %3867, %v2916
      %v3869 = vpop.permute.xlu0 %3868
      %3871 = vset.pattern.permute.xlu0 5
      %3872 = vperm.xlu0 %3871, %v2918
      %v3873 = vpop.permute.xlu0 %3872
      %3875 = vset.pattern.permute.xlu0 5
      %3876 = vperm.xlu0 %3875, %v2920
      %v3877 = vpop.permute.xlu0 %3876
      %3879 = vset.pattern.permute.xlu0 5
      %3880 = vperm.xlu0 %3879, %v2922
      %v3881 = vpop.permute.xlu0 %3880
      %v3883 = vmul.f32 %v1156, %v3757
      %v3884 = vmul.f32 %v1157, %v3761
      %v3885 = vmul.f32 %v1158, %v3765
      %v3886 = vmul.f32 %v1159, %v3769
      %v3887 = vmul.f32 %v1160, %v3773
      %v3888 = vmul.f32 %v1161, %v3777
      %v3889 = vmul.f32 %v1162, %v3781
      %v3890 = vmul.f32 %v1163, %v3785
      %v3891 = vmul.f32 %v1164, %v3789
      %v3892 = vmul.f32 %v1165, %v3793
      %v3893 = vmul.f32 %v1166, %v3797
      %v3894 = vmul.f32 %v1167, %v3801
      %v3895 = vmul.f32 %v1168, %v3805
      %v3896 = vmul.f32 %v1169, %v3809
      %v3897 = vmul.f32 %v1170, %v3813
      %v3898 = vmul.f32 %v1171, %v3817
      %v3899 = vmul.f32 %v1172, %v3821
      %v3900 = vmul.f32 %v1173, %v3825
      %v3901 = vmul.f32 %v1174, %v3829
      %v3902 = vmul.f32 %v1175, %v3833
      %v3903 = vmul.f32 %v1176, %v3837
      %v3904 = vmul.f32 %v1177, %v3841
      %v3905 = vmul.f32 %v1178, %v3845
      %v3906 = vmul.f32 %v1179, %v3849
      %v3907 = vmul.f32 %v1180, %v3853
      %v3908 = vmul.f32 %v1181, %v3857
      %v3909 = vmul.f32 %v1182, %v3861
      %v3910 = vmul.f32 %v1183, %v3865
      %v3911 = vmul.f32 %v1184, %v3869
      %v3912 = vmul.f32 %v1185, %v3873
      %v3913 = vmul.f32 %v1186, %v3877
      %v3914 = vmul.f32 %v1187, %v3881
      %3915 = vset.pattern.permute.xlu0 6
      %3916 = vperm.xlu0 %3915, %v2860
      %v3917 = vpop.permute.xlu0 %3916
      %3919 = vset.pattern.permute.xlu0 6
      %3920 = vperm.xlu0 %3919, %v2862
      %v3921 = vpop.permute.xlu0 %3920
      %3923 = vset.pattern.permute.xlu0 6
      %3924 = vperm.xlu0 %3923, %v2864
      %v3925 = vpop.permute.xlu0 %3924
      %3927 = vset.pattern.permute.xlu0 6
      %3928 = vperm.xlu0 %3927, %v2866
      %v3929 = vpop.permute.xlu0 %3928
      %3931 = vset.pattern.permute.xlu0 6
      %3932 = vperm.xlu0 %3931, %v2868
      %v3933 = vpop.permute.xlu0 %3932
      %3935 = vset.pattern.permute.xlu0 6
      %3936 = vperm.xlu0 %3935, %v2870
      %v3937 = vpop.permute.xlu0 %3936
      %3939 = vset.pattern.permute.xlu0 6
      %3940 = vperm.xlu0 %3939, %v2872
      %v3941 = vpop.permute.xlu0 %3940
      %3943 = vset.pattern.permute.xlu0 6
      %3944 = vperm.xlu0 %3943, %v2874
      %v3945 = vpop.permute.xlu0 %3944
      %3947 = vset.pattern.permute.xlu0 6
      %3948 = vperm.xlu0 %3947, %v2876
      %v3949 = vpop.permute.xlu0 %3948
      %3951 = vset.pattern.permute.xlu0 6
      %3952 = vperm.xlu0 %3951, %v2878
      %v3953 = vpop.permute.xlu0 %3952
      %3955 = vset.pattern.permute.xlu0 6
      %3956 = vperm.xlu0 %3955, %v2880
      %v3957 = vpop.permute.xlu0 %3956
      %3959 = vset.pattern.permute.xlu0 6
      %3960 = vperm.xlu0 %3959, %v2882
      %v3961 = vpop.permute.xlu0 %3960
      %3963 = vset.pattern.permute.xlu0 6
      %3964 = vperm.xlu0 %3963, %v2884
      %v3965 = vpop.permute.xlu0 %3964
      %3967 = vset.pattern.permute.xlu0 6
      %3968 = vperm.xlu0 %3967, %v2886
      %v3969 = vpop.permute.xlu0 %3968
      %3971 = vset.pattern.permute.xlu0 6
      %3972 = vperm.xlu0 %3971, %v2888
      %v3973 = vpop.permute.xlu0 %3972
      %3975 = vset.pattern.permute.xlu0 6
      %3976 = vperm.xlu0 %3975, %v2890
      %v3977 = vpop.permute.xlu0 %3976
      %3979 = vset.pattern.permute.xlu0 6
      %3980 = vperm.xlu0 %3979, %v2892
      %v3981 = vpop.permute.xlu0 %3980
      %3983 = vset.pattern.permute.xlu0 6
      %3984 = vperm.xlu0 %3983, %v2894
      %v3985 = vpop.permute.xlu0 %3984
      %3987 = vset.pattern.permute.xlu0 6
      %3988 = vperm.xlu0 %3987, %v2896
      %v3989 = vpop.permute.xlu0 %3988
      %3991 = vset.pattern.permute.xlu0 6
      %3992 = vperm.xlu0 %3991, %v2898
      %v3993 = vpop.permute.xlu0 %3992
      %3995 = vset.pattern.permute.xlu0 6
      %3996 = vperm.xlu0 %3995, %v2900
      %v3997 = vpop.permute.xlu0 %3996
      %3999 = vset.pattern.permute.xlu0 6
      %4000 = vperm.xlu0 %3999, %v2902
      %v4001 = vpop.permute.xlu0 %4000
      %4003 = vset.pattern.permute.xlu0 6
      %4004 = vperm.xlu0 %4003, %v2904
      %v4005 = vpop.permute.xlu0 %4004
      %4007 = vset.pattern.permute.xlu0 6
      %4008 = vperm.xlu0 %4007, %v2906
      %v4009 = vpop.permute.xlu0 %4008
      %4011 = vset.pattern.permute.xlu0 6
      %4012 = vperm.xlu0 %4011, %v2908
      %v4013 = vpop.permute.xlu0 %4012
      %4015 = vset.pattern.permute.xlu0 6
      %4016 = vperm.xlu0 %4015, %v2910
      %v4017 = vpop.permute.xlu0 %4016
      %4019 = vset.pattern.permute.xlu0 6
      %4020 = vperm.xlu0 %4019, %v2912
      %v4021 = vpop.permute.xlu0 %4020
      %4023 = vset.pattern.permute.xlu0 6
      %4024 = vperm.xlu0 %4023, %v2914
      %v4025 = vpop.permute.xlu0 %4024
      %4027 = vset.pattern.permute.xlu0 6
      %4028 = vperm.xlu0 %4027, %v2916
      %v4029 = vpop.permute.xlu0 %4028
      %4031 = vset.pattern.permute.xlu0 6
      %4032 = vperm.xlu0 %4031, %v2918
      %v4033 = vpop.permute.xlu0 %4032
      %4035 = vset.pattern.permute.xlu0 6
      %4036 = vperm.xlu0 %4035, %v2920
      %v4037 = vpop.permute.xlu0 %4036
      %4039 = vset.pattern.permute.xlu0 6
      %4040 = vperm.xlu0 %4039, %v2922
      %v4041 = vpop.permute.xlu0 %4040
      %v4043 = vmul.f32 %v1189, %v3917
      %v4044 = vmul.f32 %v1190, %v3921
      %v4045 = vmul.f32 %v1191, %v3925
      %v4046 = vmul.f32 %v1192, %v3929
      %v4047 = vmul.f32 %v1193, %v3933
      %v4048 = vmul.f32 %v1194, %v3937
      %v4049 = vmul.f32 %v1195, %v3941
      %v4050 = vmul.f32 %v1196, %v3945
      %v4051 = vmul.f32 %v1197, %v3949
      %v4052 = vmul.f32 %v1198, %v3953
      %v4053 = vmul.f32 %v1199, %v3957
      %v4054 = vmul.f32 %v1200, %v3961
      %v4055 = vmul.f32 %v1201, %v3965
      %v4056 = vmul.f32 %v1202, %v3969
      %v4057 = vmul.f32 %v1203, %v3973
      %v4058 = vmul.f32 %v1204, %v3977
      %v4059 = vmul.f32 %v1205, %v3981
      %v4060 = vmul.f32 %v1206, %v3985
      %v4061 = vmul.f32 %v1207, %v3989
      %v4062 = vmul.f32 %v1208, %v3993
      %v4063 = vmul.f32 %v1209, %v3997
      %v4064 = vmul.f32 %v1210, %v4001
      %v4065 = vmul.f32 %v1211, %v4005
      %v4066 = vmul.f32 %v1212, %v4009
      %v4067 = vmul.f32 %v1213, %v4013
      %v4068 = vmul.f32 %v1214, %v4017
      %v4069 = vmul.f32 %v1215, %v4021
      %v4070 = vmul.f32 %v1216, %v4025
      %v4071 = vmul.f32 %v1217, %v4029
      %v4072 = vmul.f32 %v1218, %v4033
      %v4073 = vmul.f32 %v1219, %v4037
      %v4074 = vmul.f32 %v1220, %v4041
      %4075 = vset.pattern.permute.xlu0 7
      %4076 = vperm.xlu0 %4075, %v2860
      %v4077 = vpop.permute.xlu0 %4076
      %4079 = vset.pattern.permute.xlu0 7
      %4080 = vperm.xlu0 %4079, %v2862
      %v4081 = vpop.permute.xlu0 %4080
      %4083 = vset.pattern.permute.xlu0 7
      %4084 = vperm.xlu0 %4083, %v2864
      %v4085 = vpop.permute.xlu0 %4084
      %4087 = vset.pattern.permute.xlu0 7
      %4088 = vperm.xlu0 %4087, %v2866
      %v4089 = vpop.permute.xlu0 %4088
      %4091 = vset.pattern.permute.xlu0 7
      %4092 = vperm.xlu0 %4091, %v2868
      %v4093 = vpop.permute.xlu0 %4092
      %4095 = vset.pattern.permute.xlu0 7
      %4096 = vperm.xlu0 %4095, %v2870
      %v4097 = vpop.permute.xlu0 %4096
      %4099 = vset.pattern.permute.xlu0 7
      %4100 = vperm.xlu0 %4099, %v2872
      %v4101 = vpop.permute.xlu0 %4100
      %4103 = vset.pattern.permute.xlu0 7
      %4104 = vperm.xlu0 %4103, %v2874
      %v4105 = vpop.permute.xlu0 %4104
      %4107 = vset.pattern.permute.xlu0 7
      %4108 = vperm.xlu0 %4107, %v2876
      %v4109 = vpop.permute.xlu0 %4108
      %4111 = vset.pattern.permute.xlu0 7
      %4112 = vperm.xlu0 %4111, %v2878
      %v4113 = vpop.permute.xlu0 %4112
      %4115 = vset.pattern.permute.xlu0 7
      %4116 = vperm.xlu0 %4115, %v2880
      %v4117 = vpop.permute.xlu0 %4116
      %4119 = vset.pattern.permute.xlu0 7
      %4120 = vperm.xlu0 %4119, %v2882
      %v4121 = vpop.permute.xlu0 %4120
      %4123 = vset.pattern.permute.xlu0 7
      %4124 = vperm.xlu0 %4123, %v2884
      %v4125 = vpop.permute.xlu0 %4124
      %4127 = vset.pattern.permute.xlu0 7
      %4128 = vperm.xlu0 %4127, %v2886
      %v4129 = vpop.permute.xlu0 %4128
      %4131 = vset.pattern.permute.xlu0 7
      %4132 = vperm.xlu0 %4131, %v2888
      %v4133 = vpop.permute.xlu0 %4132
      %4135 = vset.pattern.permute.xlu0 7
      %4136 = vperm.xlu0 %4135, %v2890
      %v4137 = vpop.permute.xlu0 %4136
      %4139 = vset.pattern.permute.xlu0 7
      %4140 = vperm.xlu0 %4139, %v2892
      %v4141 = vpop.permute.xlu0 %4140
      %4143 = vset.pattern.permute.xlu0 7
      %4144 = vperm.xlu0 %4143, %v2894
      %v4145 = vpop.permute.xlu0 %4144
      %4147 = vset.pattern.permute.xlu0 7
      %4148 = vperm.xlu0 %4147, %v2896
      %v4149 = vpop.permute.xlu0 %4148
      %4151 = vset.pattern.permute.xlu0 7
      %4152 = vperm.xlu0 %4151, %v2898
      %v4153 = vpop.permute.xlu0 %4152
      %4155 = vset.pattern.permute.xlu0 7
      %4156 = vperm.xlu0 %4155, %v2900
      %v4157 = vpop.permute.xlu0 %4156
      %4159 = vset.pattern.permute.xlu0 7
      %4160 = vperm.xlu0 %4159, %v2902
      %v4161 = vpop.permute.xlu0 %4160
      %4163 = vset.pattern.permute.xlu0 7
      %4164 = vperm.xlu0 %4163, %v2904
      %v4165 = vpop.permute.xlu0 %4164
      %4167 = vset.pattern.permute.xlu0 7
      %4168 = vperm.xlu0 %4167, %v2906
      %v4169 = vpop.permute.xlu0 %4168
      %4171 = vset.pattern.permute.xlu0 7
      %4172 = vperm.xlu0 %4171, %v2908
      %v4173 = vpop.permute.xlu0 %4172
      %4175 = vset.pattern.permute.xlu0 7
      %4176 = vperm.xlu0 %4175, %v2910
      %v4177 = vpop.permute.xlu0 %4176
      %4179 = vset.pattern.permute.xlu0 7
      %4180 = vperm.xlu0 %4179, %v2912
      %v4181 = vpop.permute.xlu0 %4180
      %4183 = vset.pattern.permute.xlu0 7
      %4184 = vperm.xlu0 %4183, %v2914
      %v4185 = vpop.permute.xlu0 %4184
      %4187 = vset.pattern.permute.xlu0 7
      %4188 = vperm.xlu0 %4187, %v2916
      %v4189 = vpop.permute.xlu0 %4188
      %4191 = vset.pattern.permute.xlu0 7
      %4192 = vperm.xlu0 %4191, %v2918
      %v4193 = vpop.permute.xlu0 %4192
      %4195 = vset.pattern.permute.xlu0 7
      %4196 = vperm.xlu0 %4195, %v2920
      %v4197 = vpop.permute.xlu0 %4196
      %4199 = vset.pattern.permute.xlu0 7
      %4200 = vperm.xlu0 %4199, %v2922
      %v4201 = vpop.permute.xlu0 %4200
      %v4203 = vmul.f32 %v1221, %v4077
      %v4204 = vmul.f32 %v1222, %v4081
      %v4205 = vmul.f32 %v1223, %v4085
      %v4206 = vmul.f32 %v1224, %v4089
      %v4207 = vmul.f32 %v1225, %v4093
      %v4208 = vmul.f32 %v1226, %v4097
      %v4209 = vmul.f32 %v1227, %v4101
      %v4210 = vmul.f32 %v1228, %v4105
      %v4211 = vmul.f32 %v1229, %v4109
      %v4212 = vmul.f32 %v1230, %v4113
      %v4213 = vmul.f32 %v1231, %v4117
      %v4214 = vmul.f32 %v1232, %v4121
      %v4215 = vmul.f32 %v1233, %v4125
      %v4216 = vmul.f32 %v1234, %v4129
      %v4217 = vmul.f32 %v1235, %v4133
      %v4218 = vmul.f32 %v1236, %v4137
      %v4219 = vmul.f32 %v1237, %v4141
      %v4220 = vmul.f32 %v1238, %v4145
      %v4221 = vmul.f32 %v1239, %v4149
      %v4222 = vmul.f32 %v1240, %v4153
      %v4223 = vmul.f32 %v1241, %v4157
      %v4224 = vmul.f32 %v1242, %v4161
      %v4225 = vmul.f32 %v1243, %v4165
      %v4226 = vmul.f32 %v1244, %v4169
      %v4227 = vmul.f32 %v1245, %v4173
      %v4228 = vmul.f32 %v1246, %v4177
      %v4229 = vmul.f32 %v1247, %v4181
      %v4230 = vmul.f32 %v1248, %v4185
      %v4231 = vmul.f32 %v1249, %v4189
      %v4232 = vmul.f32 %v1250, %v4193
      %v4233 = vmul.f32 %v1251, %v4197
      %v4234 = vmul.f32 %v1252, %v4201
      %4235 = vset.pattern.permute.xlu0 8
      %4236 = vperm.xlu0 %4235, %v2860
      %v4237 = vpop.permute.xlu0 %4236
      %4239 = vset.pattern.permute.xlu0 8
      %4240 = vperm.xlu0 %4239, %v2862
      %v4241 = vpop.permute.xlu0 %4240
      %4243 = vset.pattern.permute.xlu0 8
      %4244 = vperm.xlu0 %4243, %v2864
      %v4245 = vpop.permute.xlu0 %4244
      %4247 = vset.pattern.permute.xlu0 8
      %4248 = vperm.xlu0 %4247, %v2866
      %v4249 = vpop.permute.xlu0 %4248
      %4251 = vset.pattern.permute.xlu0 8
      %4252 = vperm.xlu0 %4251, %v2868
      %v4253 = vpop.permute.xlu0 %4252
      %4255 = vset.pattern.permute.xlu0 8
      %4256 = vperm.xlu0 %4255, %v2870
      %v4257 = vpop.permute.xlu0 %4256
      %4259 = vset.pattern.permute.xlu0 8
      %4260 = vperm.xlu0 %4259, %v2872
      %v4261 = vpop.permute.xlu0 %4260
      %4263 = vset.pattern.permute.xlu0 8
      %4264 = vperm.xlu0 %4263, %v2874
      %v4265 = vpop.permute.xlu0 %4264
      %4267 = vset.pattern.permute.xlu0 8
      %4268 = vperm.xlu0 %4267, %v2876
      %v4269 = vpop.permute.xlu0 %4268
      %4271 = vset.pattern.permute.xlu0 8
      %4272 = vperm.xlu0 %4271, %v2878
      %v4273 = vpop.permute.xlu0 %4272
      %4275 = vset.pattern.permute.xlu0 8
      %4276 = vperm.xlu0 %4275, %v2880
      %v4277 = vpop.permute.xlu0 %4276
      %4279 = vset.pattern.permute.xlu0 8
      %4280 = vperm.xlu0 %4279, %v2882
      %v4281 = vpop.permute.xlu0 %4280
      %4283 = vset.pattern.permute.xlu0 8
      %4284 = vperm.xlu0 %4283, %v2884
      %v4285 = vpop.permute.xlu0 %4284
      %4287 = vset.pattern.permute.xlu0 8
      %4288 = vperm.xlu0 %4287, %v2886
      %v4289 = vpop.permute.xlu0 %4288
      %4291 = vset.pattern.permute.xlu0 8
      %4292 = vperm.xlu0 %4291, %v2888
      %v4293 = vpop.permute.xlu0 %4292
      %4295 = vset.pattern.permute.xlu0 8
      %4296 = vperm.xlu0 %4295, %v2890
      %v4297 = vpop.permute.xlu0 %4296
      %4299 = vset.pattern.permute.xlu0 8
      %4300 = vperm.xlu0 %4299, %v2892
      %v4301 = vpop.permute.xlu0 %4300
      %4303 = vset.pattern.permute.xlu0 8
      %4304 = vperm.xlu0 %4303, %v2894
      %v4305 = vpop.permute.xlu0 %4304
      %4307 = vset.pattern.permute.xlu0 8
      %4308 = vperm.xlu0 %4307, %v2896
      %v4309 = vpop.permute.xlu0 %4308
      %4311 = vset.pattern.permute.xlu0 8
      %4312 = vperm.xlu0 %4311, %v2898
      %v4313 = vpop.permute.xlu0 %4312
      %4315 = vset.pattern.permute.xlu0 8
      %4316 = vperm.xlu0 %4315, %v2900
      %v4317 = vpop.permute.xlu0 %4316
      %4319 = vset.pattern.permute.xlu0 8
      %4320 = vperm.xlu0 %4319, %v2902
      %v4321 = vpop.permute.xlu0 %4320
      %4323 = vset.pattern.permute.xlu0 8
      %4324 = vperm.xlu0 %4323, %v2904
      %v4325 = vpop.permute.xlu0 %4324
      %4327 = vset.pattern.permute.xlu0 8
      %4328 = vperm.xlu0 %4327, %v2906
      %v4329 = vpop.permute.xlu0 %4328
      %4331 = vset.pattern.permute.xlu0 8
      %4332 = vperm.xlu0 %4331, %v2908
      %v4333 = vpop.permute.xlu0 %4332
      %4335 = vset.pattern.permute.xlu0 8
      %4336 = vperm.xlu0 %4335, %v2910
      %v4337 = vpop.permute.xlu0 %4336
      %4339 = vset.pattern.permute.xlu0 8
      %4340 = vperm.xlu0 %4339, %v2912
      %v4341 = vpop.permute.xlu0 %4340
      %4343 = vset.pattern.permute.xlu0 8
      %4344 = vperm.xlu0 %4343, %v2914
      %v4345 = vpop.permute.xlu0 %4344
      %4347 = vset.pattern.permute.xlu0 8
      %4348 = vperm.xlu0 %4347, %v2916
      %v4349 = vpop.permute.xlu0 %4348
      %4351 = vset.pattern.permute.xlu0 8
      %4352 = vperm.xlu0 %4351, %v2918
      %v4353 = vpop.permute.xlu0 %4352
      %4355 = vset.pattern.permute.xlu0 8
      %4356 = vperm.xlu0 %4355, %v2920
      %v4357 = vpop.permute.xlu0 %4356
      %4359 = vset.pattern.permute.xlu0 8
      %4360 = vperm.xlu0 %4359, %v2922
      %v4361 = vpop.permute.xlu0 %4360
      %v4363 = vmul.f32 %v1253, %v4237
      %v4364 = vmul.f32 %v1254, %v4241
      %v4365 = vmul.f32 %v1255, %v4245
      %v4366 = vmul.f32 %v1256, %v4249
      %v4367 = vmul.f32 %v1257, %v4253
      %v4368 = vmul.f32 %v1258, %v4257
      %v4369 = vmul.f32 %v1259, %v4261
      %v4370 = vmul.f32 %v1260, %v4265
      %v4371 = vmul.f32 %v1261, %v4269
      %v4372 = vmul.f32 %v1262, %v4273
      %v4373 = vmul.f32 %v1263, %v4277
      %v4374 = vmul.f32 %v1264, %v4281
      %v4375 = vmul.f32 %v1265, %v4285
      %v4376 = vmul.f32 %v1266, %v4289
      %v4377 = vmul.f32 %v1267, %v4293
      %v4378 = vmul.f32 %v1268, %v4297
      %v4379 = vmul.f32 %v1269, %v4301
      %v4380 = vmul.f32 %v1270, %v4305
      %v4381 = vmul.f32 %v1271, %v4309
      %v4382 = vmul.f32 %v1272, %v4313
      %v4383 = vmul.f32 %v1273, %v4317
      %v4384 = vmul.f32 %v1274, %v4321
      %v4385 = vmul.f32 %v1275, %v4325
      %v4386 = vmul.f32 %v1276, %v4329
      %v4387 = vmul.f32 %v1277, %v4333
      %v4388 = vmul.f32 %v1278, %v4337
      %v4389 = vmul.f32 %v1279, %v4341
      %v4390 = vmul.f32 %v1280, %v4345
      %v4391 = vmul.f32 %v1281, %v4349
      %v4392 = vmul.f32 %v1282, %v4353
      %v4393 = vmul.f32 %v1283, %v4357
      %v4394 = vmul.f32 %v1284, %v4361
      %4427 = vrot.lane.b32.xlu0 %v3243, 16
      %v4428 = vpop.permute.xlu0 %4427
      %4429 = vrot.lane.b32.xlu0 %v3244, 16
      %v4430 = vpop.permute.xlu0 %4429
      %4431 = vrot.lane.b32.xlu0 %v3245, 16
      %v4432 = vpop.permute.xlu0 %4431
      %4433 = vrot.lane.b32.xlu0 %v3246, 16
      %v4434 = vpop.permute.xlu0 %4433
      %4435 = vrot.lane.b32.xlu0 %v3247, 16
      %v4436 = vpop.permute.xlu0 %4435
      %4437 = vrot.lane.b32.xlu0 %v3248, 16
      %v4438 = vpop.permute.xlu0 %4437
      %4439 = vrot.lane.b32.xlu0 %v3249, 16
      %v4440 = vpop.permute.xlu0 %4439
      %4441 = vrot.lane.b32.xlu0 %v3250, 16
      %v4442 = vpop.permute.xlu0 %4441
      %4443 = vrot.lane.b32.xlu0 %v3251, 16
      %v4444 = vpop.permute.xlu0 %4443
      %4445 = vrot.lane.b32.xlu0 %v3252, 16
      %v4446 = vpop.permute.xlu0 %4445
      %4447 = vrot.lane.b32.xlu0 %v3253, 16
      %v4448 = vpop.permute.xlu0 %4447
      %4449 = vrot.lane.b32.xlu0 %v3254, 16
      %v4450 = vpop.permute.xlu0 %4449
      %4451 = vrot.lane.b32.xlu0 %v3255, 16
      %v4452 = vpop.permute.xlu0 %4451
      %4453 = vrot.lane.b32.xlu0 %v3256, 16
      %v4454 = vpop.permute.xlu0 %4453
      %4455 = vrot.lane.b32.xlu0 %v3257, 16
      %v4456 = vpop.permute.xlu0 %4455
      %4457 = vrot.lane.b32.xlu0 %v3258, 16
      %v4458 = vpop.permute.xlu0 %4457
      %4459 = vrot.lane.b32.xlu0 %v3259, 16
      %v4460 = vpop.permute.xlu0 %4459
      %4461 = vrot.lane.b32.xlu0 %v3260, 16
      %v4462 = vpop.permute.xlu0 %4461
      %4463 = vrot.lane.b32.xlu0 %v3261, 16
      %v4464 = vpop.permute.xlu0 %4463
      %4465 = vrot.lane.b32.xlu0 %v3262, 16
      %v4466 = vpop.permute.xlu0 %4465
      %4467 = vrot.lane.b32.xlu0 %v3263, 16
      %v4468 = vpop.permute.xlu0 %4467
      %4469 = vrot.lane.b32.xlu0 %v3264, 16
      %v4470 = vpop.permute.xlu0 %4469
      %4471 = vrot.lane.b32.xlu0 %v3265, 16
      %v4472 = vpop.permute.xlu0 %4471
      %4473 = vrot.lane.b32.xlu0 %v3266, 16
      %v4474 = vpop.permute.xlu0 %4473
      %4475 = vrot.lane.b32.xlu0 %v3267, 16
      %v4476 = vpop.permute.xlu0 %4475
      %4477 = vrot.lane.b32.xlu0 %v3268, 16
      %v4478 = vpop.permute.xlu0 %4477
      %4479 = vrot.lane.b32.xlu0 %v3269, 16
      %v4480 = vpop.permute.xlu0 %4479
      %4481 = vrot.lane.b32.xlu0 %v3270, 16
      %v4482 = vpop.permute.xlu0 %4481
      %4483 = vrot.lane.b32.xlu0 %v3271, 16
      %v4484 = vpop.permute.xlu0 %4483
      %4485 = vrot.lane.b32.xlu0 %v3272, 16
      %v4486 = vpop.permute.xlu0 %4485
      %4487 = vrot.lane.b32.xlu0 %v3273, 16
      %v4488 = vpop.permute.xlu0 %4487
      %4489 = vrot.lane.b32.xlu0 %v3274, 16
      %v4490 = vpop.permute.xlu0 %4489
      %4555 = vrot.lane.b32.xlu0 %v3403, 32
      %v4556 = vpop.permute.xlu0 %4555
      %4557 = vrot.lane.b32.xlu0 %v3404, 32
      %v4558 = vpop.permute.xlu0 %4557
      %4559 = vrot.lane.b32.xlu0 %v3405, 32
      %v4560 = vpop.permute.xlu0 %4559
      %4561 = vrot.lane.b32.xlu0 %v3406, 32
      %v4562 = vpop.permute.xlu0 %4561
      %4563 = vrot.lane.b32.xlu0 %v3407, 32
      %v4564 = vpop.permute.xlu0 %4563
      %4565 = vrot.lane.b32.xlu0 %v3408, 32
      %v4566 = vpop.permute.xlu0 %4565
      %4567 = vrot.lane.b32.xlu0 %v3409, 32
      %v4568 = vpop.permute.xlu0 %4567
      %4569 = vrot.lane.b32.xlu0 %v3410, 32
      %v4570 = vpop.permute.xlu0 %4569
      %4571 = vrot.lane.b32.xlu0 %v3411, 32
      %v4572 = vpop.permute.xlu0 %4571
      %4573 = vrot.lane.b32.xlu0 %v3412, 32
      %v4574 = vpop.permute.xlu0 %4573
      %4575 = vrot.lane.b32.xlu0 %v3413, 32
      %v4576 = vpop.permute.xlu0 %4575
      %4577 = vrot.lane.b32.xlu0 %v3414, 32
      %v4578 = vpop.permute.xlu0 %4577
      %4579 = vrot.lane.b32.xlu0 %v3415, 32
      %v4580 = vpop.permute.xlu0 %4579
      %4581 = vrot.lane.b32.xlu0 %v3416, 32
      %v4582 = vpop.permute.xlu0 %4581
      %4583 = vrot.lane.b32.xlu0 %v3417, 32
      %v4584 = vpop.permute.xlu0 %4583
      %4585 = vrot.lane.b32.xlu0 %v3418, 32
      %v4586 = vpop.permute.xlu0 %4585
      %4587 = vrot.lane.b32.xlu0 %v3419, 32
      %v4588 = vpop.permute.xlu0 %4587
      %4589 = vrot.lane.b32.xlu0 %v3420, 32
      %v4590 = vpop.permute.xlu0 %4589
      %4591 = vrot.lane.b32.xlu0 %v3421, 32
      %v4592 = vpop.permute.xlu0 %4591
      %4593 = vrot.lane.b32.xlu0 %v3422, 32
      %v4594 = vpop.permute.xlu0 %4593
      %4595 = vrot.lane.b32.xlu0 %v3423, 32
      %v4596 = vpop.permute.xlu0 %4595
      %4597 = vrot.lane.b32.xlu0 %v3424, 32
      %v4598 = vpop.permute.xlu0 %4597
      %4599 = vrot.lane.b32.xlu0 %v3425, 32
      %v4600 = vpop.permute.xlu0 %4599
      %4601 = vrot.lane.b32.xlu0 %v3426, 32
      %v4602 = vpop.permute.xlu0 %4601
      %4603 = vrot.lane.b32.xlu0 %v3427, 32
      %v4604 = vpop.permute.xlu0 %4603
      %4605 = vrot.lane.b32.xlu0 %v3428, 32
      %v4606 = vpop.permute.xlu0 %4605
      %4607 = vrot.lane.b32.xlu0 %v3429, 32
      %v4608 = vpop.permute.xlu0 %4607
      %4609 = vrot.lane.b32.xlu0 %v3430, 32
      %v4610 = vpop.permute.xlu0 %4609
      %4611 = vrot.lane.b32.xlu0 %v3431, 32
      %v4612 = vpop.permute.xlu0 %4611
      %4613 = vrot.lane.b32.xlu0 %v3432, 32
      %v4614 = vpop.permute.xlu0 %4613
      %4615 = vrot.lane.b32.xlu0 %v3433, 32
      %v4616 = vpop.permute.xlu0 %4615
      %4617 = vrot.lane.b32.xlu0 %v3434, 32
      %v4618 = vpop.permute.xlu0 %4617
      %4683 = vrot.lane.b32.xlu0 %v3563, 48
      %v4684 = vpop.permute.xlu0 %4683
      %4685 = vrot.lane.b32.xlu0 %v3564, 48
      %v4686 = vpop.permute.xlu0 %4685
      %4687 = vrot.lane.b32.xlu0 %v3565, 48
      %v4688 = vpop.permute.xlu0 %4687
      %4689 = vrot.lane.b32.xlu0 %v3566, 48
      %v4690 = vpop.permute.xlu0 %4689
      %4691 = vrot.lane.b32.xlu0 %v3567, 48
      %v4692 = vpop.permute.xlu0 %4691
      %4693 = vrot.lane.b32.xlu0 %v3568, 48
      %v4694 = vpop.permute.xlu0 %4693
      %4695 = vrot.lane.b32.xlu0 %v3569, 48
      %v4696 = vpop.permute.xlu0 %4695
      %4697 = vrot.lane.b32.xlu0 %v3570, 48
      %v4698 = vpop.permute.xlu0 %4697
      %4699 = vrot.lane.b32.xlu0 %v3571, 48
      %v4700 = vpop.permute.xlu0 %4699
      %4701 = vrot.lane.b32.xlu0 %v3572, 48
      %v4702 = vpop.permute.xlu0 %4701
      %4703 = vrot.lane.b32.xlu0 %v3573, 48
      %v4704 = vpop.permute.xlu0 %4703
      %4705 = vrot.lane.b32.xlu0 %v3574, 48
      %v4706 = vpop.permute.xlu0 %4705
      %4707 = vrot.lane.b32.xlu0 %v3575, 48
      %v4708 = vpop.permute.xlu0 %4707
      %4709 = vrot.lane.b32.xlu0 %v3576, 48
      %v4710 = vpop.permute.xlu0 %4709
      %4711 = vrot.lane.b32.xlu0 %v3577, 48
      %v4712 = vpop.permute.xlu0 %4711
      %4713 = vrot.lane.b32.xlu0 %v3578, 48
      %v4714 = vpop.permute.xlu0 %4713
      %4715 = vrot.lane.b32.xlu0 %v3579, 48
      %v4716 = vpop.permute.xlu0 %4715
      %4717 = vrot.lane.b32.xlu0 %v3580, 48
      %v4718 = vpop.permute.xlu0 %4717
      %4719 = vrot.lane.b32.xlu0 %v3581, 48
      %v4720 = vpop.permute.xlu0 %4719
      %4721 = vrot.lane.b32.xlu0 %v3582, 48
      %v4722 = vpop.permute.xlu0 %4721
      %4723 = vrot.lane.b32.xlu0 %v3583, 48
      %v4724 = vpop.permute.xlu0 %4723
      %4725 = vrot.lane.b32.xlu0 %v3584, 48
      %v4726 = vpop.permute.xlu0 %4725
      %4727 = vrot.lane.b32.xlu0 %v3585, 48
      %v4728 = vpop.permute.xlu0 %4727
      %4729 = vrot.lane.b32.xlu0 %v3586, 48
      %v4730 = vpop.permute.xlu0 %4729
      %4731 = vrot.lane.b32.xlu0 %v3587, 48
      %v4732 = vpop.permute.xlu0 %4731
      %4733 = vrot.lane.b32.xlu0 %v3588, 48
      %v4734 = vpop.permute.xlu0 %4733
      %4735 = vrot.lane.b32.xlu0 %v3589, 48
      %v4736 = vpop.permute.xlu0 %4735
      %4737 = vrot.lane.b32.xlu0 %v3590, 48
      %v4738 = vpop.permute.xlu0 %4737
      %4739 = vrot.lane.b32.xlu0 %v3591, 48
      %v4740 = vpop.permute.xlu0 %4739
      %4741 = vrot.lane.b32.xlu0 %v3592, 48
      %v4742 = vpop.permute.xlu0 %4741
      %4743 = vrot.lane.b32.xlu0 %v3593, 48
      %v4744 = vpop.permute.xlu0 %4743
      %4745 = vrot.lane.b32.xlu0 %v3594, 48
      %v4746 = vpop.permute.xlu0 %4745
      %4811 = vrot.lane.b32.xlu0 %v3723, 64
      %v4812 = vpop.permute.xlu0 %4811
      %4813 = vrot.lane.b32.xlu0 %v3724, 64
      %v4814 = vpop.permute.xlu0 %4813
      %4815 = vrot.lane.b32.xlu0 %v3725, 64
      %v4816 = vpop.permute.xlu0 %4815
      %4817 = vrot.lane.b32.xlu0 %v3726, 64
      %v4818 = vpop.permute.xlu0 %4817
      %4819 = vrot.lane.b32.xlu0 %v3727, 64
      %v4820 = vpop.permute.xlu0 %4819
      %4821 = vrot.lane.b32.xlu0 %v3728, 64
      %v4822 = vpop.permute.xlu0 %4821
      %4823 = vrot.lane.b32.xlu0 %v3729, 64
      %v4824 = vpop.permute.xlu0 %4823
      %4825 = vrot.lane.b32.xlu0 %v3730, 64
      %v4826 = vpop.permute.xlu0 %4825
      %4827 = vrot.lane.b32.xlu0 %v3731, 64
      %v4828 = vpop.permute.xlu0 %4827
      %4829 = vrot.lane.b32.xlu0 %v3732, 64
      %v4830 = vpop.permute.xlu0 %4829
      %4831 = vrot.lane.b32.xlu0 %v3733, 64
      %v4832 = vpop.permute.xlu0 %4831
      %4833 = vrot.lane.b32.xlu0 %v3734, 64
      %v4834 = vpop.permute.xlu0 %4833
      %4835 = vrot.lane.b32.xlu0 %v3735, 64
      %v4836 = vpop.permute.xlu0 %4835
      %4837 = vrot.lane.b32.xlu0 %v3736, 64
      %v4838 = vpop.permute.xlu0 %4837
      %4839 = vrot.lane.b32.xlu0 %v3737, 64
      %v4840 = vpop.permute.xlu0 %4839
      %4841 = vrot.lane.b32.xlu0 %v3738, 64
      %v4842 = vpop.permute.xlu0 %4841
      %4843 = vrot.lane.b32.xlu0 %v3739, 64
      %v4844 = vpop.permute.xlu0 %4843
      %4845 = vrot.lane.b32.xlu0 %v3740, 64
      %v4846 = vpop.permute.xlu0 %4845
      %4847 = vrot.lane.b32.xlu0 %v3741, 64
      %v4848 = vpop.permute.xlu0 %4847
      %4849 = vrot.lane.b32.xlu0 %v3742, 64
      %v4850 = vpop.permute.xlu0 %4849
      %4851 = vrot.lane.b32.xlu0 %v3743, 64
      %v4852 = vpop.permute.xlu0 %4851
      %4853 = vrot.lane.b32.xlu0 %v3744, 64
      %v4854 = vpop.permute.xlu0 %4853
      %4855 = vrot.lane.b32.xlu0 %v3745, 64
      %v4856 = vpop.permute.xlu0 %4855
      %4857 = vrot.lane.b32.xlu0 %v3746, 64
      %v4858 = vpop.permute.xlu0 %4857
      %4859 = vrot.lane.b32.xlu0 %v3747, 64
      %v4860 = vpop.permute.xlu0 %4859
      %4861 = vrot.lane.b32.xlu0 %v3748, 64
      %v4862 = vpop.permute.xlu0 %4861
      %4863 = vrot.lane.b32.xlu0 %v3749, 64
      %v4864 = vpop.permute.xlu0 %4863
      %4865 = vrot.lane.b32.xlu0 %v3750, 64
      %v4866 = vpop.permute.xlu0 %4865
      %4867 = vrot.lane.b32.xlu0 %v3751, 64
      %v4868 = vpop.permute.xlu0 %4867
      %4869 = vrot.lane.b32.xlu0 %v3752, 64
      %v4870 = vpop.permute.xlu0 %4869
      %4871 = vrot.lane.b32.xlu0 %v3753, 64
      %v4872 = vpop.permute.xlu0 %4871
      %4873 = vrot.lane.b32.xlu0 %v3754, 64
      %v4874 = vpop.permute.xlu0 %4873
      %4939 = vrot.lane.b32.xlu0 %v3883, 80
      %v4940 = vpop.permute.xlu0 %4939
      %4941 = vrot.lane.b32.xlu0 %v3884, 80
      %v4942 = vpop.permute.xlu0 %4941
      %4943 = vrot.lane.b32.xlu0 %v3885, 80
      %v4944 = vpop.permute.xlu0 %4943
      %4945 = vrot.lane.b32.xlu0 %v3886, 80
      %v4946 = vpop.permute.xlu0 %4945
      %4947 = vrot.lane.b32.xlu0 %v3887, 80
      %v4948 = vpop.permute.xlu0 %4947
      %4949 = vrot.lane.b32.xlu0 %v3888, 80
      %v4950 = vpop.permute.xlu0 %4949
      %4951 = vrot.lane.b32.xlu0 %v3889, 80
      %v4952 = vpop.permute.xlu0 %4951
      %4953 = vrot.lane.b32.xlu0 %v3890, 80
      %v4954 = vpop.permute.xlu0 %4953
      %4955 = vrot.lane.b32.xlu0 %v3891, 80
      %v4956 = vpop.permute.xlu0 %4955
      %4957 = vrot.lane.b32.xlu0 %v3892, 80
      %v4958 = vpop.permute.xlu0 %4957
      %4959 = vrot.lane.b32.xlu0 %v3893, 80
      %v4960 = vpop.permute.xlu0 %4959
      %4961 = vrot.lane.b32.xlu0 %v3894, 80
      %v4962 = vpop.permute.xlu0 %4961
      %4963 = vrot.lane.b32.xlu0 %v3895, 80
      %v4964 = vpop.permute.xlu0 %4963
      %4965 = vrot.lane.b32.xlu0 %v3896, 80
      %v4966 = vpop.permute.xlu0 %4965
      %4967 = vrot.lane.b32.xlu0 %v3897, 80
      %v4968 = vpop.permute.xlu0 %4967
      %4969 = vrot.lane.b32.xlu0 %v3898, 80
      %v4970 = vpop.permute.xlu0 %4969
      %4971 = vrot.lane.b32.xlu0 %v3899, 80
      %v4972 = vpop.permute.xlu0 %4971
      %4973 = vrot.lane.b32.xlu0 %v3900, 80
      %v4974 = vpop.permute.xlu0 %4973
      %4975 = vrot.lane.b32.xlu0 %v3901, 80
      %v4976 = vpop.permute.xlu0 %4975
      %4977 = vrot.lane.b32.xlu0 %v3902, 80
      %v4978 = vpop.permute.xlu0 %4977
      %4979 = vrot.lane.b32.xlu0 %v3903, 80
      %v4980 = vpop.permute.xlu0 %4979
      %4981 = vrot.lane.b32.xlu0 %v3904, 80
      %v4982 = vpop.permute.xlu0 %4981
      %4983 = vrot.lane.b32.xlu0 %v3905, 80
      %v4984 = vpop.permute.xlu0 %4983
      %4985 = vrot.lane.b32.xlu0 %v3906, 80
      %v4986 = vpop.permute.xlu0 %4985
      %4987 = vrot.lane.b32.xlu0 %v3907, 80
      %v4988 = vpop.permute.xlu0 %4987
      %4989 = vrot.lane.b32.xlu0 %v3908, 80
      %v4990 = vpop.permute.xlu0 %4989
      %4991 = vrot.lane.b32.xlu0 %v3909, 80
      %v4992 = vpop.permute.xlu0 %4991
      %4993 = vrot.lane.b32.xlu0 %v3910, 80
      %v4994 = vpop.permute.xlu0 %4993
      %4995 = vrot.lane.b32.xlu0 %v3911, 80
      %v4996 = vpop.permute.xlu0 %4995
      %4997 = vrot.lane.b32.xlu0 %v3912, 80
      %v4998 = vpop.permute.xlu0 %4997
      %4999 = vrot.lane.b32.xlu0 %v3913, 80
      %v5000 = vpop.permute.xlu0 %4999
      %5001 = vrot.lane.b32.xlu0 %v3914, 80
      %v5002 = vpop.permute.xlu0 %5001
      %5067 = vrot.lane.b32.xlu0 %v4043, 96
      %v5068 = vpop.permute.xlu0 %5067
      %5069 = vrot.lane.b32.xlu0 %v4044, 96
      %v5070 = vpop.permute.xlu0 %5069
      %5071 = vrot.lane.b32.xlu0 %v4045, 96
      %v5072 = vpop.permute.xlu0 %5071
      %5073 = vrot.lane.b32.xlu0 %v4046, 96
      %v5074 = vpop.permute.xlu0 %5073
      %5075 = vrot.lane.b32.xlu0 %v4047, 96
      %v5076 = vpop.permute.xlu0 %5075
      %5077 = vrot.lane.b32.xlu0 %v4048, 96
      %v5078 = vpop.permute.xlu0 %5077
      %5079 = vrot.lane.b32.xlu0 %v4049, 96
      %v5080 = vpop.permute.xlu0 %5079
      %5081 = vrot.lane.b32.xlu0 %v4050, 96
      %v5082 = vpop.permute.xlu0 %5081
      %5083 = vrot.lane.b32.xlu0 %v4051, 96
      %v5084 = vpop.permute.xlu0 %5083
      %5085 = vrot.lane.b32.xlu0 %v4052, 96
      %v5086 = vpop.permute.xlu0 %5085
      %5087 = vrot.lane.b32.xlu0 %v4053, 96
      %v5088 = vpop.permute.xlu0 %5087
      %5089 = vrot.lane.b32.xlu0 %v4054, 96
      %v5090 = vpop.permute.xlu0 %5089
      %5091 = vrot.lane.b32.xlu0 %v4055, 96
      %v5092 = vpop.permute.xlu0 %5091
      %5093 = vrot.lane.b32.xlu0 %v4056, 96
      %v5094 = vpop.permute.xlu0 %5093
      %5095 = vrot.lane.b32.xlu0 %v4057, 96
      %v5096 = vpop.permute.xlu0 %5095
      %5097 = vrot.lane.b32.xlu0 %v4058, 96
      %v5098 = vpop.permute.xlu0 %5097
      %5099 = vrot.lane.b32.xlu0 %v4059, 96
      %v5100 = vpop.permute.xlu0 %5099
      %5101 = vrot.lane.b32.xlu0 %v4060, 96
      %v5102 = vpop.permute.xlu0 %5101
      %5103 = vrot.lane.b32.xlu0 %v4061, 96
      %v5104 = vpop.permute.xlu0 %5103
      %5105 = vrot.lane.b32.xlu0 %v4062, 96
      %v5106 = vpop.permute.xlu0 %5105
      %5107 = vrot.lane.b32.xlu0 %v4063, 96
      %v5108 = vpop.permute.xlu0 %5107
      %5109 = vrot.lane.b32.xlu0 %v4064, 96
      %v5110 = vpop.permute.xlu0 %5109
      %5111 = vrot.lane.b32.xlu0 %v4065, 96
      %v5112 = vpop.permute.xlu0 %5111
      %5113 = vrot.lane.b32.xlu0 %v4066, 96
      %v5114 = vpop.permute.xlu0 %5113
      %5115 = vrot.lane.b32.xlu0 %v4067, 96
      %v5116 = vpop.permute.xlu0 %5115
      %5117 = vrot.lane.b32.xlu0 %v4068, 96
      %v5118 = vpop.permute.xlu0 %5117
      %5119 = vrot.lane.b32.xlu0 %v4069, 96
      %v5120 = vpop.permute.xlu0 %5119
      %5121 = vrot.lane.b32.xlu0 %v4070, 96
      %v5122 = vpop.permute.xlu0 %5121
      %5123 = vrot.lane.b32.xlu0 %v4071, 96
      %v5124 = vpop.permute.xlu0 %5123
      %5125 = vrot.lane.b32.xlu0 %v4072, 96
      %v5126 = vpop.permute.xlu0 %5125
      %5127 = vrot.lane.b32.xlu0 %v4073, 96
      %v5128 = vpop.permute.xlu0 %5127
      %5129 = vrot.lane.b32.xlu0 %v4074, 96
      %v5130 = vpop.permute.xlu0 %5129
      %5195 = vrot.lane.b32.xlu0 %v4203, 112
      %v5196 = vpop.permute.xlu0 %5195
      %5197 = vrot.lane.b32.xlu0 %v4204, 112
      %v5198 = vpop.permute.xlu0 %5197
      %5199 = vrot.lane.b32.xlu0 %v4205, 112
      %v5200 = vpop.permute.xlu0 %5199
      %5201 = vrot.lane.b32.xlu0 %v4206, 112
      %v5202 = vpop.permute.xlu0 %5201
      %5203 = vrot.lane.b32.xlu0 %v4207, 112
      %v5204 = vpop.permute.xlu0 %5203
      %5205 = vrot.lane.b32.xlu0 %v4208, 112
      %v5206 = vpop.permute.xlu0 %5205
      %5207 = vrot.lane.b32.xlu0 %v4209, 112
      %v5208 = vpop.permute.xlu0 %5207
      %5209 = vrot.lane.b32.xlu0 %v4210, 112
      %v5210 = vpop.permute.xlu0 %5209
      %5211 = vrot.lane.b32.xlu0 %v4211, 112
      %v5212 = vpop.permute.xlu0 %5211
      %5213 = vrot.lane.b32.xlu0 %v4212, 112
      %v5214 = vpop.permute.xlu0 %5213
      %5215 = vrot.lane.b32.xlu0 %v4213, 112
      %v5216 = vpop.permute.xlu0 %5215
      %5217 = vrot.lane.b32.xlu0 %v4214, 112
      %v5218 = vpop.permute.xlu0 %5217
      %5219 = vrot.lane.b32.xlu0 %v4215, 112
      %v5220 = vpop.permute.xlu0 %5219
      %5221 = vrot.lane.b32.xlu0 %v4216, 112
      %v5222 = vpop.permute.xlu0 %5221
      %5223 = vrot.lane.b32.xlu0 %v4217, 112
      %v5224 = vpop.permute.xlu0 %5223
      %5225 = vrot.lane.b32.xlu0 %v4218, 112
      %v5226 = vpop.permute.xlu0 %5225
      %5227 = vrot.lane.b32.xlu0 %v4219, 112
      %v5228 = vpop.permute.xlu0 %5227
      %5229 = vrot.lane.b32.xlu0 %v4220, 112
      %v5230 = vpop.permute.xlu0 %5229
      %5231 = vrot.lane.b32.xlu0 %v4221, 112
      %v5232 = vpop.permute.xlu0 %5231
      %5233 = vrot.lane.b32.xlu0 %v4222, 112
      %v5234 = vpop.permute.xlu0 %5233
      %5235 = vrot.lane.b32.xlu0 %v4223, 112
      %v5236 = vpop.permute.xlu0 %5235
      %5237 = vrot.lane.b32.xlu0 %v4224, 112
      %v5238 = vpop.permute.xlu0 %5237
      %5239 = vrot.lane.b32.xlu0 %v4225, 112
      %v5240 = vpop.permute.xlu0 %5239
      %5241 = vrot.lane.b32.xlu0 %v4226, 112
      %v5242 = vpop.permute.xlu0 %5241
      %5243 = vrot.lane.b32.xlu0 %v4227, 112
      %v5244 = vpop.permute.xlu0 %5243
      %5245 = vrot.lane.b32.xlu0 %v4228, 112
      %v5246 = vpop.permute.xlu0 %5245
      %5247 = vrot.lane.b32.xlu0 %v4229, 112
      %v5248 = vpop.permute.xlu0 %5247
      %5249 = vrot.lane.b32.xlu0 %v4230, 112
      %v5250 = vpop.permute.xlu0 %5249
      %5251 = vrot.lane.b32.xlu0 %v4231, 112
      %v5252 = vpop.permute.xlu0 %5251
      %5253 = vrot.lane.b32.xlu0 %v4232, 112
      %v5254 = vpop.permute.xlu0 %5253
      %5255 = vrot.lane.b32.xlu0 %v4233, 112
      %v5256 = vpop.permute.xlu0 %5255
      %5257 = vrot.lane.b32.xlu0 %v4234, 112
      %v5258 = vpop.permute.xlu0 %5257
      %v5291 = vsel %vm907, %v3083, %v4428
      %v5292 = vsel %vm907, %v3084, %v4430
      %v5293 = vsel %vm907, %v3085, %v4432
      %v5294 = vsel %vm907, %v3086, %v4434
      %v5295 = vsel %vm907, %v3087, %v4436
      %v5296 = vsel %vm907, %v3088, %v4438
      %v5297 = vsel %vm907, %v3089, %v4440
      %v5298 = vsel %vm907, %v3090, %v4442
      %v5299 = vsel %vm907, %v3091, %v4444
      %v5300 = vsel %vm907, %v3092, %v4446
      %v5301 = vsel %vm907, %v3093, %v4448
      %v5302 = vsel %vm907, %v3094, %v4450
      %v5303 = vsel %vm907, %v3095, %v4452
      %v5304 = vsel %vm907, %v3096, %v4454
      %v5305 = vsel %vm907, %v3097, %v4456
      %v5306 = vsel %vm907, %v3098, %v4458
      %v5307 = vsel %vm907, %v3099, %v4460
      %v5308 = vsel %vm907, %v3100, %v4462
      %v5309 = vsel %vm907, %v3101, %v4464
      %v5310 = vsel %vm907, %v3102, %v4466
      %v5311 = vsel %vm907, %v3103, %v4468
      %v5312 = vsel %vm907, %v3104, %v4470
      %v5313 = vsel %vm907, %v3105, %v4472
      %v5314 = vsel %vm907, %v3106, %v4474
      %v5315 = vsel %vm907, %v3107, %v4476
      %v5316 = vsel %vm907, %v3108, %v4478
      %v5317 = vsel %vm907, %v3109, %v4480
      %v5318 = vsel %vm907, %v3110, %v4482
      %v5319 = vsel %vm907, %v3111, %v4484
      %v5320 = vsel %vm907, %v3112, %v4486
      %v5321 = vsel %vm907, %v3113, %v4488
      %v5322 = vsel %vm907, %v3114, %v4490
      %v5323 = vsel %vm2213, %v5291, %v4556
      %v5324 = vsel %vm2213, %v5292, %v4558
      %v5325 = vsel %vm2213, %v5293, %v4560
      %v5326 = vsel %vm2213, %v5294, %v4562
      %v5327 = vsel %vm2213, %v5295, %v4564
      %v5328 = vsel %vm2213, %v5296, %v4566
      %v5329 = vsel %vm2213, %v5297, %v4568
      %v5330 = vsel %vm2213, %v5298, %v4570
      %v5331 = vsel %vm2213, %v5299, %v4572
      %v5332 = vsel %vm2213, %v5300, %v4574
      %v5333 = vsel %vm2213, %v5301, %v4576
      %v5334 = vsel %vm2213, %v5302, %v4578
      %v5335 = vsel %vm2213, %v5303, %v4580
      %v5336 = vsel %vm2213, %v5304, %v4582
      %v5337 = vsel %vm2213, %v5305, %v4584
      %v5338 = vsel %vm2213, %v5306, %v4586
      %v5339 = vsel %vm2213, %v5307, %v4588
      %v5340 = vsel %vm2213, %v5308, %v4590
      %v5341 = vsel %vm2213, %v5309, %v4592
      %v5342 = vsel %vm2213, %v5310, %v4594
      %v5343 = vsel %vm2213, %v5311, %v4596
      %v5344 = vsel %vm2213, %v5312, %v4598
      %v5345 = vsel %vm2213, %v5313, %v4600
      %v5346 = vsel %vm2213, %v5314, %v4602
      %v5347 = vsel %vm2213, %v5315, %v4604
      %v5348 = vsel %vm2213, %v5316, %v4606
      %v5349 = vsel %vm2213, %v5317, %v4608
      %v5350 = vsel %vm2213, %v5318, %v4610
      %v5351 = vsel %vm2213, %v5319, %v4612
      %v5352 = vsel %vm2213, %v5320, %v4614
      %v5353 = vsel %vm2213, %v5321, %v4616
      %v5354 = vsel %vm2213, %v5322, %v4618
      %v5355 = vsel %vm2246, %v5323, %v4684
      %v5356 = vsel %vm2246, %v5324, %v4686
      %v5357 = vsel %vm2246, %v5325, %v4688
      %v5358 = vsel %vm2246, %v5326, %v4690
      %v5359 = vsel %vm2246, %v5327, %v4692
      %v5360 = vsel %vm2246, %v5328, %v4694
      %v5361 = vsel %vm2246, %v5329, %v4696
      %v5362 = vsel %vm2246, %v5330, %v4698
      %v5363 = vsel %vm2246, %v5331, %v4700
      %v5364 = vsel %vm2246, %v5332, %v4702
      %v5365 = vsel %vm2246, %v5333, %v4704
      %v5366 = vsel %vm2246, %v5334, %v4706
      %v5367 = vsel %vm2246, %v5335, %v4708
      %v5368 = vsel %vm2246, %v5336, %v4710
      %v5369 = vsel %vm2246, %v5337, %v4712
      %v5370 = vsel %vm2246, %v5338, %v4714
      %v5371 = vsel %vm2246, %v5339, %v4716
      %v5372 = vsel %vm2246, %v5340, %v4718
      %v5373 = vsel %vm2246, %v5341, %v4720
      %v5374 = vsel %vm2246, %v5342, %v4722
      %v5375 = vsel %vm2246, %v5343, %v4724
      %v5376 = vsel %vm2246, %v5344, %v4726
      %v5377 = vsel %vm2246, %v5345, %v4728
      %v5378 = vsel %vm2246, %v5346, %v4730
      %v5379 = vsel %vm2246, %v5347, %v4732
      %v5380 = vsel %vm2246, %v5348, %v4734
      %v5381 = vsel %vm2246, %v5349, %v4736
      %v5382 = vsel %vm2246, %v5350, %v4738
      %v5383 = vsel %vm2246, %v5351, %v4740
      %v5384 = vsel %vm2246, %v5352, %v4742
      %v5385 = vsel %vm2246, %v5353, %v4744
      %v5386 = vsel %vm2246, %v5354, %v4746
      %v5387 = vsel %vm2279, %v5355, %v4812
      %v5388 = vsel %vm2279, %v5356, %v4814
      %v5389 = vsel %vm2279, %v5357, %v4816
      %v5390 = vsel %vm2279, %v5358, %v4818
      %v5391 = vsel %vm2279, %v5359, %v4820
      %v5392 = vsel %vm2279, %v5360, %v4822
      %v5393 = vsel %vm2279, %v5361, %v4824
      %v5394 = vsel %vm2279, %v5362, %v4826
      %v5395 = vsel %vm2279, %v5363, %v4828
      %v5396 = vsel %vm2279, %v5364, %v4830
      %v5397 = vsel %vm2279, %v5365, %v4832
      %v5398 = vsel %vm2279, %v5366, %v4834
      %v5399 = vsel %vm2279, %v5367, %v4836
      %v5400 = vsel %vm2279, %v5368, %v4838
      %v5401 = vsel %vm2279, %v5369, %v4840
      %v5402 = vsel %vm2279, %v5370, %v4842
      %v5403 = vsel %vm2279, %v5371, %v4844
      %v5404 = vsel %vm2279, %v5372, %v4846
      %v5405 = vsel %vm2279, %v5373, %v4848
      %v5406 = vsel %vm2279, %v5374, %v4850
      %v5407 = vsel %vm2279, %v5375, %v4852
      %v5408 = vsel %vm2279, %v5376, %v4854
      %v5409 = vsel %vm2279, %v5377, %v4856
      %v5410 = vsel %vm2279, %v5378, %v4858
      %v5411 = vsel %vm2279, %v5379, %v4860
      %v5412 = vsel %vm2279, %v5380, %v4862
      %v5413 = vsel %vm2279, %v5381, %v4864
      %v5414 = vsel %vm2279, %v5382, %v4866
      %v5415 = vsel %vm2279, %v5383, %v4868
      %v5416 = vsel %vm2279, %v5384, %v4870
      %v5417 = vsel %vm2279, %v5385, %v4872
      %v5418 = vsel %vm2279, %v5386, %v4874
      %v5419 = vsel %vm2312, %v5387, %v4940
      %v5420 = vsel %vm2312, %v5388, %v4942
      %v5421 = vsel %vm2312, %v5389, %v4944
      %v5422 = vsel %vm2312, %v5390, %v4946
      %v5423 = vsel %vm2312, %v5391, %v4948
      %v5424 = vsel %vm2312, %v5392, %v4950
      %v5425 = vsel %vm2312, %v5393, %v4952
      %v5426 = vsel %vm2312, %v5394, %v4954
      %v5427 = vsel %vm2312, %v5395, %v4956
      %v5428 = vsel %vm2312, %v5396, %v4958
      %v5429 = vsel %vm2312, %v5397, %v4960
      %v5430 = vsel %vm2312, %v5398, %v4962
      %v5431 = vsel %vm2312, %v5399, %v4964
      %v5432 = vsel %vm2312, %v5400, %v4966
      %v5433 = vsel %vm2312, %v5401, %v4968
      %v5434 = vsel %vm2312, %v5402, %v4970
      %v5435 = vsel %vm2312, %v5403, %v4972
      %v5436 = vsel %vm2312, %v5404, %v4974
      %v5437 = vsel %vm2312, %v5405, %v4976
      %v5438 = vsel %vm2312, %v5406, %v4978
      %v5439 = vsel %vm2312, %v5407, %v4980
      %v5440 = vsel %vm2312, %v5408, %v4982
      %v5441 = vsel %vm2312, %v5409, %v4984
      %v5442 = vsel %vm2312, %v5410, %v4986
      %v5443 = vsel %vm2312, %v5411, %v4988
      %v5444 = vsel %vm2312, %v5412, %v4990
      %v5445 = vsel %vm2312, %v5413, %v4992
      %v5446 = vsel %vm2312, %v5414, %v4994
      %v5447 = vsel %vm2312, %v5415, %v4996
      %v5448 = vsel %vm2312, %v5416, %v4998
      %v5449 = vsel %vm2312, %v5417, %v5000
      %v5450 = vsel %vm2312, %v5418, %v5002
      %v5451 = vsel %vm2345, %v5419, %v5068
      %v5452 = vsel %vm2345, %v5420, %v5070
      %v5453 = vsel %vm2345, %v5421, %v5072
      %v5454 = vsel %vm2345, %v5422, %v5074
      %v5455 = vsel %vm2345, %v5423, %v5076
      %v5456 = vsel %vm2345, %v5424, %v5078
      %v5457 = vsel %vm2345, %v5425, %v5080
      %v5458 = vsel %vm2345, %v5426, %v5082
      %v5459 = vsel %vm2345, %v5427, %v5084
      %v5460 = vsel %vm2345, %v5428, %v5086
      %v5461 = vsel %vm2345, %v5429, %v5088
      %v5462 = vsel %vm2345, %v5430, %v5090
      %v5463 = vsel %vm2345, %v5431, %v5092
      %v5464 = vsel %vm2345, %v5432, %v5094
      %v5465 = vsel %vm2345, %v5433, %v5096
      %v5466 = vsel %vm2345, %v5434, %v5098
      %v5467 = vsel %vm2345, %v5435, %v5100
      %v5468 = vsel %vm2345, %v5436, %v5102
      %v5469 = vsel %vm2345, %v5437, %v5104
      %v5470 = vsel %vm2345, %v5438, %v5106
      %v5471 = vsel %vm2345, %v5439, %v5108
      %v5472 = vsel %vm2345, %v5440, %v5110
      %v5473 = vsel %vm2345, %v5441, %v5112
      %v5474 = vsel %vm2345, %v5442, %v5114
      %v5475 = vsel %vm2345, %v5443, %v5116
      %v5476 = vsel %vm2345, %v5444, %v5118
      %v5477 = vsel %vm2345, %v5445, %v5120
      %v5478 = vsel %vm2345, %v5446, %v5122
      %v5479 = vsel %vm2345, %v5447, %v5124
      %v5480 = vsel %vm2345, %v5448, %v5126
      %v5481 = vsel %vm2345, %v5449, %v5128
      %v5482 = vsel %vm2345, %v5450, %v5130
      %v5483 = vsel %vm2378, %v5451, %v5196
      %v5484 = vsel %vm2378, %v5452, %v5198
      %v5485 = vsel %vm2378, %v5453, %v5200
      %v5486 = vsel %vm2378, %v5454, %v5202
      %v5487 = vsel %vm2378, %v5455, %v5204
      %v5488 = vsel %vm2378, %v5456, %v5206
      %v5489 = vsel %vm2378, %v5457, %v5208
      %v5490 = vsel %vm2378, %v5458, %v5210
      %v5491 = vsel %vm2378, %v5459, %v5212
      %v5492 = vsel %vm2378, %v5460, %v5214
      %v5493 = vsel %vm2378, %v5461, %v5216
      %v5494 = vsel %vm2378, %v5462, %v5218
      %v5495 = vsel %vm2378, %v5463, %v5220
      %v5496 = vsel %vm2378, %v5464, %v5222
      %v5497 = vsel %vm2378, %v5465, %v5224
      %v5498 = vsel %vm2378, %v5466, %v5226
      %v5499 = vsel %vm2378, %v5467, %v5228
      %v5500 = vsel %vm2378, %v5468, %v5230
      %v5501 = vsel %vm2378, %v5469, %v5232
      %v5502 = vsel %vm2378, %v5470, %v5234
      %v5503 = vsel %vm2378, %v5471, %v5236
      %v5504 = vsel %vm2378, %v5472, %v5238
      %v5505 = vsel %vm2378, %v5473, %v5240
      %v5506 = vsel %vm2378, %v5474, %v5242
      %v5507 = vsel %vm2378, %v5475, %v5244
      %v5508 = vsel %vm2378, %v5476, %v5246
      %v5509 = vsel %vm2378, %v5477, %v5248
      %v5510 = vsel %vm2378, %v5478, %v5250
      %v5511 = vsel %vm2378, %v5479, %v5252
      %v5512 = vsel %vm2378, %v5480, %v5254
      %v5513 = vsel %vm2378, %v5481, %v5256
      %v5514 = vsel %vm2378, %v5482, %v5258
      %v5515 = vpack.c.bf16 %v5484, %v5483
      %v5516 = vpack.c.bf16 %v4364, %v4363
      %v5517 = vpack.c.bf16 %v5486, %v5485
      %v5518 = vpack.c.bf16 %v4366, %v4365
      %v5519 = vpack.c.bf16 %v5488, %v5487
      %v5520 = vpack.c.bf16 %v4368, %v4367
      %v5521 = vpack.c.bf16 %v5490, %v5489
      %v5522 = vpack.c.bf16 %v4370, %v4369
      %v5523 = vpack.c.bf16 %v5492, %v5491
      %v5524 = vpack.c.bf16 %v4372, %v4371
      %v5525 = vpack.c.bf16 %v5494, %v5493
      %v5526 = vpack.c.bf16 %v4374, %v4373
      %v5527 = vpack.c.bf16 %v5496, %v5495
      %v5528 = vpack.c.bf16 %v4376, %v4375
      %v5529 = vpack.c.bf16 %v5498, %v5497
      %v5530 = vpack.c.bf16 %v4378, %v4377
      %v5531 = vpack.c.bf16 %v5500, %v5499
      %v5532 = vpack.c.bf16 %v4380, %v4379
      %v5533 = vpack.c.bf16 %v5502, %v5501
      %v5534 = vpack.c.bf16 %v4382, %v4381
      %v5535 = vpack.c.bf16 %v5504, %v5503
      %v5536 = vpack.c.bf16 %v4384, %v4383
      %v5537 = vpack.c.bf16 %v5506, %v5505
      %v5538 = vpack.c.bf16 %v4386, %v4385
      %v5539 = vpack.c.bf16 %v5508, %v5507
      %v5540 = vpack.c.bf16 %v4388, %v4387
      %v5541 = vpack.c.bf16 %v5510, %v5509
      %v5542 = vpack.c.bf16 %v4390, %v4389
      %v5543 = vpack.c.bf16 %v5512, %v5511
      %v5544 = vpack.c.bf16 %v4392, %v4391
      %v5545 = vpack.c.bf16 %v5514, %v5513
      %v5546 = vpack.c.bf16 %v4394, %v4393
      %v5547 = vld [vmem:[%s6] sm:$0xf]
      %v5548 = vld [vmem:[%s6 + $0x4] sm:$0xf]
      %v5549 = vld [vmem:[%s6 + $0x8] sm:$0xf]
      %v5550 = vld [vmem:[%s6 + $0xc] sm:$0xf]
      %v5551 = vld [vmem:[%s6 + $0x10] sm:$0xf]
      %v5552 = vld [vmem:[%s6 + $0x14] sm:$0xf]
      %v5553 = vld [vmem:[%s6 + $0x18] sm:$0xf]
      %v5554 = vld [vmem:[%s6 + $0x1c] sm:$0xf]
      %v5555 = vld [vmem:[%s6 + $0x20] sm:$0xf]
      %v5556 = vld [vmem:[%s6 + $0x24] sm:$0xf]
      %v5557 = vld [vmem:[%s6 + $0x28] sm:$0xf]
      %v5558 = vld [vmem:[%s6 + $0x2c] sm:$0xf]
      %v5559 = vld [vmem:[%s6 + $0x30] sm:$0xf]
      %v5560 = vld [vmem:[%s6 + $0x34] sm:$0xf]
      %v5561 = vld [vmem:[%s6 + $0x38] sm:$0xf]
      %v5562 = vld [vmem:[%s6 + $0x3c] sm:$0xf]
      %v5563 = vld [vmem:[%s6 + $0x40] sm:$0xf]
      %v5564 = vld [vmem:[%s6 + $0x44] sm:$0xf]
      %v5565 = vld [vmem:[%s7] sm:$0x1]
      %v5567 = vlaneseq
      %v5568 = vshrl.u32 %v5567, 7
      %v5569 = vsub.s32 0, %v5568
      %v5570 = vrot.slane %v5565, %v5569
      %v5590 = vunpack.c.l.b16 %v5547
      %v5591 = vunpack.c.l.b16 %v5548
      %v5592 = vunpack.c.l.b16 %v5549
      %v5593 = vunpack.c.l.b16 %v5550
      %v5594 = vunpack.c.l.b16 %v5551
      %v5595 = vunpack.c.l.b16 %v5552
      %v5596 = vunpack.c.l.b16 %v5553
      %v5597 = vunpack.c.l.b16 %v5554
      %v5598 = vunpack.c.l.b16 %v5555
      %v5599 = vunpack.c.l.b16 %v5556
      %v5600 = vunpack.c.l.b16 %v5557
      %v5601 = vunpack.c.l.b16 %v5558
      %v5602 = vunpack.c.l.b16 %v5559
      %v5603 = vunpack.c.l.b16 %v5560
      %v5604 = vunpack.c.l.b16 %v5561
      %v5605 = vunpack.c.l.b16 %v5562
      %v5606 = vunpack.c.l.b16 %v5563
      %v5607 = vunpack.c.l.b16 %v5564
      %v5608 = vpack.c.b16 %v5591, %v5590
      %v5609 = vpack.c.b16 %v5593, %v5592
      %v5610 = vpack.c.b16 %v5595, %v5594
      %v5611 = vpack.c.b16 %v5597, %v5596
      %v5612 = vpack.c.b16 %v5599, %v5598
      %v5613 = vpack.c.b16 %v5601, %v5600
      %v5614 = vpack.c.b16 %v5603, %v5602
      %v5615 = vpack.c.b16 %v5605, %v5604
      %v5616 = vpack.c.b16 %v5607, %v5606
      %v5627 = vsel %vm907, %v5516, 0
      %v5630 = vsel %vm907, %v5518, 0
      %v5633 = vsel %vm907, %v5520, 0
      %v5636 = vsel %vm907, %v5522, 0
      %v5639 = vsel %vm907, %v5524, 0
      %v5642 = vsel %vm907, %v5526, 0
      %v5645 = vsel %vm907, %v5528, 0
      %v5648 = vsel %vm907, %v5530, 0
      %v5651 = vsel %vm907, %v5532, 0
      %v5654 = vsel %vm907, %v5534, 0
      %v5657 = vsel %vm907, %v5536, 0
      %v5660 = vsel %vm907, %v5538, 0
      %v5663 = vsel %vm907, %v5540, 0
      %v5666 = vsel %vm907, %v5542, 0
      %v5669 = vsel %vm907, %v5544, 0
      %v5672 = vsel %vm907, %v5546, 0
      %5674 = vmatprep.subr.bf16.mxu0 0
      %5675 = vmatpush1.bf16.msra.mxu0 %v5615
      %5676 = vmatprep.subr.bf16.mxu0 0
      %5677 = vmatpush1.bf16.msra.mxu0 %v5614
      %5678 = vmatprep.subr.bf16.mxu0 0
      %5679 = vmatpush1.bf16.msra.mxu0 %v5613
      %5680 = vmatprep.subr.bf16.mxu0 0
      %5681 = vmatpush1.bf16.msra.mxu0 %v5612
      %5682 = vmatprep.subr.bf16.mxu0 0
      %5683 = vmatpush1.bf16.msra.mxu0 %v5611
      %5684 = vmatprep.subr.bf16.mxu0 0
      %5685 = vmatpush1.bf16.msra.mxu0 %v5610
      %5686 = vmatprep.subr.bf16.mxu0 0
      %5687 = vmatpush1.bf16.msra.mxu0 %v5609
      %5688 = vmatprep.subr.bf16.mxu0 0
      %5689 = vmatpush1.bf16.msra.mxu0 %v5608
      %5690 = vmatprep.subr.bf16.mxu0 0
      %5691 = vmatpush2.bf16.msra.mxu0 0
      %5692 = vmatprep.subr.bf16.mxu0 0
      %5693 = vmatpush2.bf16.msra.mxu0 0
      %5694 = vmatprep.subr.bf16.mxu0 0
      %5695 = vmatpush2.bf16.msra.mxu0 0
      %5696 = vmatprep.subr.bf16.mxu0 0
      %5697 = vmatpush2.bf16.msra.mxu0 0
      %5698 = vmatprep.subr.bf16.mxu0 0
      %5699 = vmatpush2.bf16.msra.mxu0 0
      %5700 = vmatprep.subr.bf16.mxu0 0
      %5701 = vmatpush2.bf16.msra.mxu0 0
      %5702 = vmatprep.subr.bf16.mxu0 0
      %5703 = vmatpush2.bf16.msra.mxu0 0
      %5704 = vmatprep.subr.bf16.mxu0 0
      %5705 = vmatpush2.bf16.msra.mxu0 %v5616
      %5706 = vmatprep.mubr.bf16.mxu0 %v5627
      %5707 = vmatmul.mubr.bf16.gmra.mxu0 %v5515
      %v5708 = vpop.f32.mrf.mxu0
      %v5709 = vadd.f32 %v5570, %v5708
      %v5710 = vpop.f32.mrf.mxu0
      %v5711 = vpop.f32.mrf.mxu0
      %v5712 = vadd.f32 %v5570, %v5711
      %v5713 = vpop.f32.mrf.mxu0
      %5714 = vmatprep.mubr.bf16.mxu0 %v5630
      %5715 = vmatmul.mubr.bf16.gmra.mxu0 %v5517
      %v5716 = vpop.f32.mrf.mxu0
      %v5717 = vadd.f32 %v5570, %v5716
      %v5718 = vpop.f32.mrf.mxu0
      %v5719 = vpop.f32.mrf.mxu0
      %v5720 = vadd.f32 %v5570, %v5719
      %v5721 = vpop.f32.mrf.mxu0
      %5722 = vmatprep.mubr.bf16.mxu0 %v5633
      %5723 = vmatmul.mubr.bf16.gmra.mxu0 %v5519
      %v5724 = vpop.f32.mrf.mxu0
      %v5725 = vadd.f32 %v5570, %v5724
      %v5726 = vpop.f32.mrf.mxu0
      %v5727 = vpop.f32.mrf.mxu0
      %v5728 = vadd.f32 %v5570, %v5727
      %v5729 = vpop.f32.mrf.mxu0
      %5730 = vmatprep.mubr.bf16.mxu0 %v5636
      %5731 = vmatmul.mubr.bf16.gmra.mxu0 %v5521
      %v5732 = vpop.f32.mrf.mxu0
      %v5733 = vadd.f32 %v5570, %v5732
      %v5734 = vpop.f32.mrf.mxu0
      %v5735 = vpop.f32.mrf.mxu0
      %v5736 = vadd.f32 %v5570, %v5735
      %v5737 = vpop.f32.mrf.mxu0
      %5738 = vmatprep.mubr.bf16.mxu0 %v5639
      %5739 = vmatmul.mubr.bf16.gmra.mxu0 %v5523
      %v5740 = vpop.f32.mrf.mxu0
      %v5741 = vadd.f32 %v5570, %v5740
      %v5742 = vpop.f32.mrf.mxu0
      %v5743 = vpop.f32.mrf.mxu0
      %v5744 = vadd.f32 %v5570, %v5743
      %v5745 = vpop.f32.mrf.mxu0
      %5746 = vmatprep.mubr.bf16.mxu0 %v5642
      %5747 = vmatmul.mubr.bf16.gmra.mxu0 %v5525
      %v5748 = vpop.f32.mrf.mxu0
      %v5749 = vadd.f32 %v5570, %v5748
      %v5750 = vpop.f32.mrf.mxu0
      %v5751 = vpop.f32.mrf.mxu0
      %v5752 = vadd.f32 %v5570, %v5751
      %v5753 = vpop.f32.mrf.mxu0
      %5754 = vmatprep.mubr.bf16.mxu0 %v5645
      %5755 = vmatmul.mubr.bf16.gmra.mxu0 %v5527
      %v5756 = vpop.f32.mrf.mxu0
      %v5757 = vadd.f32 %v5570, %v5756
      %v5758 = vpop.f32.mrf.mxu0
      %v5759 = vpop.f32.mrf.mxu0
      %v5760 = vadd.f32 %v5570, %v5759
      %v5761 = vpop.f32.mrf.mxu0
      %5762 = vmatprep.mubr.bf16.mxu0 %v5648
      %5763 = vmatmul.mubr.bf16.gmra.mxu0 %v5529
      %v5764 = vpop.f32.mrf.mxu0
      %v5765 = vadd.f32 %v5570, %v5764
      %v5766 = vpop.f32.mrf.mxu0
      %v5767 = vpop.f32.mrf.mxu0
      %v5768 = vadd.f32 %v5570, %v5767
      %v5769 = vpop.f32.mrf.mxu0
      %5770 = vmatprep.mubr.bf16.mxu0 %v5651
      %5771 = vmatmul.mubr.bf16.gmra.mxu0 %v5531
      %v5772 = vpop.f32.mrf.mxu0
      %v5773 = vadd.f32 %v5570, %v5772
      %v5774 = vpop.f32.mrf.mxu0
      %v5775 = vpop.f32.mrf.mxu0
      %v5776 = vadd.f32 %v5570, %v5775
      %v5777 = vpop.f32.mrf.mxu0
      %5778 = vmatprep.mubr.bf16.mxu0 %v5654
      %5779 = vmatmul.mubr.bf16.gmra.mxu0 %v5533
      %v5780 = vpop.f32.mrf.mxu0
      %v5781 = vadd.f32 %v5570, %v5780
      %v5782 = vpop.f32.mrf.mxu0
      %v5783 = vpop.f32.mrf.mxu0
      %v5784 = vadd.f32 %v5570, %v5783
      %v5785 = vpop.f32.mrf.mxu0
      %5786 = vmatprep.mubr.bf16.mxu0 %v5657
      %5787 = vmatmul.mubr.bf16.gmra.mxu0 %v5535
      %v5788 = vpop.f32.mrf.mxu0
      %v5789 = vadd.f32 %v5570, %v5788
      %v5790 = vpop.f32.mrf.mxu0
      %v5791 = vpop.f32.mrf.mxu0
      %v5792 = vadd.f32 %v5570, %v5791
      %v5793 = vpop.f32.mrf.mxu0
      %5794 = vmatprep.mubr.bf16.mxu0 %v5660
      %5795 = vmatmul.mubr.bf16.gmra.mxu0 %v5537
      %v5796 = vpop.f32.mrf.mxu0
      %v5797 = vadd.f32 %v5570, %v5796
      %v5798 = vpop.f32.mrf.mxu0
      %v5799 = vpop.f32.mrf.mxu0
      %v5800 = vadd.f32 %v5570, %v5799
      %v5801 = vpop.f32.mrf.mxu0
      %5802 = vmatprep.mubr.bf16.mxu0 %v5663
      %5803 = vmatmul.mubr.bf16.gmra.mxu0 %v5539
      %v5804 = vpop.f32.mrf.mxu0
      %v5805 = vadd.f32 %v5570, %v5804
      %v5806 = vpop.f32.mrf.mxu0
      %v5807 = vpop.f32.mrf.mxu0
      %v5808 = vadd.f32 %v5570, %v5807
      %v5809 = vpop.f32.mrf.mxu0
      %5810 = vmatprep.mubr.bf16.mxu0 %v5666
      %5811 = vmatmul.mubr.bf16.gmra.mxu0 %v5541
      %v5812 = vpop.f32.mrf.mxu0
      %v5813 = vadd.f32 %v5570, %v5812
      %v5814 = vpop.f32.mrf.mxu0
      %v5815 = vpop.f32.mrf.mxu0
      %v5816 = vadd.f32 %v5570, %v5815
      %v5817 = vpop.f32.mrf.mxu0
      %5818 = vmatprep.mubr.bf16.mxu0 %v5669
      %5819 = vmatmul.mubr.bf16.gmra.mxu0 %v5543
      %v5820 = vpop.f32.mrf.mxu0
      %v5821 = vadd.f32 %v5570, %v5820
      %v5822 = vpop.f32.mrf.mxu0
      %v5823 = vpop.f32.mrf.mxu0
      %v5824 = vadd.f32 %v5570, %v5823
      %v5825 = vpop.f32.mrf.mxu0
      %5826 = vmatprep.mubr.bf16.mxu0 %v5672
      %5827 = vmatmul.mubr.bf16.gmra.mxu0 %v5545
      %v5828 = vpop.f32.mrf.mxu0
      %v5829 = vadd.f32 %v5570, %v5828
      %v5830 = vpop.f32.mrf.mxu0
      %v5831 = vpop.f32.mrf.mxu0
      %v5832 = vadd.f32 %v5570, %v5831
      %v5833 = vpop.f32.mrf.mxu0
      %5834 = vdwg.mxu0
      %v5835 = vmax.f32 %v5709, 0.0
      %v5836 = vmax.f32 %v5712, 0.0
      %v5837 = vmax.f32 %v5717, 0.0
      %v5838 = vmax.f32 %v5720, 0.0
      %v5839 = vmax.f32 %v5725, 0.0
      %v5840 = vmax.f32 %v5728, 0.0
      %v5841 = vmax.f32 %v5733, 0.0
      %v5842 = vmax.f32 %v5736, 0.0
      %v5843 = vmax.f32 %v5741, 0.0
      %v5844 = vmax.f32 %v5744, 0.0
      %v5845 = vmax.f32 %v5749, 0.0
      %v5846 = vmax.f32 %v5752, 0.0
      %v5847 = vmax.f32 %v5757, 0.0
      %v5848 = vmax.f32 %v5760, 0.0
      %v5849 = vmax.f32 %v5765, 0.0
      %v5850 = vmax.f32 %v5768, 0.0
      %v5851 = vmax.f32 %v5773, 0.0
      %v5852 = vmax.f32 %v5776, 0.0
      %v5853 = vmax.f32 %v5781, 0.0
      %v5854 = vmax.f32 %v5784, 0.0
      %v5855 = vmax.f32 %v5789, 0.0
      %v5856 = vmax.f32 %v5792, 0.0
      %v5857 = vmax.f32 %v5797, 0.0
      %v5858 = vmax.f32 %v5800, 0.0
      %v5859 = vmax.f32 %v5805, 0.0
      %v5860 = vmax.f32 %v5808, 0.0
      %v5861 = vmax.f32 %v5813, 0.0
      %v5862 = vmax.f32 %v5816, 0.0
      %v5863 = vmax.f32 %v5821, 0.0
      %v5864 = vmax.f32 %v5824, 0.0
      %v5865 = vmax.f32 %v5829, 0.0
      %v5866 = vmax.f32 %v5832, 0.0
      %v5867 = vpack.c.bf16 %v5836, %v5835
      %v5868 = vpack.c.bf16 %v5838, %v5837
      %v5869 = vpack.c.bf16 %v5840, %v5839
      %v5870 = vpack.c.bf16 %v5842, %v5841
      %v5871 = vpack.c.bf16 %v5844, %v5843
      %v5872 = vpack.c.bf16 %v5846, %v5845
      %v5873 = vpack.c.bf16 %v5848, %v5847
      %v5874 = vpack.c.bf16 %v5850, %v5849
      %v5875 = vpack.c.bf16 %v5852, %v5851
      %v5876 = vpack.c.bf16 %v5854, %v5853
      %v5877 = vpack.c.bf16 %v5856, %v5855
      %v5878 = vpack.c.bf16 %v5858, %v5857
      %v5879 = vpack.c.bf16 %v5860, %v5859
      %v5880 = vpack.c.bf16 %v5862, %v5861
      %v5881 = vpack.c.bf16 %v5864, %v5863
      %v5882 = vpack.c.bf16 %v5866, %v5865
      %v5883 = vld [vmem:[%s8] sm:$0xf]
      %v5884 = vld [vmem:[%s8 + $0x4] sm:$0xf]
      %v5885 = vld [vmem:[%s9] sm:$0x1]
      %v5887 = vlaneseq
      %v5888 = vshrl.u32 %v5887, 7
      %v5889 = vsub.s32 0, %v5888
      %v5890 = vrot.slane %v5885, %v5889
      %v5894 = vunpack.c.l.b16 %v5883
      %v5895 = vunpack.c.l.b16 %v5884
      %v5896 = vpack.c.b16 %v5895, %v5894
      %v5899 = vsel %vm907, %v5867, 0
      %v5902 = vsel %vm907, %v5868, 0
      %v5905 = vsel %vm907, %v5869, 0
      %v5908 = vsel %vm907, %v5870, 0
      %v5911 = vsel %vm907, %v5871, 0
      %v5914 = vsel %vm907, %v5872, 0
      %v5917 = vsel %vm907, %v5873, 0
      %v5920 = vsel %vm907, %v5874, 0
      %v5923 = vsel %vm907, %v5875, 0
      %v5926 = vsel %vm907, %v5876, 0
      %v5929 = vsel %vm907, %v5877, 0
      %v5932 = vsel %vm907, %v5878, 0
      %v5935 = vsel %vm907, %v5879, 0
      %v5938 = vsel %vm907, %v5880, 0
      %v5941 = vsel %vm907, %v5881, 0
      %v5944 = vsel %vm907, %v5882, 0
      %5946 = vmatprep.subr.bf16.mxu0 0
      %5947 = vmatpush1.bf16.msra.mxu0 0
      %5948 = vmatprep.subr.bf16.mxu0 0
      %5949 = vmatpush1.bf16.msra.mxu0 0
      %5950 = vmatprep.subr.bf16.mxu0 0
      %5951 = vmatpush1.bf16.msra.mxu0 0
      %5952 = vmatprep.subr.bf16.mxu0 0
      %5953 = vmatpush1.bf16.msra.mxu0 0
      %5954 = vmatprep.subr.bf16.mxu0 0
      %5955 = vmatpush1.bf16.msra.mxu0 0
      %5956 = vmatprep.subr.bf16.mxu0 0
      %5957 = vmatpush1.bf16.msra.mxu0 0
      %5958 = vmatprep.subr.bf16.mxu0 0
      %5959 = vmatpush1.bf16.msra.mxu0 0
      %5960 = vmatprep.subr.bf16.mxu0 0
      %5961 = vmatpush1.bf16.msra.mxu0 %v5896
      %5962 = vmatprep.subr.bf16.mxu0 0
      %5963 = vmatpush2.bf16.msra.mxu0 0
      %5964 = vmatprep.subr.bf16.mxu0 0
      %5965 = vmatpush2.bf16.msra.mxu0 0
      %5966 = vmatprep.subr.bf16.mxu0 0
      %5967 = vmatpush2.bf16.msra.mxu0 0
      %5968 = vmatprep.subr.bf16.mxu0 0
      %5969 = vmatpush2.bf16.msra.mxu0 0
      %5970 = vmatprep.subr.bf16.mxu0 0
      %5971 = vmatpush2.bf16.msra.mxu0 0
      %5972 = vmatprep.subr.bf16.mxu0 0
      %5973 = vmatpush2.bf16.msra.mxu0 0
      %5974 = vmatprep.subr.bf16.mxu0 0
      %5975 = vmatpush2.bf16.msra.mxu0 0
      %5976 = vmatprep.subr.bf16.mxu0 0
      %5977 = vmatpush2.bf16.msra.mxu0 0
      %5978 = vmatprep.mubr.bf16.mxu0 0
      %5979 = vmatmul.mubr.bf16.gmra.mxu0 %v5899
      %v5980 = vpop.f32.mrf.mxu0
      %v5981 = vadd.f32 %v5890, %v5980
      %v5982 = vpop.f32.mrf.mxu0
      %v5983 = vpop.f32.mrf.mxu0
      %v5984 = vadd.f32 %v5890, %v5983
      %v5985 = vpop.f32.mrf.mxu0
      %5986 = vmatprep.mubr.bf16.mxu0 0
      %5987 = vmatmul.mubr.bf16.gmra.mxu0 %v5902
      %v5988 = vpop.f32.mrf.mxu0
      %v5989 = vadd.f32 %v5890, %v5988
      %v5990 = vpop.f32.mrf.mxu0
      %v5991 = vpop.f32.mrf.mxu0
      %v5992 = vadd.f32 %v5890, %v5991
      %v5993 = vpop.f32.mrf.mxu0
      %5994 = vmatprep.mubr.bf16.mxu0 0
      %5995 = vmatmul.mubr.bf16.gmra.mxu0 %v5905
      %v5996 = vpop.f32.mrf.mxu0
      %v5997 = vadd.f32 %v5890, %v5996
      %v5998 = vpop.f32.mrf.mxu0
      %v5999 = vpop.f32.mrf.mxu0
      %v6000 = vadd.f32 %v5890, %v5999
      %v6001 = vpop.f32.mrf.mxu0
      %6002 = vmatprep.mubr.bf16.mxu0 0
      %6003 = vmatmul.mubr.bf16.gmra.mxu0 %v5908
      %v6004 = vpop.f32.mrf.mxu0
      %v6005 = vadd.f32 %v5890, %v6004
      %v6006 = vpop.f32.mrf.mxu0
      %v6007 = vpop.f32.mrf.mxu0
      %v6008 = vadd.f32 %v5890, %v6007
      %v6009 = vpop.f32.mrf.mxu0
      %6010 = vmatprep.mubr.bf16.mxu0 0
      %6011 = vmatmul.mubr.bf16.gmra.mxu0 %v5911
      %v6012 = vpop.f32.mrf.mxu0
      %v6013 = vadd.f32 %v5890, %v6012
      %v6014 = vpop.f32.mrf.mxu0
      %v6015 = vpop.f32.mrf.mxu0
      %v6016 = vadd.f32 %v5890, %v6015
      %v6017 = vpop.f32.mrf.mxu0
      %6018 = vmatprep.mubr.bf16.mxu0 0
      %6019 = vmatmul.mubr.bf16.gmra.mxu0 %v5914
      %v6020 = vpop.f32.mrf.mxu0
      %v6021 = vadd.f32 %v5890, %v6020
      %v6022 = vpop.f32.mrf.mxu0
      %v6023 = vpop.f32.mrf.mxu0
      %v6024 = vadd.f32 %v5890, %v6023
      %v6025 = vpop.f32.mrf.mxu0
      %6026 = vmatprep.mubr.bf16.mxu0 0
      %6027 = vmatmul.mubr.bf16.gmra.mxu0 %v5917
      %v6028 = vpop.f32.mrf.mxu0
      %v6029 = vadd.f32 %v5890, %v6028
      %v6030 = vpop.f32.mrf.mxu0
      %v6031 = vpop.f32.mrf.mxu0
      %v6032 = vadd.f32 %v5890, %v6031
      %v6033 = vpop.f32.mrf.mxu0
      %6034 = vmatprep.mubr.bf16.mxu0 0
      %6035 = vmatmul.mubr.bf16.gmra.mxu0 %v5920
      %v6036 = vpop.f32.mrf.mxu0
      %v6037 = vadd.f32 %v5890, %v6036
      %v6038 = vpop.f32.mrf.mxu0
      %v6039 = vpop.f32.mrf.mxu0
      %v6040 = vadd.f32 %v5890, %v6039
      %v6041 = vpop.f32.mrf.mxu0
      %6042 = vmatprep.mubr.bf16.mxu0 0
      %6043 = vmatmul.mubr.bf16.gmra.mxu0 %v5923
      %v6044 = vpop.f32.mrf.mxu0
      %v6045 = vadd.f32 %v5890, %v6044
      %v6046 = vpop.f32.mrf.mxu0
      %v6047 = vpop.f32.mrf.mxu0
      %v6048 = vadd.f32 %v5890, %v6047
      %v6049 = vpop.f32.mrf.mxu0
      %6050 = vmatprep.mubr.bf16.mxu0 0
      %6051 = vmatmul.mubr.bf16.gmra.mxu0 %v5926
      %v6052 = vpop.f32.mrf.mxu0
      %v6053 = vadd.f32 %v5890, %v6052
      %v6054 = vpop.f32.mrf.mxu0
      %v6055 = vpop.f32.mrf.mxu0
      %v6056 = vadd.f32 %v5890, %v6055
      %v6057 = vpop.f32.mrf.mxu0
      %6058 = vmatprep.mubr.bf16.mxu0 0
      %6059 = vmatmul.mubr.bf16.gmra.mxu0 %v5929
      %v6060 = vpop.f32.mrf.mxu0
      %v6061 = vadd.f32 %v5890, %v6060
      %v6062 = vpop.f32.mrf.mxu0
      %v6063 = vpop.f32.mrf.mxu0
      %v6064 = vadd.f32 %v5890, %v6063
      %v6065 = vpop.f32.mrf.mxu0
      %6066 = vmatprep.mubr.bf16.mxu0 0
      %6067 = vmatmul.mubr.bf16.gmra.mxu0 %v5932
      %v6068 = vpop.f32.mrf.mxu0
      %v6069 = vadd.f32 %v5890, %v6068
      %v6070 = vpop.f32.mrf.mxu0
      %v6071 = vpop.f32.mrf.mxu0
      %v6072 = vadd.f32 %v5890, %v6071
      %v6073 = vpop.f32.mrf.mxu0
      %6074 = vmatprep.mubr.bf16.mxu0 0
      %6075 = vmatmul.mubr.bf16.gmra.mxu0 %v5935
      %v6076 = vpop.f32.mrf.mxu0
      %v6077 = vadd.f32 %v5890, %v6076
      %v6078 = vpop.f32.mrf.mxu0
      %v6079 = vpop.f32.mrf.mxu0
      %v6080 = vadd.f32 %v5890, %v6079
      %v6081 = vpop.f32.mrf.mxu0
      %6082 = vmatprep.mubr.bf16.mxu0 0
      %6083 = vmatmul.mubr.bf16.gmra.mxu0 %v5938
      %v6084 = vpop.f32.mrf.mxu0
      %v6085 = vadd.f32 %v5890, %v6084
      %v6086 = vpop.f32.mrf.mxu0
      %v6087 = vpop.f32.mrf.mxu0
      %v6088 = vadd.f32 %v5890, %v6087
      %v6089 = vpop.f32.mrf.mxu0
      %6090 = vmatprep.mubr.bf16.mxu0 0
      %6091 = vmatmul.mubr.bf16.gmra.mxu0 %v5941
      %v6092 = vpop.f32.mrf.mxu0
      %v6093 = vadd.f32 %v5890, %v6092
      %v6094 = vpop.f32.mrf.mxu0
      %v6095 = vpop.f32.mrf.mxu0
      %v6096 = vadd.f32 %v5890, %v6095
      %v6097 = vpop.f32.mrf.mxu0
      %6098 = vmatprep.mubr.bf16.mxu0 0
      %6099 = vmatmul.mubr.bf16.gmra.mxu0 %v5944
      %v6100 = vpop.f32.mrf.mxu0
      %v6101 = vadd.f32 %v5890, %v6100
      %v6102 = vpop.f32.mrf.mxu0
      %v6103 = vpop.f32.mrf.mxu0
      %v6104 = vadd.f32 %v5890, %v6103
      %v6105 = vpop.f32.mrf.mxu0
      %6106 = vdwg.mxu0
      %v6107 = vadd.f32 %v5981, %v413
      %v6108 = vadd.f32 %v5984, %v414
      %v6109 = vadd.f32 %v5989, %v415
      %v6110 = vadd.f32 %v5992, %v416
      %v6111 = vadd.f32 %v5997, %v417
      %v6112 = vadd.f32 %v6000, %v418
      %v6113 = vadd.f32 %v6005, %v419
      %v6114 = vadd.f32 %v6008, %v420
      %v6115 = vadd.f32 %v6013, %v421
      %v6116 = vadd.f32 %v6016, %v422
      %v6117 = vadd.f32 %v6021, %v423
      %v6118 = vadd.f32 %v6024, %v424
      %v6119 = vadd.f32 %v6029, %v425
      %v6120 = vadd.f32 %v6032, %v426
      %v6121 = vadd.f32 %v6037, %v427
      %v6122 = vadd.f32 %v6040, %v428
      %v6123 = vadd.f32 %v6045, %v429
      %v6124 = vadd.f32 %v6048, %v430
      %v6125 = vadd.f32 %v6053, %v431
      %v6126 = vadd.f32 %v6056, %v432
      %v6127 = vadd.f32 %v6061, %v433
      %v6128 = vadd.f32 %v6064, %v434
      %v6129 = vadd.f32 %v6069, %v435
      %v6130 = vadd.f32 %v6072, %v436
      %v6131 = vadd.f32 %v6077, %v437
      %v6132 = vadd.f32 %v6080, %v438
      %v6133 = vadd.f32 %v6085, %v439
      %v6134 = vadd.f32 %v6088, %v440
      %v6135 = vadd.f32 %v6093, %v441
      %v6136 = vadd.f32 %v6096, %v442
      %v6137 = vadd.f32 %v6101, %v443
      %v6138 = vadd.f32 %v6104, %v444
      %6139 = vst.msk [vmem:[%s379] sm:$0xff] %vm693, %v6107
      %6140 = vst.msk [vmem:[%s379 + $0x8] sm:$0xff] %vm693, %v6108
      %6141 = vst.msk [vmem:[%s379 + $0x10] sm:$0xff] %vm693, %v6109
      %6142 = vst.msk [vmem:[%s379 + $0x18] sm:$0xff] %vm693, %v6110
      %6143 = vst.msk [vmem:[%s379 + $0x20] sm:$0xff] %vm693, %v6111
      %6144 = vst.msk [vmem:[%s379 + $0x28] sm:$0xff] %vm693, %v6112
      %6145 = vst.msk [vmem:[%s379 + $0x30] sm:$0xff] %vm693, %v6113
      %6146 = vst.msk [vmem:[%s379 + $0x38] sm:$0xff] %vm693, %v6114
      %6147 = vst.msk [vmem:[%s379 + $0x40] sm:$0xff] %vm693, %v6115
      %6148 = vst.msk [vmem:[%s379 + $0x48] sm:$0xff] %vm693, %v6116
      %6149 = vst.msk [vmem:[%s379 + $0x50] sm:$0xff] %vm693, %v6117
      %6150 = vst.msk [vmem:[%s379 + $0x58] sm:$0xff] %vm693, %v6118
      %6151 = vst.msk [vmem:[%s379 + $0x60] sm:$0xff] %vm693, %v6119
      %6152 = vst.msk [vmem:[%s379 + $0x68] sm:$0xff] %vm693, %v6120
      %6153 = vst.msk [vmem:[%s379 + $0x70] sm:$0xff] %vm693, %v6121
      %6154 = vst.msk [vmem:[%s379 + $0x78] sm:$0xff] %vm693, %v6122
      %6155 = vst.msk [vmem:[%s379 + $0x80] sm:$0xff] %vm693, %v6123
      %6156 = vst.msk [vmem:[%s379 + $0x88] sm:$0xff] %vm693, %v6124
      %6157 = vst.msk [vmem:[%s379 + $0x90] sm:$0xff] %vm693, %v6125
      %6158 = vst.msk [vmem:[%s379 + $0x98] sm:$0xff] %vm693, %v6126
      %6159 = vst.msk [vmem:[%s379 + $0xa0] sm:$0xff] %vm693, %v6127
      %6160 = vst.msk [vmem:[%s379 + $0xa8] sm:$0xff] %vm693, %v6128
      %6161 = vst.msk [vmem:[%s379 + $0xb0] sm:$0xff] %vm693, %v6129
      %6162 = vst.msk [vmem:[%s379 + $0xb8] sm:$0xff] %vm693, %v6130
      %6163 = vst.msk [vmem:[%s379 + $0xc0] sm:$0xff] %vm693, %v6131
      %6164 = vst.msk [vmem:[%s379 + $0xc8] sm:$0xff] %vm693, %v6132
      %6165 = vst.msk [vmem:[%s379 + $0xd0] sm:$0xff] %vm693, %v6133
      %6166 = vst.msk [vmem:[%s379 + $0xd8] sm:$0xff] %vm693, %v6134
      %6167 = vst.msk [vmem:[%s379 + $0xe0] sm:$0xff] %vm693, %v6135
      %6168 = vst.msk [vmem:[%s379 + $0xe8] sm:$0xff] %vm693, %v6136
      %6169 = vst.msk [vmem:[%s379 + $0xf0] sm:$0xff] %vm693, %v6137
      %6170 = vst.msk [vmem:[%s379 + $0xf8] sm:$0xff] %vm693, %v6138
      %p6171 = scmp.lt.s32.totalorder %s21, 1
      %s6172 = scalar_select %p6171, %s21, 1
      %s6173 = smul.addr %s6172, 32
      %s6174 = smul.addr %s6173, 8
      %s6175 = scalar_lea.vmem %s10, %s6174
      // Predicated region
      $region61: #{erm_forward.1} parent=59 // pred_check
        %p6176 = pneg %p259
      $region62: #{erm_forward.1} parent=59 // pred_check_branch
        %6178 = sbr.rel (%p6176) target = $region64
      $region63: #{erm_forward.1} parent=59 // pred_region
        _
      $region64: #{erm_forward.1} parent=59 // pred_fallthru
        _
    $region60: #{erm_forward.1} parent=5 // pred_fallthru
      _
    %p6179 = scmp.le.s32.totalorder 2, %s16
    // Predicated region
    $region65: #{erm_forward.1} parent=5 // pred_check
      %p6180 = pneg %p6179
    $region66: #{erm_forward.1} parent=5 // pred_check_branch
      %6182 = sbr.rel (%p6180) target = $region68
    $region67: #{erm_forward.1} parent=5 // pred_region
      %s6183 = ssub.s32 %s16, 2
      // Predicated region
      $region69: #{erm_forward.1} parent=67 // pred_check
        %p6184 = pneg %p265
      $region70: #{erm_forward.1} parent=67 // pred_check_branch
        %6186 = sbr.rel (%p6184) target = $region72
      $region71: #{erm_forward.1} parent=67 // pred_region
        %p6187 = scmp.lt.s32.totalorder %s22, 1
        %s6188 = scalar_select %p6187, %s22, 1
        %s6189 = smul.addr %s6188, 32
        %s6190 = smul.addr %s6189, 8
        %s6191 = scalar_lea.vmem %s10, %s6190
      $region72: #{erm_forward.1} parent=67 // pred_fallthru
        _
    $region68: #{erm_forward.1} parent=5 // pred_fallthru
      _
  $region6: #{erm_forward.1} parent=0 // loop_footer
    %s20 = sadd.s32 1, %s16
  $region7: #{erm_forward.1} parent=0 // loop_footer_branch
    %15 = sbr.rel target = $region3
  $region8: #{erm_forward.1} parent=0 // loop_exit
    _

</llo_original>
